<compile_context>
chip_gen: v7x
topology: tpu7x:2x2x1
jax: 0.10.0
libtpu: 0.0.40
codegen_flags: <defaults>
</compile_context>

<pallas_src>
import math
import functools

import jax
import jax.numpy as jnp
from jax.experimental import pallas as pl
from jax.experimental.pallas import tpu as pltpu


# ---------------------------------------------------------------------------
# Positional embedding (plain JAX glue — matches sinu_posn_embedding exactly)
# ---------------------------------------------------------------------------
def sinu_posn_embedding(max_len: int, dim: int) -> jnp.ndarray:
    position = jnp.arange(0, max_len, dtype=jnp.float32)[:, None]           # (L, 1)
    div_term = jnp.exp(
        jnp.arange(0, dim, 2, dtype=jnp.float32) * -(math.log(10000.0) / dim)
    )                                                                        # (dim/2,)
    angles = position * div_term                                             # (L, dim/2)
    pe = jnp.zeros((max_len, dim), dtype=jnp.float32)
    pe = pe.at[:, 0::2].set(jnp.sin(angles))
    pe = pe.at[:, 1::2].set(jnp.cos(angles))
    return pe


# ---------------------------------------------------------------------------
# Pallas kernel: full MHA hot path for one batch tile.
#   (on-chip layout transpose) -> fused qkv projection -> per-head softmax attention
#   -> out-projection -> residual -> (transpose back to caller layout)
# ---------------------------------------------------------------------------
def _self_attention_kernel(x_ref, pe_ref, wqkv_ref, bqkv_ref, wo_h_ref, bo_ref, o_ref,
                           *, n_heads: int, use_bf16: bool, transpose_io: bool):
    x_raw = x_ref[...]
    if transpose_io:
        # Block arrives in the caller's [B, C, T] layout; transpose on-chip (XLU) instead
        # of paying two extra HBM passes for XLA transposes in the wrapper.
        x = jnp.transpose(x_raw, (0, 2, 1)).astype(jnp.float32)        # (BT, T, C)
    else:
        x = x_raw.astype(jnp.float32)
    BT, T, C = x.shape
    hd = C // n_heads

    # Cast only MXU operands; keep all elementwise math in f32 (v5e has no bf16 VPU/EUP).
    mx = (lambda a: a.astype(jnp.bfloat16)) if use_bf16 else (lambda a: a)

    attn_in = x + pe_ref[...]                       # (BT, T, C); pe broadcast over BT
    flat = attn_in.reshape(BT * T, C)               # fuse batch+time for big-M projection

    # Fused in-projection: one (BT*T, C) x (C, 3C) matmul.  Softmax scale 1/sqrt(hd) is
    # already folded into the q columns / q bias by the wrapper.  (For C % 128 != 0 the
    # q/k/v split below is a sub-lane-tile slice; the 3x N-fill of the fused matmul still
    # wins, and for C % 128 == 0 the splits are lane-tile aligned.)
    qkv = jnp.dot(mx(flat), wqkv_ref[...], preferred_element_type=jnp.float32)
    qkv = qkv + bqkv_ref[...]                       # (BT*T, 3C) f32
    q3 = mx(qkv[:, 0:C].reshape(BT, T, C))
    k3 = mx(qkv[:, C:2 * C].reshape(BT, T, C))
    v3 = mx(qkv[:, 2 * C:3 * C].reshape(BT, T, C))

    # TODO(synk): for large n_heads switch this static loop to lax.fori_loop (bounded
    # live ranges) and/or batch all heads into one 3-D einsum once the required
    # (BT, T, H, hd) -> (BT, H, T, hd) relayout is cheap for sub-128 hd.
    concat_proj = (hd % 128 == 0)                   # lane-aligned concat only when free
    ctx_heads = []
    proj = jnp.zeros((BT * T, C), jnp.float32)
    for h in range(n_heads):                        # static, small
        lo = h * hd
        qh = q3[:, :, lo:lo + hd]                   # (BT, T, hd)
        kh = k3[:, :, lo:lo + hd]
        vh = v3[:, :, lo:lo + hd]

        # TODO(synk): flash-style K-tiled online softmax for long sequences instead of
        # materializing (BT, T, T) scores — the dominant VMEM term (matters most on
        # v7x's 64 MiB VMEM, where feasible (b_tile, T) is ~half that of v5e/v6e).
        s = jnp.einsum("bqd,bkd->bqk", qh, kh, preferred_element_type=jnp.float32)
        s = s - jnp.max(s, axis=-1, keepdims=True)
        p = jnp.exp(s)
        d = jnp.sum(p, axis=-1, keepdims=True)
        r = pl.reciprocal(d, approx=True)           # EUP slot
        r = r * (2.0 - d * r)                       # one Newton step -> f32 accurate
        p = p * r

        ctx = jnp.einsum("bqk,bkd->bqd", mx(p), vh, preferred_element_type=jnp.float32)
        if concat_proj:
            ctx_heads.append(ctx)
        else:
            # Small hd: sum of per-head projections (ctx_h @ Wo_h) avoids a sub-128
            # lane-concat; mathematically identical to concat + full out-projection.
            proj = proj + jnp.dot(mx(ctx.reshape(BT * T, hd)), wo_h_ref[h],
                                  preferred_element_type=jnp.float32)

    if concat_proj:
        # Lane-aligned concat + a single K=C out-projection (full MXU contraction fill,
        # no long-lived f32 accumulator).
        ctx_all = jnp.concatenate(ctx_heads, axis=-1).reshape(BT * T, C)
        proj = jnp.dot(mx(ctx_all), wo_h_ref[...].reshape(C, C),
                       preferred_element_type=jnp.float32)

    # Residual uses x WITHOUT the positional embedding (module semantics).
    out = x + (proj + bo_ref[...]).reshape(BT, T, C)
    if transpose_io:
        out = jnp.transpose(out, (0, 2, 1))         # back to caller layout (BT, C, T)
    o_ref[...] = out.astype(o_ref.dtype)


# ---------------------------------------------------------------------------
# VMEM-aware batch-tile selection
# ---------------------------------------------------------------------------
def _pick_b_tile(batch: int, T: int, C: int, in_itemsize: int,
                 vmem_budget: int, target_m: int = 256) -> int:
    """Largest divisor of `batch` whose working set fits `vmem_budget`, stopping once the
    fused-projection M dim (b_tile*T) reaches `target_m`.  Keeps grid length >= 2 when
    possible so the 'parallel' batch axis can be split across v7x's two TensorCores."""
    best = 1
    for bt in range(1, batch + 1):
        if batch % bt:
            continue
        if batch >= 2 and batch // bt < 2:
            continue                                 # keep >= 2 grid steps
        io_bytes = 2 * 2 * bt * T * C * in_itemsize  # double-buffered in + out blocks
        inter_bytes = (6 * C + 2 * T) * bt * T * 4   # f32 attn_in/qkv/proj + live scores
        if io_bytes + inter_bytes > vmem_budget:
            break                                    # monotone in bt
        best = bt
        if bt * T >= target_m:
            break
    return best


# ---------------------------------------------------------------------------
# Wrapper
# ---------------------------------------------------------------------------
def self_attention_pallas(x, params, pe_full, n_heads: int, permute: bool = True,
                          use_bf16_matmul: bool = True):
    """x: [B, C, T] if permute else [B, T, C]. Returns the same layout as the input.
    params = (in_proj_weight (3C,C), in_proj_bias (3C,), out_proj_weight (C,C),
              out_proj_bias (C,)) — the nn.MultiheadAttention parameters."""
    B = x.shape[0]
    if permute:
        _, C, T = x.shape
    else:
        _, T, C = x.shape
    assert C % n_heads == 0, "channels must be divisible by n_heads"
    hd = C // n_heads
    scale = 1.0 / math.sqrt(hd)

    in_w, in_b, out_w, out_b = params                # (3C,C), (3C,), (C,C), (C,)
    w_dtype = jnp.bfloat16 if use_bf16_matmul else jnp.float32

    # Weights pre-transposed, fused, scaled and pre-cast ONCE here (not per grid step).
    wq_t = in_w[0:C].T * scale                       # scale folded into q columns
    wk_t = in_w[C:2 * C].T
    wv_t = in_w[2 * C:3 * C].T
    wqkv_t = jnp.concatenate([wq_t, wk_t, wv_t], axis=1).astype(w_dtype)     # (C, 3C)
    bqkv = jnp.concatenate(
        [in_b[0:C] * scale, in_b[C:2 * C], in_b[2 * C:3 * C]]
    ).reshape(1, 3 * C).astype(jnp.float32)                                  # (1, 3C) f32
    wo_heads = out_w.T.reshape(n_heads, hd, C).astype(w_dtype)               # per-head Wo^T
    bo = out_b.reshape(1, C).astype(jnp.float32)

    if pe_full is None:                              # max_len=None -> no positional emb
        pe = jnp.zeros((T, C), jnp.float32)
    else:
        assert pe_full.shape[0] >= T, "positional-embedding table shorter than sequence"
        pe = pe_full[:T, :].astype(jnp.float32)      # keep the elementwise add in f32

    # Re-derive tiling per chip generation (v5e/v6e: 128 MiB VMEM, v7x: 64 MiB).
    try:
        phys_vmem = int(pltpu.get_tpu_info().vmem_capacity_bytes)
    except Exception:
        phys_vmem = 64 * 1024 * 1024                 # conservative (v7x per-core VMEM)
    vmem_limit = min(phys_vmem * 3 // 4, 96 * 1024 * 1024)
    b_tile = _pick_b_tile(B, T, C, x.dtype.itemsize, vmem_budget=vmem_limit // 2)
    grid = (B // b_tile,)

    blk = (b_tile, C, T) if permute else (b_tile, T, C)   # caller layout; no XLA transpose
    kernel = functools.partial(_self_attention_kernel, n_heads=n_heads,
                               use_bf16=use_bf16_matmul, transpose_io=permute)
    const2d = lambda b: (0, 0)

    out = pl.pallas_call(
        kernel,
        out_shape=jax.ShapeDtypeStruct(x.shape, x.dtype),
        grid_spec=pltpu.PrefetchScalarGridSpec(
            num_scalar_prefetch=0,
            grid=grid,
            in_specs=[
                pl.BlockSpec(blk, lambda b: (b, 0, 0)),               # x (caller layout)
                pl.BlockSpec((T, C), const2d),                        # positional emb
                pl.BlockSpec((C, 3 * C), const2d),                    # fused Wqkv^T (q scaled)
                pl.BlockSpec((1, 3 * C), const2d),                    # fused bias (q scaled)
                pl.BlockSpec((n_heads, hd, C), lambda b: (0, 0, 0)),  # per-head Wo^T slabs
                pl.BlockSpec((1, C), const2d),                        # bo
            ],
            out_specs=pl.BlockSpec(blk, lambda b: (b, 0, 0)),
        ),
        compiler_params=pltpu.CompilerParams(
            dimension_semantics=("parallel",),       # batch tiles are independent
            vmem_limit_bytes=vmem_limit,
        ),
    )(x, pe, wqkv_t, bqkv, wo_heads, bo)
    return out


# ---------------------------------------------------------------------------
# Pure-JAX reference (mirrors torch.nn.MultiheadAttention forward, batch_first)
# ---------------------------------------------------------------------------
def self_attention_ref(x, params, pe_full, n_heads: int, permute: bool = True):
    if permute:
        x_btc = jnp.transpose(x, (0, 2, 1))
    else:
        x_btc = x
    B, T, C = x_btc.shape
    in_w, in_b, out_w, out_b = params
    hd = C // n_heads
    attn_in = x_btc + (pe_full[None, :T, :] if pe_full is not None else 0.0)
    qkv = jnp.einsum("btc,dc->btd", attn_in, in_w) + in_b                    # (B,T,3C)
    q, k, v = qkv[..., :C], qkv[..., C:2 * C], qkv[..., 2 * C:]
    def split(t):  # (B,T,C) -> (B,H,T,hd)
        return jnp.transpose(t.reshape(B, T, n_heads, hd), (0, 2, 1, 3))
    qh, kh, vh = split(q), split(k), split(v)
    scores = jnp.einsum("bhqd,bhkd->bhqk", qh, kh) / math.sqrt(hd)
    p = jax.nn.softmax(scores, axis=-1)
    ctx = jnp.einsum("bhqk,bhkd->bhqd", p, vh)
    ctx = jnp.transpose(ctx, (0, 2, 1, 3)).reshape(B, T, C)
    attn_out = jnp.einsum("btc,dc->btd", ctx, out_w) + out_b
    out = x_btc + attn_out
    if permute:
        out = jnp.transpose(out, (0, 2, 1))
    return out


if __name__ == "__main__":
    # Module forward takes x as [B, C, T] (permute=True).  Small, lane-aligned shapes.
    B, C, T = 2, 128, 128
    n_heads = 4
    max_len = 256

    key = jax.random.PRNGKey(0)
    k_x, k_inw, k_inb, k_ow, k_ob = jax.random.split(key, 5)

    x = jax.random.normal(k_x, (B, C, T), dtype=jnp.float32)

    # Deterministic synthetic parameters (shapes from nn.MultiheadAttention(C, n_heads)).
    in_proj_weight = jax.random.normal(k_inw, (3 * C, C), dtype=jnp.float32) * (1.0 / math.sqrt(C))
    in_proj_bias = jax.random.normal(k_inb, (3 * C,), dtype=jnp.float32) * 0.02
    out_proj_weight = jax.random.normal(k_ow, (C, C), dtype=jnp.float32) * (1.0 / math.sqrt(C))
    out_proj_bias = jax.random.normal(k_ob, (C,), dtype=jnp.float32) * 0.02
    params = (in_proj_weight, in_proj_bias, out_proj_weight, out_proj_bias)

    pe_full = sinu_posn_embedding(max_len, C)        # (max_len, C)

    ref = self_attention_ref(x, params, pe_full, n_heads, permute=True)

    # f32 MXU-operand path: tight check against the pure-JAX reference.
    out_f32 = jax.block_until_ready(
        self_attention_pallas(x, params, pe_full, n_heads, permute=True,
                              use_bf16_matmul=False))
    assert out_f32.shape == (B, C, T)
    assert jnp.allclose(out_f32, ref, atol=2e-3, rtol=2e-3), "f32 path mismatch vs reference"

    # Default path: bf16 MXU operands with f32 accumulation (tolerance reflects bf16
    # operand rounding; accumulation and all elementwise math remain f32).
    out_bf16 = jax.block_until_ready(
        self_attention_pallas(x, params, pe_full, n_heads, permute=True))
    assert out_bf16.shape == (B, C, T)
    assert jnp.allclose(out_bf16, ref, atol=5e-2, rtol=5e-2), "bf16 path mismatch vs reference"

    print("KERNEL_OK")
</pallas_src>

<mosaic_0001>
module attributes {stable_mosaic.version = 11 : i64} {
  func.func @_self_attention_kernel(%arg0: i32, %arg1: memref<1x128x128xf32, #tpu.memory_space<vmem>>, %arg2: memref<128x128xf32, #tpu.memory_space<vmem>>, %arg3: memref<128x384xf32, #tpu.memory_space<vmem>>, %arg4: memref<1x384xf32, #tpu.memory_space<vmem>>, %arg5: memref<4x32x128xf32, #tpu.memory_space<vmem>>, %arg6: memref<1x128xf32, #tpu.memory_space<vmem>>, %arg7: memref<1x128x128xf32, #tpu.memory_space<vmem>>) attributes {dimension_semantics = [#tpu.dimension_semantics<parallel>], iteration_bounds = array<i64: 2>, scalar_prefetch = 0 : i64, scratch_operands = 0 : i64, tpu.core_type = #tpu.core_type<tc>, window_params = [{transform_indices = @transform_0, window_bounds = array<i64: 1, 128, 128>}, {pipeline_mode = #tpu.pipeline_mode<synchronous>, transform_indices = @transform_1, window_bounds = array<i64: 128, 128>}, {pipeline_mode = #tpu.pipeline_mode<synchronous>, transform_indices = @transform_2, window_bounds = array<i64: 128, 384>}, {pipeline_mode = #tpu.pipeline_mode<synchronous>, transform_indices = @transform_3, window_bounds = array<i64: 1, 384>}, {pipeline_mode = #tpu.pipeline_mode<synchronous>, transform_indices = @transform_4, window_bounds = array<i64: 4, 32, 128>}, {pipeline_mode = #tpu.pipeline_mode<synchronous>, transform_indices = @transform_5, window_bounds = array<i64: 1, 128>}, {transform_indices = @transform_6, window_bounds = array<i64: 1, 128, 128>}]} {
    %c0 = arith.constant 0 : index
    %c0_0 = arith.constant 0 : index
    %c0_1 = arith.constant 0 : index
    %0 = vector.load %arg1[%c0, %c0_0, %c0_1] : memref<1x128x128xf32, #tpu.memory_space<vmem>>, vector<1x128x128xf32>
    %1 = tpu.transpose %0, [0, 2, 1] : vector<1x128x128xf32> -> vector<1x128x128xf32>
    %c0_2 = arith.constant 0 : index
    %c0_3 = arith.constant 0 : index
    %2 = vector.load %arg2[%c0_2, %c0_3] : memref<128x128xf32, #tpu.memory_space<vmem>>, vector<128x128xf32>
    %3 = vector.shape_cast %2 : vector<128x128xf32> to vector<1x128x128xf32>
    %4 = arith.addf %1, %3 : vector<1x128x128xf32>
    %5 = vector.shape_cast %4 : vector<1x128x128xf32> to vector<128x128xf32>
    %c0_4 = arith.constant 0 : index
    %c0_5 = arith.constant 0 : index
    %6 = vector.load %arg3[%c0_4, %c0_5] : memref<128x384xf32, #tpu.memory_space<vmem>>, vector<128x384xf32>
    %cst = arith.constant dense<0.000000e+00> : vector<128x384xf32>
    %7 = tpu.matmul %5, %6, %cst {dimension_numbers = #tpu.dot_dimension_numbers<[1], [0], [0], [1], [0, 0, 1, 1], [], []>} : vector<128x128xf32>, vector<128x384xf32>, vector<128x384xf32> -> vector<128x384xf32>
    %c0_6 = arith.constant 0 : index
    %c0_7 = arith.constant 0 : index
    %8 = vector.load %arg4[%c0_6, %c0_7] : memref<1x384xf32, #tpu.memory_space<vmem>>, vector<1x384xf32>
    %9 = vector.broadcast %8 : vector<1x384xf32> to vector<128x384xf32>
    %10 = arith.addf %7, %9 : vector<128x384xf32>
    %11 = vector.extract_strided_slice %10 {offsets = [0, 0], sizes = [128, 128], strides = [1, 1]} : vector<128x384xf32> to vector<128x128xf32>
    %12 = vector.shape_cast %11 : vector<128x128xf32> to vector<1x128x128xf32>
    %13 = vector.extract_strided_slice %10 {offsets = [0, 128], sizes = [128, 128], strides = [1, 1]} : vector<128x384xf32> to vector<128x128xf32>
    %14 = vector.shape_cast %13 : vector<128x128xf32> to vector<1x128x128xf32>
    %15 = vector.extract_strided_slice %10 {offsets = [0, 256], sizes = [128, 128], strides = [1, 1]} : vector<128x384xf32> to vector<128x128xf32>
    %16 = vector.shape_cast %15 : vector<128x128xf32> to vector<1x128x128xf32>
    %cst_8 = arith.constant 0.000000e+00 : f32
    %17 = vector.broadcast %cst_8 : f32 to vector<128x128xf32>
    %18 = vector.extract_strided_slice %12 {offsets = [0, 0, 0], sizes = [1, 128, 32], strides = [1, 1, 1]} : vector<1x128x128xf32> to vector<1x128x32xf32>
    %19 = vector.extract_strided_slice %14 {offsets = [0, 0, 0], sizes = [1, 128, 32], strides = [1, 1, 1]} : vector<1x128x128xf32> to vector<1x128x32xf32>
    %20 = vector.extract_strided_slice %16 {offsets = [0, 0, 0], sizes = [1, 128, 32], strides = [1, 1, 1]} : vector<1x128x128xf32> to vector<1x128x32xf32>
    "tpu.trace_start"() <{level = 10 : i32, message = "bqd,bkd->bqk"}> : () -> ()
    %cst_9 = arith.constant dense<0.000000e+00> : vector<1x128x128xf32>
    %21 = tpu.matmul %18, %19, %cst_9 {dimension_numbers = #tpu.dot_dimension_numbers<[2], [2], [1], [1], [0, 0, 0, 1, 1, 1], [0], [0]>} : vector<1x128x32xf32>, vector<1x128x32xf32>, vector<1x128x128xf32> -> vector<1x128x128xf32>
    "tpu.trace_stop"() : () -> ()
    %cst_10 = arith.constant dense<0xFF800000> : vector<1x128xf32>
    %22 = vector.multi_reduction <maximumf>, %21, %cst_10 [2] : vector<1x128x128xf32> to vector<1x128xf32>
    %23 = vector.shape_cast %22 : vector<1x128xf32> to vector<1x128x1xf32>
    %24 = vector.broadcast %23 : vector<1x128x1xf32> to vector<1x128x128xf32>
    %25 = arith.subf %21, %24 : vector<1x128x128xf32>
    %26 = math.exp %25 : vector<1x128x128xf32>
    %cst_11 = arith.constant dense<0.000000e+00> : vector<1x128xf32>
    %27 = vector.multi_reduction <add>, %26, %cst_11 [2] : vector<1x128x128xf32> to vector<1x128xf32>
    %28 = vector.shape_cast %27 : vector<1x128xf32> to vector<1x128x1xf32>
    %29 = tpu.reciprocal %28 {approx = true} : vector<1x128x1xf32> -> vector<1x128x1xf32>
    %30 = arith.mulf %28, %29 : vector<1x128x1xf32>
    %cst_12 = arith.constant 2.000000e+00 : f32
    %31 = vector.broadcast %cst_12 : f32 to vector<1x128x1xf32>
    %32 = arith.subf %31, %30 : vector<1x128x1xf32>
    %33 = arith.mulf %29, %32 : vector<1x128x1xf32>
    %34 = vector.broadcast %33 : vector<1x128x1xf32> to vector<1x128x128xf32>
    %35 = arith.mulf %26, %34 : vector<1x128x128xf32>
    "tpu.trace_start"() <{level = 10 : i32, message = "bqk,bkd->bqd"}> : () -> ()
    %cst_13 = arith.constant dense<0.000000e+00> : vector<1x128x32xf32>
    %36 = tpu.matmul %35, %20, %cst_13 {dimension_numbers = #tpu.dot_dimension_numbers<[2], [1], [1], [2], [0, 0, 0, 1, 1, 2], [0], [0]>} : vector<1x128x128xf32>, vector<1x128x32xf32>, vector<1x128x32xf32> -> vector<1x128x32xf32>
    "tpu.trace_stop"() : () -> ()
    %37 = vector.shape_cast %36 : vector<1x128x32xf32> to vector<128x32xf32>
    %c0_14 = arith.constant 0 : index
    %c0_15 = arith.constant 0 : index
    %c0_16 = arith.constant 0 : index
    %38 = vector.load %arg5[%c0_14, %c0_15, %c0_16] : memref<4x32x128xf32, #tpu.memory_space<vmem>>, vector<1x32x128xf32>
    %39 = vector.shape_cast %38 : vector<1x32x128xf32> to vector<32x128xf32>
    %cst_17 = arith.constant dense<0.000000e+00> : vector<128x128xf32>
    %40 = tpu.matmul %37, %39, %cst_17 {dimension_numbers = #tpu.dot_dimension_numbers<[1], [0], [0], [1], [0, 0, 1, 1], [], []>} : vector<128x32xf32>, vector<32x128xf32>, vector<128x128xf32> -> vector<128x128xf32>
    %41 = arith.addf %17, %40 : vector<128x128xf32>
    %42 = vector.extract_strided_slice %12 {offsets = [0, 0, 32], sizes = [1, 128, 32], strides = [1, 1, 1]} : vector<1x128x128xf32> to vector<1x128x32xf32>
    %43 = vector.extract_strided_slice %14 {offsets = [0, 0, 32], sizes = [1, 128, 32], strides = [1, 1, 1]} : vector<1x128x128xf32> to vector<1x128x32xf32>
    %44 = vector.extract_strided_slice %16 {offsets = [0, 0, 32], sizes = [1, 128, 32], strides = [1, 1, 1]} : vector<1x128x128xf32> to vector<1x128x32xf32>
    "tpu.trace_start"() <{level = 10 : i32, message = "bqd,bkd->bqk"}> : () -> ()
    %cst_18 = arith.constant dense<0.000000e+00> : vector<1x128x128xf32>
    %45 = tpu.matmul %42, %43, %cst_18 {dimension_numbers = #tpu.dot_dimension_numbers<[2], [2], [1], [1], [0, 0, 0, 1, 1, 1], [0], [0]>} : vector<1x128x32xf32>, vector<1x128x32xf32>, vector<1x128x128xf32> -> vector<1x128x128xf32>
    "tpu.trace_stop"() : () -> ()
    %cst_19 = arith.constant dense<0xFF800000> : vector<1x128xf32>
    %46 = vector.multi_reduction <maximumf>, %45, %cst_19 [2] : vector<1x128x128xf32> to vector<1x128xf32>
    %47 = vector.shape_cast %46 : vector<1x128xf32> to vector<1x128x1xf32>
    %48 = vector.broadcast %47 : vector<1x128x1xf32> to vector<1x128x128xf32>
    %49 = arith.subf %45, %48 : vector<1x128x128xf32>
    %50 = math.exp %49 : vector<1x128x128xf32>
    %cst_20 = arith.constant dense<0.000000e+00> : vector<1x128xf32>
    %51 = vector.multi_reduction <add>, %50, %cst_20 [2] : vector<1x128x128xf32> to vector<1x128xf32>
    %52 = vector.shape_cast %51 : vector<1x128xf32> to vector<1x128x1xf32>
    %53 = tpu.reciprocal %52 {approx = true} : vector<1x128x1xf32> -> vector<1x128x1xf32>
    %54 = arith.mulf %52, %53 : vector<1x128x1xf32>
    %cst_21 = arith.constant 2.000000e+00 : f32
    %55 = vector.broadcast %cst_21 : f32 to vector<1x128x1xf32>
    %56 = arith.subf %55, %54 : vector<1x128x1xf32>
    %57 = arith.mulf %53, %56 : vector<1x128x1xf32>
    %58 = vector.broadcast %57 : vector<1x128x1xf32> to vector<1x128x128xf32>
    %59 = arith.mulf %50, %58 : vector<1x128x128xf32>
    "tpu.trace_start"() <{level = 10 : i32, message = "bqk,bkd->bqd"}> : () -> ()
    %cst_22 = arith.constant dense<0.000000e+00> : vector<1x128x32xf32>
    %60 = tpu.matmul %59, %44, %cst_22 {dimension_numbers = #tpu.dot_dimension_numbers<[2], [1], [1], [2], [0, 0, 0, 1, 1, 2], [0], [0]>} : vector<1x128x128xf32>, vector<1x128x32xf32>, vector<1x128x32xf32> -> vector<1x128x32xf32>
    "tpu.trace_stop"() : () -> ()
    %61 = vector.shape_cast %60 : vector<1x128x32xf32> to vector<128x32xf32>
    %c1 = arith.constant 1 : index
    %c0_23 = arith.constant 0 : index
    %c0_24 = arith.constant 0 : index
    %62 = vector.load %arg5[%c1, %c0_23, %c0_24] : memref<4x32x128xf32, #tpu.memory_space<vmem>>, vector<1x32x128xf32>
    %63 = vector.shape_cast %62 : vector<1x32x128xf32> to vector<32x128xf32>
    %cst_25 = arith.constant dense<0.000000e+00> : vector<128x128xf32>
    %64 = tpu.matmul %61, %63, %cst_25 {dimension_numbers = #tpu.dot_dimension_numbers<[1], [0], [0], [1], [0, 0, 1, 1], [], []>} : vector<128x32xf32>, vector<32x128xf32>, vector<128x128xf32> -> vector<128x128xf32>
    %65 = arith.addf %41, %64 : vector<128x128xf32>
    %66 = vector.extract_strided_slice %12 {offsets = [0, 0, 64], sizes = [1, 128, 32], strides = [1, 1, 1]} : vector<1x128x128xf32> to vector<1x128x32xf32>
    %67 = vector.extract_strided_slice %14 {offsets = [0, 0, 64], sizes = [1, 128, 32], strides = [1, 1, 1]} : vector<1x128x128xf32> to vector<1x128x32xf32>
    %68 = vector.extract_strided_slice %16 {offsets = [0, 0, 64], sizes = [1, 128, 32], strides = [1, 1, 1]} : vector<1x128x128xf32> to vector<1x128x32xf32>
    "tpu.trace_start"() <{level = 10 : i32, message = "bqd,bkd->bqk"}> : () -> ()
    %cst_26 = arith.constant dense<0.000000e+00> : vector<1x128x128xf32>
    %69 = tpu.matmul %66, %67, %cst_26 {dimension_numbers = #tpu.dot_dimension_numbers<[2], [2], [1], [1], [0, 0, 0, 1, 1, 1], [0], [0]>} : vector<1x128x32xf32>, vector<1x128x32xf32>, vector<1x128x128xf32> -> vector<1x128x128xf32>
    "tpu.trace_stop"() : () -> ()
    %cst_27 = arith.constant dense<0xFF800000> : vector<1x128xf32>
    %70 = vector.multi_reduction <maximumf>, %69, %cst_27 [2] : vector<1x128x128xf32> to vector<1x128xf32>
    %71 = vector.shape_cast %70 : vector<1x128xf32> to vector<1x128x1xf32>
    %72 = vector.broadcast %71 : vector<1x128x1xf32> to vector<1x128x128xf32>
    %73 = arith.subf %69, %72 : vector<1x128x128xf32>
    %74 = math.exp %73 : vector<1x128x128xf32>
    %cst_28 = arith.constant dense<0.000000e+00> : vector<1x128xf32>
    %75 = vector.multi_reduction <add>, %74, %cst_28 [2] : vector<1x128x128xf32> to vector<1x128xf32>
    %76 = vector.shape_cast %75 : vector<1x128xf32> to vector<1x128x1xf32>
    %77 = tpu.reciprocal %76 {approx = true} : vector<1x128x1xf32> -> vector<1x128x1xf32>
    %78 = arith.mulf %76, %77 : vector<1x128x1xf32>
    %cst_29 = arith.constant 2.000000e+00 : f32
    %79 = vector.broadcast %cst_29 : f32 to vector<1x128x1xf32>
    %80 = arith.subf %79, %78 : vector<1x128x1xf32>
    %81 = arith.mulf %77, %80 : vector<1x128x1xf32>
    %82 = vector.broadcast %81 : vector<1x128x1xf32> to vector<1x128x128xf32>
    %83 = arith.mulf %74, %82 : vector<1x128x128xf32>
    "tpu.trace_start"() <{level = 10 : i32, message = "bqk,bkd->bqd"}> : () -> ()
    %cst_30 = arith.constant dense<0.000000e+00> : vector<1x128x32xf32>
    %84 = tpu.matmul %83, %68, %cst_30 {dimension_numbers = #tpu.dot_dimension_numbers<[2], [1], [1], [2], [0, 0, 0, 1, 1, 2], [0], [0]>} : vector<1x128x128xf32>, vector<1x128x32xf32>, vector<1x128x32xf32> -> vector<1x128x32xf32>
    "tpu.trace_stop"() : () -> ()
    %85 = vector.shape_cast %84 : vector<1x128x32xf32> to vector<128x32xf32>
    %c2 = arith.constant 2 : index
    %c0_31 = arith.constant 0 : index
    %c0_32 = arith.constant 0 : index
    %86 = vector.load %arg5[%c2, %c0_31, %c0_32] : memref<4x32x128xf32, #tpu.memory_space<vmem>>, vector<1x32x128xf32>
    %87 = vector.shape_cast %86 : vector<1x32x128xf32> to vector<32x128xf32>
    %cst_33 = arith.constant dense<0.000000e+00> : vector<128x128xf32>
    %88 = tpu.matmul %85, %87, %cst_33 {dimension_numbers = #tpu.dot_dimension_numbers<[1], [0], [0], [1], [0, 0, 1, 1], [], []>} : vector<128x32xf32>, vector<32x128xf32>, vector<128x128xf32> -> vector<128x128xf32>
    %89 = arith.addf %65, %88 : vector<128x128xf32>
    %90 = vector.extract_strided_slice %12 {offsets = [0, 0, 96], sizes = [1, 128, 32], strides = [1, 1, 1]} : vector<1x128x128xf32> to vector<1x128x32xf32>
    %91 = vector.extract_strided_slice %14 {offsets = [0, 0, 96], sizes = [1, 128, 32], strides = [1, 1, 1]} : vector<1x128x128xf32> to vector<1x128x32xf32>
    %92 = vector.extract_strided_slice %16 {offsets = [0, 0, 96], sizes = [1, 128, 32], strides = [1, 1, 1]} : vector<1x128x128xf32> to vector<1x128x32xf32>
    "tpu.trace_start"() <{level = 10 : i32, message = "bqd,bkd->bqk"}> : () -> ()
    %cst_34 = arith.constant dense<0.000000e+00> : vector<1x128x128xf32>
    %93 = tpu.matmul %90, %91, %cst_34 {dimension_numbers = #tpu.dot_dimension_numbers<[2], [2], [1], [1], [0, 0, 0, 1, 1, 1], [0], [0]>} : vector<1x128x32xf32>, vector<1x128x32xf32>, vector<1x128x128xf32> -> vector<1x128x128xf32>
    "tpu.trace_stop"() : () -> ()
    %cst_35 = arith.constant dense<0xFF800000> : vector<1x128xf32>
    %94 = vector.multi_reduction <maximumf>, %93, %cst_35 [2] : vector<1x128x128xf32> to vector<1x128xf32>
    %95 = vector.shape_cast %94 : vector<1x128xf32> to vector<1x128x1xf32>
    %96 = vector.broadcast %95 : vector<1x128x1xf32> to vector<1x128x128xf32>
    %97 = arith.subf %93, %96 : vector<1x128x128xf32>
    %98 = math.exp %97 : vector<1x128x128xf32>
    %cst_36 = arith.constant dense<0.000000e+00> : vector<1x128xf32>
    %99 = vector.multi_reduction <add>, %98, %cst_36 [2] : vector<1x128x128xf32> to vector<1x128xf32>
    %100 = vector.shape_cast %99 : vector<1x128xf32> to vector<1x128x1xf32>
    %101 = tpu.reciprocal %100 {approx = true} : vector<1x128x1xf32> -> vector<1x128x1xf32>
    %102 = arith.mulf %100, %101 : vector<1x128x1xf32>
    %cst_37 = arith.constant 2.000000e+00 : f32
    %103 = vector.broadcast %cst_37 : f32 to vector<1x128x1xf32>
    %104 = arith.subf %103, %102 : vector<1x128x1xf32>
    %105 = arith.mulf %101, %104 : vector<1x128x1xf32>
    %106 = vector.broadcast %105 : vector<1x128x1xf32> to vector<1x128x128xf32>
    %107 = arith.mulf %98, %106 : vector<1x128x128xf32>
    "tpu.trace_start"() <{level = 10 : i32, message = "bqk,bkd->bqd"}> : () -> ()
    %cst_38 = arith.constant dense<0.000000e+00> : vector<1x128x32xf32>
    %108 = tpu.matmul %107, %92, %cst_38 {dimension_numbers = #tpu.dot_dimension_numbers<[2], [1], [1], [2], [0, 0, 0, 1, 1, 2], [0], [0]>} : vector<1x128x128xf32>, vector<1x128x32xf32>, vector<1x128x32xf32> -> vector<1x128x32xf32>
    "tpu.trace_stop"() : () -> ()
    %109 = vector.shape_cast %108 : vector<1x128x32xf32> to vector<128x32xf32>
    %c3 = arith.constant 3 : index
    %c0_39 = arith.constant 0 : index
    %c0_40 = arith.constant 0 : index
    %110 = vector.load %arg5[%c3, %c0_39, %c0_40] : memref<4x32x128xf32, #tpu.memory_space<vmem>>, vector<1x32x128xf32>
    %111 = vector.shape_cast %110 : vector<1x32x128xf32> to vector<32x128xf32>
    %cst_41 = arith.constant dense<0.000000e+00> : vector<128x128xf32>
    %112 = tpu.matmul %109, %111, %cst_41 {dimension_numbers = #tpu.dot_dimension_numbers<[1], [0], [0], [1], [0, 0, 1, 1], [], []>} : vector<128x32xf32>, vector<32x128xf32>, vector<128x128xf32> -> vector<128x128xf32>
    %113 = arith.addf %89, %112 : vector<128x128xf32>
    %c0_42 = arith.constant 0 : index
    %c0_43 = arith.constant 0 : index
    %114 = vector.load %arg6[%c0_42, %c0_43] : memref<1x128xf32, #tpu.memory_space<vmem>>, vector<1x128xf32>
    %115 = vector.broadcast %114 : vector<1x128xf32> to vector<128x128xf32>
    %116 = arith.addf %113, %115 : vector<128x128xf32>
    %117 = vector.shape_cast %116 : vector<128x128xf32> to vector<1x128x128xf32>
    %118 = arith.addf %1, %117 : vector<1x128x128xf32>
    %119 = tpu.transpose %118, [0, 2, 1] : vector<1x128x128xf32> -> vector<1x128x128xf32>
    %c0_44 = arith.constant 0 : index
    %c0_45 = arith.constant 0 : index
    %c0_46 = arith.constant 0 : index
    %120 = vector.load %arg7[%c0_44, %c0_45, %c0_46] : memref<1x128x128xf32, #tpu.memory_space<vmem>>, vector<1x128x128xf32>
    tpu.vector_store %arg7[%c0_44, %c0_45, %c0_46], %119 {strides = array<i32>} : memref<1x128x128xf32, #tpu.memory_space<vmem>>, vector<1x128x128xf32>,
    return
  }
  func.func @transform_0(%arg0: i32) -> (i32, i32, i32) {
    %c0_i32 = arith.constant 0 : i32
    %c0_i32_0 = arith.constant 0 : i32
    %c0_i32_1 = arith.constant 0 : i32
    return %arg0, %c0_i32, %c0_i32_0 : i32, i32, i32
  }
  func.func @transform_1(%arg0: i32) -> (i32, i32) {
    %c0_i32 = arith.constant 0 : i32
    %c0_i32_0 = arith.constant 0 : i32
    %c0_i32_1 = arith.constant 0 : i32
    return %c0_i32, %c0_i32_0 : i32, i32
  }
  func.func @transform_2(%arg0: i32) -> (i32, i32) {
    %c0_i32 = arith.constant 0 : i32
    %c0_i32_0 = arith.constant 0 : i32
    %c0_i32_1 = arith.constant 0 : i32
    return %c0_i32, %c0_i32_0 : i32, i32
  }
  func.func @transform_3(%arg0: i32) -> (i32, i32) {
    %c0_i32 = arith.constant 0 : i32
    %c0_i32_0 = arith.constant 0 : i32
    %c0_i32_1 = arith.constant 0 : i32
    return %c0_i32, %c0_i32_0 : i32, i32
  }
  func.func @transform_4(%arg0: i32) -> (i32, i32, i32) {
    %c0_i32 = arith.constant 0 : i32
    %c0_i32_0 = arith.constant 0 : i32
    %c0_i32_1 = arith.constant 0 : i32
    %c0_i32_2 = arith.constant 0 : i32
    return %c0_i32, %c0_i32_0, %c0_i32_1 : i32, i32, i32
  }
  func.func @transform_5(%arg0: i32) -> (i32, i32) {
    %c0_i32 = arith.constant 0 : i32
    %c0_i32_0 = arith.constant 0 : i32
    %c0_i32_1 = arith.constant 0 : i32
    return %c0_i32, %c0_i32_0 : i32, i32
  }
  func.func @transform_6(%arg0: i32) -> (i32, i32, i32) {
    %c0_i32 = arith.constant 0 : i32
    %c0_i32_0 = arith.constant 0 : i32
    %c0_i32_1 = arith.constant 0 : i32
    return %arg0, %c0_i32, %c0_i32_0 : i32, i32, i32
  }
}

</mosaic_0001>

<llo_original>
// kernel: tpu_custom_call.1
$region0: #{tpu_custom_call.1}
  #allocation0 [shape = 'u32[]', space=smem, size = 0x4, offset = 0x4, fixed_abs, tag = 'smem constant byte address 0x4 - core index']
  #allocation1 [shape = 'u32[144,128]{1,0:T(1,128)}', space=vmem, size = 0x12000, scoped, tag = 'internal scratch']
  %s0 = inlined_call_operand.hbm [shape: f32[2,128,128], index: 0, kind: input, shape index: {}]
  %s1 = inlined_call_operand.hbm [shape: f32[128,128], index: 1, kind: input, shape index: {}]
  %s2 = inlined_call_operand.hbm [shape: f32[128,384], index: 2, kind: input, shape index: {}]
  %s3 = inlined_call_operand.vmem [shape: f32[1,384], index: 3, kind: input, shape index: {}]
  %s4 = inlined_call_operand.hbm [shape: f32[4,32,128], index: 4, kind: input, shape index: {}]
  %s5 = inlined_call_operand.vmem [shape: f32[1,128], index: 5, kind: input, shape index: {}]
  %s6 = inlined_call_operand.hbm [shape: f32[2,128,128], index: 6, kind: output, shape index: {}]
  %s7 = sld [smem:[#allocation0]]
  $region73: #{tpu_custom_call.1} parent=0
    _
  %s9 = ssub.s32 1, %s7
  %s10 = scalar_select 0, %s9, %s7
  $region1: #{tpu_custom_call.1} parent=0
    #allocation2 [shape = 'u8[131072]{0}', space=vmem, size = 0x20000, scoped, tag = 'input window, operand 0']
    #allocation3 [shape = 's32[2]{0}', space=sflag, size = 0x8, scoped, tag = 'scoped memory for tpu_custom_call.1']
    #allocation4 [shape = 's32[2]{0}', space=sflag, size = 0x8, scoped, tag = 'scoped memory for tpu_custom_call.1']
    #allocation5 [shape = 'u8[65536]{0}', space=vmem, size = 0x10000, scoped, tag = 'input window, operand 1, single buffered']
    #allocation6 [shape = 's32[1]{0}', space=sflag, size = 0x4, scoped, tag = 'scoped memory for tpu_custom_call.1']
    #allocation7 [shape = 'u8[196608]{0}', space=vmem, size = 0x30000, scoped, tag = 'input window, operand 2, single buffered']
    #allocation8 [shape = 'u8[65536]{0}', space=vmem, size = 0x10000, scoped, tag = 'input window, operand 4, single buffered']
    #allocation9 [shape = 's32[1]{0}', space=sflag, size = 0x4, scoped, tag = 'scoped memory for tpu_custom_call.1']
    #allocation10 [shape = 'u8[131072]{0}', space=vmem, size = 0x20000, scoped, tag = 'output window, operand 0']
    %11 = vsyncpa [#allocation3], 0
    %s12 = scalar_lea.sflag [#allocation3], 1
    %13 = vsyncpa %s12, 0
    %14 = vsyncpa [#allocation6], 0
    %15 = vsyncpa [#allocation9], 0
    %16 = vsyncpa [#allocation4], 0
    %s17 = scalar_lea.sflag [#allocation4], 1
    %18 = vsyncpa %s17, 0
    loop: start=0, step=1, limit=4
    $region2: #{tpu_custom_call.1} parent=1 // loop_pre_header
      _
    $region3: #{tpu_custom_call.1} parent=1 // loop_header
      %s20 = sphi 0, %s24
      %p21 = scmp.ge.s32.totalorder %s20, 4
      %s30 = sphi 0, %s32
      %s33 = sphi 0, %s30
      %s34 = sphi 0, %s33
      %s50 = sphi 0, %s34
      %s54 = sphi 0, %s54
      %s56 = sphi 0, %s54
      %s57 = sphi 0, %s56
      %s71 = sphi 0, %s57
      %s75 = sphi 0, %s75
      %s77 = sphi 0, %s75
      %s78 = sphi 0, %s77
      %s92 = sphi 0, %s78
      %s96 = sphi 0, %s96
      %s98 = sphi 0, %s96
      %s99 = sphi 0, %s98
      %s113 = sphi 0, %s99
      %s117 = sphi 0, %s117
      %s119 = sphi 0, %s117
      %s120 = sphi 0, %s119
      %s134 = sphi 0, %s120
      %s138 = sphi 0, %s138
      %s140 = sphi 0, %s138
      %s141 = sphi 0, %s140
      %s155 = sphi 0, %s141
      %s161 = sphi 0, %s163
      %s164 = sphi 0, %s161
      %s165 = sphi 0, %s164
      %s181 = sphi 0, %s165
    $region4: #{tpu_custom_call.1} parent=1 // loop_header_branch
      %23 = sbr.rel (%p21) target = $region8
    $region5: #{tpu_custom_call.1} parent=1 // loop_body
      %s25 = ssub.s32 %s20, 1
      %s26 = ssub.s32 %s20, 2
      %s27 = sadd.s32 %s20, 1
      %s28 = ssub.s32 %s20, %s27
      %p29 = scmp.eq.s32.totalorder %s28, 0
      %s31 = sadd.s32 %s30, 1
      %s32 = scalar_select %p29, %s30, %s31
      %p35 = pneg %p29
      %p36 = scmp.eq.s32.totalorder %s20, 1
      %p37 = por %p35, %p36
      %p38 = scmp.ne.s32.totalorder %s30, %s33
      %p39 = scmp.eq.s32.totalorder %s20, 0
      %p40 = por %p38, %p39
      %p41 = scmp.ne.s32.totalorder %s30, %s33
      %p42 = scmp.eq.s32.totalorder %s25, 1
      %p43 = por %p41, %p42
      %p44 = scmp.ne.s32.totalorder %s33, %s34
      %p45 = scmp.eq.s32.totalorder %s25, 0
      %p46 = por %p44, %p45
      %p47 = scmp.ne.s32.totalorder %s33, %s34
      %p48 = scmp.eq.s32.totalorder %s26, 1
      %p49 = por %p47, %p48
      %p51 = scmp.ne.s32.totalorder %s34, %s50
      %p52 = scmp.eq.s32.totalorder %s26, 0
      %p53 = por %p51, %p52
      %s55 = sadd.s32 %s54, 1
      %p58 = scmp.eq.s32.totalorder %s20, 1
      %p59 = scmp.ne.s32.totalorder %s54, %s56
      %p60 = scmp.eq.s32.totalorder %s20, 0
      %p61 = por %p59, %p60
      %p62 = scmp.ne.s32.totalorder %s54, %s56
      %p63 = scmp.eq.s32.totalorder %s25, 1
      %p64 = por %p62, %p63
      %p65 = scmp.ne.s32.totalorder %s56, %s57
      %p66 = scmp.eq.s32.totalorder %s25, 0
      %p67 = por %p65, %p66
      %p68 = scmp.ne.s32.totalorder %s56, %s57
      %p69 = scmp.eq.s32.totalorder %s26, 1
      %p70 = por %p68, %p69
      %p72 = scmp.ne.s32.totalorder %s57, %s71
      %p73 = scmp.eq.s32.totalorder %s26, 0
      %p74 = por %p72, %p73
      %s76 = sadd.s32 %s75, 1
      %p79 = scmp.eq.s32.totalorder %s20, 1
      %p80 = scmp.ne.s32.totalorder %s75, %s77
      %p81 = scmp.eq.s32.totalorder %s20, 0
      %p82 = por %p80, %p81
      %p83 = scmp.ne.s32.totalorder %s75, %s77
      %p84 = scmp.eq.s32.totalorder %s25, 1
      %p85 = por %p83, %p84
      %p86 = scmp.ne.s32.totalorder %s77, %s78
      %p87 = scmp.eq.s32.totalorder %s25, 0
      %p88 = por %p86, %p87
      %p89 = scmp.ne.s32.totalorder %s77, %s78
      %p90 = scmp.eq.s32.totalorder %s26, 1
      %p91 = por %p89, %p90
      %p93 = scmp.ne.s32.totalorder %s78, %s92
      %p94 = scmp.eq.s32.totalorder %s26, 0
      %p95 = por %p93, %p94
      %s97 = sadd.s32 %s96, 1
      %p100 = scmp.eq.s32.totalorder %s20, 1
      %p101 = scmp.ne.s32.totalorder %s96, %s98
      %p102 = scmp.eq.s32.totalorder %s20, 0
      %p103 = por %p101, %p102
      %p104 = scmp.ne.s32.totalorder %s96, %s98
      %p105 = scmp.eq.s32.totalorder %s25, 1
      %p106 = por %p104, %p105
      %p107 = scmp.ne.s32.totalorder %s98, %s99
      %p108 = scmp.eq.s32.totalorder %s25, 0
      %p109 = por %p107, %p108
      %p110 = scmp.ne.s32.totalorder %s98, %s99
      %p111 = scmp.eq.s32.totalorder %s26, 1
      %p112 = por %p110, %p111
      %p114 = scmp.ne.s32.totalorder %s99, %s113
      %p115 = scmp.eq.s32.totalorder %s26, 0
      %p116 = por %p114, %p115
      %s118 = sadd.s32 %s117, 1
      %p121 = scmp.eq.s32.totalorder %s20, 1
      %p122 = scmp.ne.s32.totalorder %s117, %s119
      %p123 = scmp.eq.s32.totalorder %s20, 0
      %p124 = por %p122, %p123
      %p125 = scmp.ne.s32.totalorder %s117, %s119
      %p126 = scmp.eq.s32.totalorder %s25, 1
      %p127 = por %p125, %p126
      %p128 = scmp.ne.s32.totalorder %s119, %s120
      %p129 = scmp.eq.s32.totalorder %s25, 0
      %p130 = por %p128, %p129
      %p131 = scmp.ne.s32.totalorder %s119, %s120
      %p132 = scmp.eq.s32.totalorder %s26, 1
      %p133 = por %p131, %p132
      %p135 = scmp.ne.s32.totalorder %s120, %s134
      %p136 = scmp.eq.s32.totalorder %s26, 0
      %p137 = por %p135, %p136
      %s139 = sadd.s32 %s138, 1
      %p142 = scmp.eq.s32.totalorder %s20, 1
      %p143 = scmp.ne.s32.totalorder %s138, %s140
      %p144 = scmp.eq.s32.totalorder %s20, 0
      %p145 = por %p143, %p144
      %p146 = scmp.ne.s32.totalorder %s138, %s140
      %p147 = scmp.eq.s32.totalorder %s25, 1
      %p148 = por %p146, %p147
      %p149 = scmp.ne.s32.totalorder %s140, %s141
      %p150 = scmp.eq.s32.totalorder %s25, 0
      %p151 = por %p149, %p150
      %p152 = scmp.ne.s32.totalorder %s140, %s141
      %p153 = scmp.eq.s32.totalorder %s26, 1
      %p154 = por %p152, %p153
      %p156 = scmp.ne.s32.totalorder %s141, %s155
      %p157 = scmp.eq.s32.totalorder %s26, 0
      %p158 = por %p156, %p157
      %s159 = ssub.s32 %s20, %s27
      %p160 = scmp.eq.s32.totalorder %s159, 0
      %s162 = sadd.s32 %s161, 1
      %s163 = scalar_select %p160, %s161, %s162
      %p166 = pneg %p160
      %p167 = scmp.eq.s32.totalorder %s20, 1
      %p168 = por %p166, %p167
      %p169 = scmp.ne.s32.totalorder %s161, %s164
      %p170 = scmp.eq.s32.totalorder %s20, 0
      %p171 = por %p169, %p170
      %p172 = scmp.ne.s32.totalorder %s161, %s164
      %p173 = scmp.eq.s32.totalorder %s25, 1
      %p174 = por %p172, %p173
      %p175 = scmp.ne.s32.totalorder %s164, %s165
      %p176 = scmp.eq.s32.totalorder %s25, 0
      %p177 = por %p175, %p176
      %p178 = scmp.ne.s32.totalorder %s164, %s165
      %p179 = scmp.eq.s32.totalorder %s26, 1
      %p180 = por %p178, %p179
      %p182 = scmp.ne.s32.totalorder %s165, %s181
      %p183 = scmp.eq.s32.totalorder %s26, 0
      %p184 = por %p182, %p183
      %p185 = scmp.le.s32.totalorder 1, %s20
      %p186 = scmp.lt.s32.totalorder %s20, 3
      %p187 = pnand %p185, %p186
      %p188 = pneg %p187
      // Predicated region
      $region9: #{tpu_custom_call.1} parent=5 // pred_check
        _
      $region10: #{tpu_custom_call.1} parent=5 // pred_check_branch
        %190 = sbr.rel (%p187) target = $region12
      $region11: #{tpu_custom_call.1} parent=5 // pred_region
        %s191 = ssub.s32 %s20, 1
        // Predicated region
        $region13: #{tpu_custom_call.1} parent=11 // pred_check
          %p192 = pneg %p67
        $region14: #{tpu_custom_call.1} parent=11 // pred_check_branch
          %194 = sbr.rel (%p192) target = $region16
        $region15: #{tpu_custom_call.1} parent=11 // pred_region
          %s196 = ssub.s32 2048, 2048
          %197 = vsyncadd [#allocation6], %s196
          %s198 = sshll.u32 [#allocation5], 4
          %s199 = int_to_ptr.vmem [resolvable:$true] %s198
          %204 = dma.hbm_to_vmem [thread:$0]  %s1, 2048, %s199, [#allocation6], 128, 128, 8
        $region16: #{tpu_custom_call.1} parent=11 // pred_fallthru
          _
        // Predicated region
        $region17: #{tpu_custom_call.1} parent=11 // pred_check
          %p205 = pneg %p88
        $region18: #{tpu_custom_call.1} parent=11 // pred_check_branch
          %207 = sbr.rel (%p205) target = $region20
        $region19: #{tpu_custom_call.1} parent=11 // pred_region
          %s209 = ssub.s32 6144, 6144
          %210 = vsyncadd [#allocation6], %s209
          %s211 = sshll.u32 [#allocation7], 4
          %s212 = int_to_ptr.vmem [resolvable:$true] %s211
          %217 = dma.hbm_to_vmem [thread:$0]  %s2, 6144, %s212, [#allocation6], 384, 384, 24
        $region20: #{tpu_custom_call.1} parent=11 // pred_fallthru
          _
        // Predicated region
        $region21: #{tpu_custom_call.1} parent=11 // pred_check
          %p218 = pneg %p109
        $region22: #{tpu_custom_call.1} parent=11 // pred_check_branch
          %220 = sbr.rel (%p218) target = $region24
        $region23: #{tpu_custom_call.1} parent=11 // pred_region
          _
        $region24: #{tpu_custom_call.1} parent=11 // pred_fallthru
          _
        // Predicated region
        $region25: #{tpu_custom_call.1} parent=11 // pred_check
          %p221 = pneg %p130
        $region26: #{tpu_custom_call.1} parent=11 // pred_check_branch
          %223 = sbr.rel (%p221) target = $region28
        $region27: #{tpu_custom_call.1} parent=11 // pred_region
          %s225 = ssub.s32 2048, 2048
          %226 = vsyncadd [#allocation9], %s225
          %s227 = sshll.u32 [#allocation8], 4
          %s228 = int_to_ptr.vmem [resolvable:$true] %s227
          %233 = dma.hbm_to_vmem [thread:$0]  %s4, 2048, %s228, [#allocation9], 128, 128, 8
        $region28: #{tpu_custom_call.1} parent=11 // pred_fallthru
          _
        // Predicated region
        $region29: #{tpu_custom_call.1} parent=11 // pred_check
          %p234 = pneg %p151
        $region30: #{tpu_custom_call.1} parent=11 // pred_check_branch
          %236 = sbr.rel (%p234) target = $region32
        $region31: #{tpu_custom_call.1} parent=11 // pred_region
          _
        $region32: #{tpu_custom_call.1} parent=11 // pred_fallthru
          _
      $region12: #{tpu_custom_call.1} parent=5 // pred_fallthru
        _
      %p237 = scmp.lt.s32.totalorder %s20, 2
      // Predicated region
      $region33: #{tpu_custom_call.1} parent=5 // pred_check
        %p238 = pneg %p237
      $region34: #{tpu_custom_call.1} parent=5 // pred_check_branch
        %240 = sbr.rel (%p238) target = $region36
      $region35: #{tpu_custom_call.1} parent=5 // pred_region
        // Predicated region
        $region37: #{tpu_custom_call.1} parent=35 // pred_check
          %p241 = pneg %p40
        $region38: #{tpu_custom_call.1} parent=35 // pred_check_branch
          %243 = sbr.rel (%p241) target = $region40
        $region39: #{tpu_custom_call.1} parent=35 // pred_region
          %s244 = sand.u32 %s30, 1
          %s245 = scalar_lea.sflag [#allocation3], %s244
          %s246 = sand.u32 %s30, 1
          %s247 = smul.addr %s246, 128
          %s248 = scalar_lea.vmem [#allocation2], %s247
          %s250 = ssub.s32 2048, 2048
          %251 = vsyncadd %s245, %s250
          %s252 = smul.addr %s20, 16
          %s253 = smul.addr %s252, 128
          %s254 = scalar_lea.hbm %s0, %s253
          %s255 = sshll.u32 %s248, 4
          %s256 = int_to_ptr.vmem [resolvable:$true] %s255
          %261 = dma.hbm_to_vmem [thread:$0]  %s254, 2048, %s256, %s245, 128, 128, 8
        $region40: #{tpu_custom_call.1} parent=35 // pred_fallthru
          _
      $region36: #{tpu_custom_call.1} parent=5 // pred_fallthru
        _
      %p262 = scmp.le.s32.totalorder 1, %s20
      %p263 = scmp.lt.s32.totalorder %s20, 3
      %p264 = pnand %p262, %p263
      %p265 = pneg %p264
      // Predicated region
      $region41: #{tpu_custom_call.1} parent=5 // pred_check
        _
      $region42: #{tpu_custom_call.1} parent=5 // pred_check_branch
        %267 = sbr.rel (%p264) target = $region44
      $region43: #{tpu_custom_call.1} parent=5 // pred_region
        %s268 = ssub.s32 %s20, 1
        %s269 = sand.u32 %s33, 1
        %s270 = scalar_lea.sflag [#allocation3], %s269
        %s271 = sand.u32 %s33, 1
        %s272 = smul.addr %s271, 128
        %s273 = scalar_lea.vmem [#allocation2], %s272
        // Predicated region
        $region45: #{tpu_custom_call.1} parent=43 // pred_check
          %p274 = pneg %p46
        $region46: #{tpu_custom_call.1} parent=43 // pred_check_branch
          %276 = sbr.rel (%p274) target = $region48
        $region47: #{tpu_custom_call.1} parent=43 // pred_region
          %277 = dma.done %s270, 2048
        $region48: #{tpu_custom_call.1} parent=43 // pred_fallthru
          _
        // Predicated region
        $region49: #{tpu_custom_call.1} parent=43 // pred_check
          %p278 = pneg %p67
        $region50: #{tpu_custom_call.1} parent=43 // pred_check_branch
          %280 = sbr.rel (%p278) target = $region52
        $region51: #{tpu_custom_call.1} parent=43 // pred_region
          %281 = dma.done [#allocation6], 2048
        $region52: #{tpu_custom_call.1} parent=43 // pred_fallthru
          _
        // Predicated region
        $region53: #{tpu_custom_call.1} parent=43 // pred_check
          %p282 = pneg %p88
        $region54: #{tpu_custom_call.1} parent=43 // pred_check_branch
          %284 = sbr.rel (%p282) target = $region56
        $region55: #{tpu_custom_call.1} parent=43 // pred_region
          %285 = dma.done [#allocation6], 6144
        $region56: #{tpu_custom_call.1} parent=43 // pred_fallthru
          _
        // Predicated region
        $region57: #{tpu_custom_call.1} parent=43 // pred_check
          %p286 = pneg %p130
        $region58: #{tpu_custom_call.1} parent=43 // pred_check_branch
          %288 = sbr.rel (%p286) target = $region60
        $region59: #{tpu_custom_call.1} parent=43 // pred_region
          %289 = dma.done [#allocation9], 2048
        $region60: #{tpu_custom_call.1} parent=43 // pred_fallthru
          _
        %s290 = sand.u32 %s33, 1
        %s291 = scalar_lea.sflag [#allocation3], %s290
        %s292 = sand.u32 %s33, 1
        %s293 = smul.addr %s292, 128
        %s294 = scalar_lea.vmem [#allocation2], %s293
        %p295 = pneg %p46
        %p296 = pneg %p43
        %p297 = pneg %p67
        %p298 = pneg %p64
        %p299 = pneg %p88
        %p300 = pneg %p85
        %p301 = pneg %p109
        %p302 = pneg %p106
        %p303 = pneg %p130
        %p304 = pneg %p127
        %p305 = pneg %p151
        %p306 = pneg %p148
        %p307 = pneg %p177
        %p308 = pneg %p174
        %s309 = sand.u32 %s164, 1
        %s310 = scalar_lea.sflag [#allocation4], %s309
        %s311 = sand.u32 %s164, 1
        %s312 = smul.addr %s311, 128
        %s313 = scalar_lea.vmem [#allocation10], %s312
        %v314 = vld [vmem:[%s273] sm:$0xff]
        %v315 = vld [vmem:[%s273 + $0x8] sm:$0xff]
        %v316 = vld [vmem:[%s273 + $0x10] sm:$0xff]
        %v317 = vld [vmem:[%s273 + $0x18] sm:$0xff]
        %v318 = vld [vmem:[%s273 + $0x20] sm:$0xff]
        %v319 = vld [vmem:[%s273 + $0x28] sm:$0xff]
        %v320 = vld [vmem:[%s273 + $0x30] sm:$0xff]
        %v321 = vld [vmem:[%s273 + $0x38] sm:$0xff]
        %v322 = vld [vmem:[%s273 + $0x40] sm:$0xff]
        %v323 = vld [vmem:[%s273 + $0x48] sm:$0xff]
        %v324 = vld [vmem:[%s273 + $0x50] sm:$0xff]
        %v325 = vld [vmem:[%s273 + $0x58] sm:$0xff]
        %v326 = vld [vmem:[%s273 + $0x60] sm:$0xff]
        %v327 = vld [vmem:[%s273 + $0x68] sm:$0xff]
        %v328 = vld [vmem:[%s273 + $0x70] sm:$0xff]
        %v329 = vld [vmem:[%s273 + $0x78] sm:$0xff]
        %330 = vxpose.xlu0.b32.start [1/16] %v314, 128
        %331 = vxpose.xlu0.b32.cont [2/16] %v315, 128
        %332 = vxpose.xlu0.b32.cont [3/16] %v316, 128
        %333 = vxpose.xlu0.b32.cont [4/16] %v317, 128
        %334 = vxpose.xlu0.b32.cont [5/16] %v318, 128
        %335 = vxpose.xlu0.b32.cont [6/16] %v319, 128
        %336 = vxpose.xlu0.b32.cont [7/16] %v320, 128
        %337 = vxpose.xlu0.b32.cont [8/16] %v321, 128
        %338 = vxpose.xlu0.b32.cont [9/16] %v322, 128
        %339 = vxpose.xlu0.b32.cont [10/16] %v323, 128
        %340 = vxpose.xlu0.b32.cont [11/16] %v324, 128
        %341 = vxpose.xlu0.b32.cont [12/16] %v325, 128
        %342 = vxpose.xlu0.b32.cont [13/16] %v326, 128
        %343 = vxpose.xlu0.b32.cont [14/16] %v327, 128
        %344 = vxpose.xlu0.b32.cont [15/16] %v328, 128
        %345 = vxpose.xlu0.b32.end [16/16] %v329, 128
        %v346 = vpop.trf.xlu0
        %v347 = vpop.trf.xlu0
        %v348 = vpop.trf.xlu0
        %v349 = vpop.trf.xlu0
        %v350 = vpop.trf.xlu0
        %v351 = vpop.trf.xlu0
        %v352 = vpop.trf.xlu0
        %v353 = vpop.trf.xlu0
        %v354 = vpop.trf.xlu0
        %v355 = vpop.trf.xlu0
        %v356 = vpop.trf.xlu0
        %v357 = vpop.trf.xlu0
        %v358 = vpop.trf.xlu0
        %v359 = vpop.trf.xlu0
        %v360 = vpop.trf.xlu0
        %v361 = vpop.trf.xlu0
        %v362 = vld [vmem:[#allocation5] sm:$0xff]
        %v363 = vld [vmem:[#allocation5 + $0x8] sm:$0xff]
        %v364 = vld [vmem:[#allocation5 + $0x10] sm:$0xff]
        %v365 = vld [vmem:[#allocation5 + $0x18] sm:$0xff]
        %v366 = vld [vmem:[#allocation5 + $0x20] sm:$0xff]
        %v367 = vld [vmem:[#allocation5 + $0x28] sm:$0xff]
        %v368 = vld [vmem:[#allocation5 + $0x30] sm:$0xff]
        %v369 = vld [vmem:[#allocation5 + $0x38] sm:$0xff]
        %v370 = vld [vmem:[#allocation5 + $0x40] sm:$0xff]
        %v371 = vld [vmem:[#allocation5 + $0x48] sm:$0xff]
        %v372 = vld [vmem:[#allocation5 + $0x50] sm:$0xff]
        %v373 = vld [vmem:[#allocation5 + $0x58] sm:$0xff]
        %v374 = vld [vmem:[#allocation5 + $0x60] sm:$0xff]
        %v375 = vld [vmem:[#allocation5 + $0x68] sm:$0xff]
        %v376 = vld [vmem:[#allocation5 + $0x70] sm:$0xff]
        %v377 = vld [vmem:[#allocation5 + $0x78] sm:$0xff]
        %v378 = vadd.f32 %v346, %v362
        %v379 = vadd.f32 %v347, %v363
        %v380 = vadd.f32 %v348, %v364
        %v381 = vadd.f32 %v349, %v365
        %v382 = vadd.f32 %v350, %v366
        %v383 = vadd.f32 %v351, %v367
        %v384 = vadd.f32 %v352, %v368
        %v385 = vadd.f32 %v353, %v369
        %v386 = vadd.f32 %v354, %v370
        %v387 = vadd.f32 %v355, %v371
        %v388 = vadd.f32 %v356, %v372
        %v389 = vadd.f32 %v357, %v373
        %v390 = vadd.f32 %v358, %v374
        %v391 = vadd.f32 %v359, %v375
        %v392 = vadd.f32 %v360, %v376
        %v393 = vadd.f32 %v361, %v377
        %v394 = vld [vmem:[#allocation7] sm:$0xff]
        %v395 = vld [vmem:[#allocation7 + $0x8] sm:$0xff]
        %v396 = vld [vmem:[#allocation7 + $0x10] sm:$0xff]
        %v397 = vld [vmem:[#allocation7 + $0x18] sm:$0xff]
        %v398 = vld [vmem:[#allocation7 + $0x20] sm:$0xff]
        %v399 = vld [vmem:[#allocation7 + $0x28] sm:$0xff]
        %v400 = vld [vmem:[#allocation7 + $0x30] sm:$0xff]
        %v401 = vld [vmem:[#allocation7 + $0x38] sm:$0xff]
        %v402 = vld [vmem:[#allocation7 + $0x40] sm:$0xff]
        %v403 = vld [vmem:[#allocation7 + $0x48] sm:$0xff]
        %v404 = vld [vmem:[#allocation7 + $0x50] sm:$0xff]
        %v405 = vld [vmem:[#allocation7 + $0x58] sm:$0xff]
        %v406 = vld [vmem:[#allocation7 + $0x60] sm:$0xff]
        %v407 = vld [vmem:[#allocation7 + $0x68] sm:$0xff]
        %v408 = vld [vmem:[#allocation7 + $0x70] sm:$0xff]
        %v409 = vld [vmem:[#allocation7 + $0x78] sm:$0xff]
        %v410 = vld [vmem:[#allocation7 + $0x80] sm:$0xff]
        %v411 = vld [vmem:[#allocation7 + $0x88] sm:$0xff]
        %v412 = vld [vmem:[#allocation7 + $0x90] sm:$0xff]
        %v413 = vld [vmem:[#allocation7 + $0x98] sm:$0xff]
        %v414 = vld [vmem:[#allocation7 + $0xa0] sm:$0xff]
        %v415 = vld [vmem:[#allocation7 + $0xa8] sm:$0xff]
        %v416 = vld [vmem:[#allocation7 + $0xb0] sm:$0xff]
        %v417 = vld [vmem:[#allocation7 + $0xb8] sm:$0xff]
        %v418 = vld [vmem:[#allocation7 + $0xc0] sm:$0xff]
        %v419 = vld [vmem:[#allocation7 + $0xc8] sm:$0xff]
        %v420 = vld [vmem:[#allocation7 + $0xd0] sm:$0xff]
        %v421 = vld [vmem:[#allocation7 + $0xd8] sm:$0xff]
        %v422 = vld [vmem:[#allocation7 + $0xe0] sm:$0xff]
        %v423 = vld [vmem:[#allocation7 + $0xe8] sm:$0xff]
        %v424 = vld [vmem:[#allocation7 + $0xf0] sm:$0xff]
        %v425 = vld [vmem:[#allocation7 + $0xf8] sm:$0xff]
        %v426 = vld [vmem:[#allocation7 + $0x100] sm:$0xff]
        %v427 = vld [vmem:[#allocation7 + $0x108] sm:$0xff]
        %v428 = vld [vmem:[#allocation7 + $0x110] sm:$0xff]
        %v429 = vld [vmem:[#allocation7 + $0x118] sm:$0xff]
        %v430 = vld [vmem:[#allocation7 + $0x120] sm:$0xff]
        %v431 = vld [vmem:[#allocation7 + $0x128] sm:$0xff]
        %v432 = vld [vmem:[#allocation7 + $0x130] sm:$0xff]
        %v433 = vld [vmem:[#allocation7 + $0x138] sm:$0xff]
        %v434 = vld [vmem:[#allocation7 + $0x140] sm:$0xff]
        %v435 = vld [vmem:[#allocation7 + $0x148] sm:$0xff]
        %v436 = vld [vmem:[#allocation7 + $0x150] sm:$0xff]
        %v437 = vld [vmem:[#allocation7 + $0x158] sm:$0xff]
        %v438 = vld [vmem:[#allocation7 + $0x160] sm:$0xff]
        %v439 = vld [vmem:[#allocation7 + $0x168] sm:$0xff]
        %v440 = vld [vmem:[#allocation7 + $0x170] sm:$0xff]
        %v441 = vld [vmem:[#allocation7 + $0x178] sm:$0xff]
        %v442 = vld [vmem:[%s3] sm:$0x7]
        %v444 = vlaneseq
        %v445 = vshrl.u32 %v444, 7
        %v446 = vsub.s32 0, %v445
        %v447 = vrot.slane %v442, %v446
        %v448 = vlaneseq
        %v449 = vshrl.u32 %v448, 7
        %v450 = vsub.s32 1, %v449
        %v451 = vrot.slane %v442, %v450
        %v452 = vlaneseq
        %v453 = vshrl.u32 %v452, 7
        %v454 = vsub.s32 2, %v453
        %v455 = vrot.slane %v442, %v454
        %459 = vmatprep.subr.mxu0 %v395
        %460 = vmatpush1.msra.mxu0 %v394
        %461 = vmatprep.subr.mxu0 %v398
        %462 = vmatpush1.msra.mxu0 %v397
        %463 = vmatprep.subr.mxu0 %v401
        %464 = vmatpush1.msra.mxu0 %v400
        %465 = vmatprep.subr.mxu0 %v404
        %466 = vmatpush1.msra.mxu0 %v403
        %467 = vmatprep.subr.mxu0 %v407
        %468 = vmatpush1.msra.mxu0 %v406
        %469 = vmatprep.subr.mxu0 %v410
        %470 = vmatpush1.msra.mxu0 %v409
        %471 = vmatprep.subr.mxu0 %v413
        %472 = vmatpush1.msra.mxu0 %v412
        %473 = vmatprep.subr.mxu0 %v416
        %474 = vmatpush1.msra.mxu0 %v415
        %475 = vmatprep.subr.mxu0 %v419
        %476 = vmatpush1.msra.mxu0 %v418
        %477 = vmatprep.subr.mxu0 %v422
        %478 = vmatpush1.msra.mxu0 %v421
        %479 = vmatprep.subr.mxu0 %v425
        %480 = vmatpush1.msra.mxu0 %v424
        %481 = vmatprep.subr.mxu0 %v428
        %482 = vmatpush1.msra.mxu0 %v427
        %483 = vmatprep.subr.mxu0 %v431
        %484 = vmatpush1.msra.mxu0 %v430
        %485 = vmatprep.subr.mxu0 %v434
        %486 = vmatpush1.msra.mxu0 %v433
        %487 = vmatprep.subr.mxu0 %v437
        %488 = vmatpush1.msra.mxu0 %v436
        %489 = vmatprep.subr.mxu0 %v440
        %490 = vmatpush1.msra.mxu0 %v439
        %491 = vmatprep.subr.mxu0 0.0
        %492 = vmatpush1.msra.mxu0 0.0
        %493 = vmatprep.subr.mxu0 0.0
        %494 = vmatpush1.msra.mxu0 0.0
        %495 = vmatprep.subr.mxu0 0.0
        %496 = vmatpush1.msra.mxu0 0.0
        %497 = vmatprep.subr.mxu0 0.0
        %498 = vmatpush1.msra.mxu0 0.0
        %499 = vmatprep.subr.mxu0 0.0
        %500 = vmatpush1.msra.mxu0 0.0
        %501 = vmatprep.subr.mxu0 0.0
        %502 = vmatpush1.msra.mxu0 0.0
        %503 = vmatprep.subr.mxu0 0.0
        %504 = vmatpush1.msra.mxu0 0.0
        %505 = vmatprep.subr.mxu0 0.0
        %506 = vmatpush1.msra.mxu0 0.0
        %507 = vmatprep.subr.mxu0 0.0
        %508 = vmatpush1.msra.mxu0 0.0
        %509 = vmatprep.subr.mxu0 0.0
        %510 = vmatpush1.msra.mxu0 0.0
        %511 = vmatprep.subr.mxu0 0.0
        %512 = vmatpush1.msra.mxu0 0.0
        %513 = vmatprep.subr.mxu0 0.0
        %514 = vmatpush1.msra.mxu0 0.0
        %515 = vmatprep.subr.mxu0 0.0
        %516 = vmatpush1.msra.mxu0 0.0
        %517 = vmatprep.subr.mxu0 0.0
        %518 = vmatpush1.msra.mxu0 0.0
        %519 = vmatprep.subr.mxu0 0.0
        %520 = vmatpush1.msra.mxu0 0.0
        %521 = vmatprep.subr.mxu0 0.0
        %522 = vmatpush1.msra.mxu0 0.0
        %523 = vmatprep.mubr.f32.mxu0 0.0
        %524 = vmatmul.mubr.f32.gmra.mrb[0].mxu0 %v378
        %v525 = vpop.f32.mrb[0].mxu0
        %v526 = vadd.f32 %v447, %v525
        %v527 = vpop.f32.mrb[0].mxu0
        %v528 = vadd.f32 %v451, %v527
        %529 = vmatprep.mubr.f32.mxu0 0.0
        %530 = vmatmul.mubr.f32.gmra.mrb[0].mxu0 %v379
        %v531 = vpop.f32.mrb[0].mxu0
        %v532 = vadd.f32 %v447, %v531
        %v533 = vpop.f32.mrb[0].mxu0
        %v534 = vadd.f32 %v451, %v533
        %535 = vmatprep.mubr.f32.mxu0 0.0
        %536 = vmatmul.mubr.f32.gmra.mrb[0].mxu0 %v380
        %v537 = vpop.f32.mrb[0].mxu0
        %v538 = vadd.f32 %v447, %v537
        %v539 = vpop.f32.mrb[0].mxu0
        %v540 = vadd.f32 %v451, %v539
        %541 = vmatprep.mubr.f32.mxu0 0.0
        %542 = vmatmul.mubr.f32.gmra.mrb[0].mxu0 %v381
        %v543 = vpop.f32.mrb[0].mxu0
        %v544 = vadd.f32 %v447, %v543
        %v545 = vpop.f32.mrb[0].mxu0
        %v546 = vadd.f32 %v451, %v545
        %547 = vmatprep.mubr.f32.mxu0 0.0
        %548 = vmatmul.mubr.f32.gmra.mrb[0].mxu0 %v382
        %v549 = vpop.f32.mrb[0].mxu0
        %v550 = vadd.f32 %v447, %v549
        %v551 = vpop.f32.mrb[0].mxu0
        %v552 = vadd.f32 %v451, %v551
        %553 = vmatprep.mubr.f32.mxu0 0.0
        %554 = vmatmul.mubr.f32.gmra.mrb[0].mxu0 %v383
        %v555 = vpop.f32.mrb[0].mxu0
        %v556 = vadd.f32 %v447, %v555
        %v557 = vpop.f32.mrb[0].mxu0
        %v558 = vadd.f32 %v451, %v557
        %559 = vmatprep.mubr.f32.mxu0 0.0
        %560 = vmatmul.mubr.f32.gmra.mrb[0].mxu0 %v384
        %v561 = vpop.f32.mrb[0].mxu0
        %v562 = vadd.f32 %v447, %v561
        %v563 = vpop.f32.mrb[0].mxu0
        %v564 = vadd.f32 %v451, %v563
        %565 = vmatprep.mubr.f32.mxu0 0.0
        %566 = vmatmul.mubr.f32.gmra.mrb[0].mxu0 %v385
        %v567 = vpop.f32.mrb[0].mxu0
        %v568 = vadd.f32 %v447, %v567
        %v569 = vpop.f32.mrb[0].mxu0
        %v570 = vadd.f32 %v451, %v569
        %571 = vmatprep.mubr.f32.mxu0 0.0
        %572 = vmatmul.mubr.f32.gmra.mrb[0].mxu0 %v386
        %v573 = vpop.f32.mrb[0].mxu0
        %v574 = vadd.f32 %v447, %v573
        %v575 = vpop.f32.mrb[0].mxu0
        %v576 = vadd.f32 %v451, %v575
        %577 = vmatprep.mubr.f32.mxu0 0.0
        %578 = vmatmul.mubr.f32.gmra.mrb[0].mxu0 %v387
        %v579 = vpop.f32.mrb[0].mxu0
        %v580 = vadd.f32 %v447, %v579
        %v581 = vpop.f32.mrb[0].mxu0
        %v582 = vadd.f32 %v451, %v581
        %583 = vmatprep.mubr.f32.mxu0 0.0
        %584 = vmatmul.mubr.f32.gmra.mrb[0].mxu0 %v388
        %v585 = vpop.f32.mrb[0].mxu0
        %v586 = vadd.f32 %v447, %v585
        %v587 = vpop.f32.mrb[0].mxu0
        %v588 = vadd.f32 %v451, %v587
        %589 = vmatprep.mubr.f32.mxu0 0.0
        %590 = vmatmul.mubr.f32.gmra.mrb[0].mxu0 %v389
        %v591 = vpop.f32.mrb[0].mxu0
        %v592 = vadd.f32 %v447, %v591
        %v593 = vpop.f32.mrb[0].mxu0
        %v594 = vadd.f32 %v451, %v593
        %595 = vmatprep.mubr.f32.mxu0 0.0
        %596 = vmatmul.mubr.f32.gmra.mrb[0].mxu0 %v390
        %v597 = vpop.f32.mrb[0].mxu0
        %v598 = vadd.f32 %v447, %v597
        %v599 = vpop.f32.mrb[0].mxu0
        %v600 = vadd.f32 %v451, %v599
        %601 = vmatprep.mubr.f32.mxu0 0.0
        %602 = vmatmul.mubr.f32.gmra.mrb[0].mxu0 %v391
        %v603 = vpop.f32.mrb[0].mxu0
        %v604 = vadd.f32 %v447, %v603
        %v605 = vpop.f32.mrb[0].mxu0
        %v606 = vadd.f32 %v451, %v605
        %607 = vmatprep.mubr.f32.mxu0 0.0
        %608 = vmatmul.mubr.f32.gmra.mrb[0].mxu0 %v392
        %v609 = vpop.f32.mrb[0].mxu0
        %v610 = vadd.f32 %v447, %v609
        %v611 = vpop.f32.mrb[0].mxu0
        %v612 = vadd.f32 %v451, %v611
        %613 = vmatprep.mubr.f32.mxu0 0.0
        %614 = vmatmul.mubr.f32.gmra.mrb[0].mxu0 %v393
        %v615 = vpop.f32.mrb[0].mxu0
        %v616 = vadd.f32 %v447, %v615
        %v617 = vpop.f32.mrb[0].mxu0
        %v618 = vadd.f32 %v451, %v617
        %619 = vdwg.mxu0
        %620 = vmatprep.subr.mxu0 0.0
        %621 = vmatpush1.msra.mxu0 %v396
        %622 = vmatprep.subr.mxu0 0.0
        %623 = vmatpush1.msra.mxu0 %v399
        %624 = vmatprep.subr.mxu0 0.0
        %625 = vmatpush1.msra.mxu0 %v402
        %626 = vmatprep.subr.mxu0 0.0
        %627 = vmatpush1.msra.mxu0 %v405
        %628 = vmatprep.subr.mxu0 0.0
        %629 = vmatpush1.msra.mxu0 %v408
        %630 = vmatprep.subr.mxu0 0.0
        %631 = vmatpush1.msra.mxu0 %v411
        %632 = vmatprep.subr.mxu0 0.0
        %633 = vmatpush1.msra.mxu0 %v414
        %634 = vmatprep.subr.mxu0 0.0
        %635 = vmatpush1.msra.mxu0 %v417
        %636 = vmatprep.subr.mxu0 0.0
        %637 = vmatpush1.msra.mxu0 %v420
        %638 = vmatprep.subr.mxu0 0.0
        %639 = vmatpush1.msra.mxu0 %v423
        %640 = vmatprep.subr.mxu0 0.0
        %641 = vmatpush1.msra.mxu0 %v426
        %642 = vmatprep.subr.mxu0 0.0
        %643 = vmatpush1.msra.mxu0 %v429
        %644 = vmatprep.subr.mxu0 0.0
        %645 = vmatpush1.msra.mxu0 %v432
        %646 = vmatprep.subr.mxu0 0.0
        %647 = vmatpush1.msra.mxu0 %v435
        %648 = vmatprep.subr.mxu0 0.0
        %649 = vmatpush1.msra.mxu0 %v438
        %650 = vmatprep.subr.mxu0 0.0
        %651 = vmatpush1.msra.mxu0 %v441
        %652 = vmatprep.subr.mxu0 0.0
        %653 = vmatpush1.msra.mxu0 0.0
        %654 = vmatprep.subr.mxu0 0.0
        %655 = vmatpush1.msra.mxu0 0.0
        %656 = vmatprep.subr.mxu0 0.0
        %657 = vmatpush1.msra.mxu0 0.0
        %658 = vmatprep.subr.mxu0 0.0
        %659 = vmatpush1.msra.mxu0 0.0
        %660 = vmatprep.subr.mxu0 0.0
        %661 = vmatpush1.msra.mxu0 0.0
        %662 = vmatprep.subr.mxu0 0.0
        %663 = vmatpush1.msra.mxu0 0.0
        %664 = vmatprep.subr.mxu0 0.0
        %665 = vmatpush1.msra.mxu0 0.0
        %666 = vmatprep.subr.mxu0 0.0
        %667 = vmatpush1.msra.mxu0 0.0
        %668 = vmatprep.subr.mxu0 0.0
        %669 = vmatpush1.msra.mxu0 0.0
        %670 = vmatprep.subr.mxu0 0.0
        %671 = vmatpush1.msra.mxu0 0.0
        %672 = vmatprep.subr.mxu0 0.0
        %673 = vmatpush1.msra.mxu0 0.0
        %674 = vmatprep.subr.mxu0 0.0
        %675 = vmatpush1.msra.mxu0 0.0
        %676 = vmatprep.subr.mxu0 0.0
        %677 = vmatpush1.msra.mxu0 0.0
        %678 = vmatprep.subr.mxu0 0.0
        %679 = vmatpush1.msra.mxu0 0.0
        %680 = vmatprep.subr.mxu0 0.0
        %681 = vmatpush1.msra.mxu0 0.0
        %682 = vmatprep.subr.mxu0 0.0
        %683 = vmatpush1.msra.mxu0 0.0
        %684 = vmatprep.mubr.f32.mxu0 0.0
        %685 = vmatmul.mubr.f32.gmra.mrb[0].mxu0 %v378
        %v686 = vpop.f32.mrb[0].mxu0
        %v687 = vadd.f32 %v455, %v686
        %v688 = vpop.f32.mrb[0].mxu0
        %689 = vmatprep.mubr.f32.mxu0 0.0
        %690 = vmatmul.mubr.f32.gmra.mrb[0].mxu0 %v379
        %v691 = vpop.f32.mrb[0].mxu0
        %v692 = vadd.f32 %v455, %v691
        %v693 = vpop.f32.mrb[0].mxu0
        %694 = vmatprep.mubr.f32.mxu0 0.0
        %695 = vmatmul.mubr.f32.gmra.mrb[0].mxu0 %v380
        %v696 = vpop.f32.mrb[0].mxu0
        %v697 = vadd.f32 %v455, %v696
        %v698 = vpop.f32.mrb[0].mxu0
        %699 = vmatprep.mubr.f32.mxu0 0.0
        %700 = vmatmul.mubr.f32.gmra.mrb[0].mxu0 %v381
        %v701 = vpop.f32.mrb[0].mxu0
        %v702 = vadd.f32 %v455, %v701
        %v703 = vpop.f32.mrb[0].mxu0
        %704 = vmatprep.mubr.f32.mxu0 0.0
        %705 = vmatmul.mubr.f32.gmra.mrb[0].mxu0 %v382
        %v706 = vpop.f32.mrb[0].mxu0
        %v707 = vadd.f32 %v455, %v706
        %v708 = vpop.f32.mrb[0].mxu0
        %709 = vmatprep.mubr.f32.mxu0 0.0
        %710 = vmatmul.mubr.f32.gmra.mrb[0].mxu0 %v383
        %v711 = vpop.f32.mrb[0].mxu0
        %v712 = vadd.f32 %v455, %v711
        %v713 = vpop.f32.mrb[0].mxu0
        %714 = vmatprep.mubr.f32.mxu0 0.0
        %715 = vmatmul.mubr.f32.gmra.mrb[0].mxu0 %v384
        %v716 = vpop.f32.mrb[0].mxu0
        %v717 = vadd.f32 %v455, %v716
        %v718 = vpop.f32.mrb[0].mxu0
        %719 = vmatprep.mubr.f32.mxu0 0.0
        %720 = vmatmul.mubr.f32.gmra.mrb[0].mxu0 %v385
        %v721 = vpop.f32.mrb[0].mxu0
        %v722 = vadd.f32 %v455, %v721
        %v723 = vpop.f32.mrb[0].mxu0
        %724 = vmatprep.mubr.f32.mxu0 0.0
        %725 = vmatmul.mubr.f32.gmra.mrb[0].mxu0 %v386
        %v726 = vpop.f32.mrb[0].mxu0
        %v727 = vadd.f32 %v455, %v726
        %v728 = vpop.f32.mrb[0].mxu0
        %729 = vmatprep.mubr.f32.mxu0 0.0
        %730 = vmatmul.mubr.f32.gmra.mrb[0].mxu0 %v387
        %v731 = vpop.f32.mrb[0].mxu0
        %v732 = vadd.f32 %v455, %v731
        %v733 = vpop.f32.mrb[0].mxu0
        %734 = vmatprep.mubr.f32.mxu0 0.0
        %735 = vmatmul.mubr.f32.gmra.mrb[0].mxu0 %v388
        %v736 = vpop.f32.mrb[0].mxu0
        %v737 = vadd.f32 %v455, %v736
        %v738 = vpop.f32.mrb[0].mxu0
        %739 = vmatprep.mubr.f32.mxu0 0.0
        %740 = vmatmul.mubr.f32.gmra.mrb[0].mxu0 %v389
        %v741 = vpop.f32.mrb[0].mxu0
        %v742 = vadd.f32 %v455, %v741
        %v743 = vpop.f32.mrb[0].mxu0
        %744 = vmatprep.mubr.f32.mxu0 0.0
        %745 = vmatmul.mubr.f32.gmra.mrb[0].mxu0 %v390
        %v746 = vpop.f32.mrb[0].mxu0
        %v747 = vadd.f32 %v455, %v746
        %v748 = vpop.f32.mrb[0].mxu0
        %749 = vmatprep.mubr.f32.mxu0 0.0
        %750 = vmatmul.mubr.f32.gmra.mrb[0].mxu0 %v391
        %v751 = vpop.f32.mrb[0].mxu0
        %v752 = vadd.f32 %v455, %v751
        %v753 = vpop.f32.mrb[0].mxu0
        %754 = vmatprep.mubr.f32.mxu0 0.0
        %755 = vmatmul.mubr.f32.gmra.mrb[0].mxu0 %v392
        %v756 = vpop.f32.mrb[0].mxu0
        %v757 = vadd.f32 %v455, %v756
        %v758 = vpop.f32.mrb[0].mxu0
        %759 = vmatprep.mubr.f32.mxu0 0.0
        %760 = vmatmul.mubr.f32.gmra.mrb[0].mxu0 %v393
        %v761 = vpop.f32.mrb[0].mxu0
        %v762 = vadd.f32 %v455, %v761
        %v763 = vpop.f32.mrb[0].mxu0
        %764 = vdwg.mxu0
        %vm765 = vcmask 261120
        %v767 = vsel %vm765, %v526, 0
        %v770 = vsel %vm765, %v532, 0
        %v773 = vsel %vm765, %v538, 0
        %v776 = vsel %vm765, %v544, 0
        %v779 = vsel %vm765, %v550, 0
        %v782 = vsel %vm765, %v556, 0
        %v785 = vsel %vm765, %v562, 0
        %v788 = vsel %vm765, %v568, 0
        %v791 = vsel %vm765, %v574, 0
        %v794 = vsel %vm765, %v580, 0
        %v797 = vsel %vm765, %v586, 0
        %v800 = vsel %vm765, %v592, 0
        %v803 = vsel %vm765, %v598, 0
        %v806 = vsel %vm765, %v604, 0
        %v809 = vsel %vm765, %v610, 0
        %v812 = vsel %vm765, %v616, 0
        %v815 = vsel %vm765, %v528, 0
        %v818 = vsel %vm765, %v534, 0
        %v821 = vsel %vm765, %v540, 0
        %v824 = vsel %vm765, %v546, 0
        %v827 = vsel %vm765, %v552, 0
        %v830 = vsel %vm765, %v558, 0
        %v833 = vsel %vm765, %v564, 0
        %v836 = vsel %vm765, %v570, 0
        %v839 = vsel %vm765, %v576, 0
        %v842 = vsel %vm765, %v582, 0
        %v845 = vsel %vm765, %v588, 0
        %v848 = vsel %vm765, %v594, 0
        %v851 = vsel %vm765, %v600, 0
        %v854 = vsel %vm765, %v606, 0
        %v857 = vsel %vm765, %v612, 0
        %v860 = vsel %vm765, %v618, 0
        %862 = vmatprep.subr.mxu0 0.0
        %863 = vmatpush1.xpose.msra.mxu0 %v815
        %864 = vmatprep.subr.mxu0 0.0
        %865 = vmatpush1.xpose.msra.mxu0 %v818
        %866 = vmatprep.subr.mxu0 0.0
        %867 = vmatpush1.xpose.msra.mxu0 %v821
        %868 = vmatprep.subr.mxu0 0.0
        %869 = vmatpush1.xpose.msra.mxu0 %v824
        %870 = vmatprep.subr.mxu0 0.0
        %871 = vmatpush1.xpose.msra.mxu0 %v827
        %872 = vmatprep.subr.mxu0 0.0
        %873 = vmatpush1.xpose.msra.mxu0 %v830
        %874 = vmatprep.subr.mxu0 0.0
        %875 = vmatpush1.xpose.msra.mxu0 %v833
        %876 = vmatprep.subr.mxu0 0.0
        %877 = vmatpush1.xpose.msra.mxu0 %v836
        %878 = vmatprep.subr.mxu0 0.0
        %879 = vmatpush1.xpose.msra.mxu0 %v839
        %880 = vmatprep.subr.mxu0 0.0
        %881 = vmatpush1.xpose.msra.mxu0 %v842
        %882 = vmatprep.subr.mxu0 0.0
        %883 = vmatpush1.xpose.msra.mxu0 %v845
        %884 = vmatprep.subr.mxu0 0.0
        %885 = vmatpush1.xpose.msra.mxu0 %v848
        %886 = vmatprep.subr.mxu0 0.0
        %887 = vmatpush1.xpose.msra.mxu0 %v851
        %888 = vmatprep.subr.mxu0 0.0
        %889 = vmatpush1.xpose.msra.mxu0 %v854
        %890 = vmatprep.subr.mxu0 0.0
        %891 = vmatpush1.xpose.msra.mxu0 %v857
        %892 = vmatprep.subr.mxu0 0.0
        %893 = vmatpush1.xpose.msra.mxu0 %v860
        %894 = vmatprep.subr.mxu0 0.0
        %895 = vmatpush1.xpose.msra.mxu0 0.0
        %896 = vmatprep.subr.mxu0 0.0
        %897 = vmatpush1.xpose.msra.mxu0 0.0
        %898 = vmatprep.subr.mxu0 0.0
        %899 = vmatpush1.xpose.msra.mxu0 0.0
        %900 = vmatprep.subr.mxu0 0.0
        %901 = vmatpush1.xpose.msra.mxu0 0.0
        %902 = vmatprep.subr.mxu0 0.0
        %903 = vmatpush1.xpose.msra.mxu0 0.0
        %904 = vmatprep.subr.mxu0 0.0
        %905 = vmatpush1.xpose.msra.mxu0 0.0
        %906 = vmatprep.subr.mxu0 0.0
        %907 = vmatpush1.xpose.msra.mxu0 0.0
        %908 = vmatprep.subr.mxu0 0.0
        %909 = vmatpush1.xpose.msra.mxu0 0.0
        %910 = vmatprep.subr.mxu0 0.0
        %911 = vmatpush1.xpose.msra.mxu0 0.0
        %912 = vmatprep.subr.mxu0 0.0
        %913 = vmatpush1.xpose.msra.mxu0 0.0
        %914 = vmatprep.subr.mxu0 0.0
        %915 = vmatpush1.xpose.msra.mxu0 0.0
        %916 = vmatprep.subr.mxu0 0.0
        %917 = vmatpush1.xpose.msra.mxu0 0.0
        %918 = vmatprep.subr.mxu0 0.0
        %919 = vmatpush1.xpose.msra.mxu0 0.0
        %920 = vmatprep.subr.mxu0 0.0
        %921 = vmatpush1.xpose.msra.mxu0 0.0
        %922 = vmatprep.subr.mxu0 0.0
        %923 = vmatpush1.xpose.msra.mxu0 0.0
        %924 = vmatprep.subr.mxu0 0.0
        %925 = vmatpush1.xpose.msra.mxu0 0.0
        %926 = vmatprep.mubr.f32.mxu0 0.0
        %927 = vmatmul.mubr.f32.gmra.mrb[0].mxu0 %v767
        %v928 = vpop.f32.mrb[0].mxu0
        %v929 = vadd.f32 0.0, %v928
        %v930 = vpop.f32.mrb[0].mxu0
        %931 = vmatprep.mubr.f32.mxu0 0.0
        %932 = vmatmul.mubr.f32.gmra.mrb[0].mxu0 %v770
        %v933 = vpop.f32.mrb[0].mxu0
        %v934 = vadd.f32 0.0, %v933
        %v935 = vpop.f32.mrb[0].mxu0
        %936 = vmatprep.mubr.f32.mxu0 0.0
        %937 = vmatmul.mubr.f32.gmra.mrb[0].mxu0 %v773
        %v938 = vpop.f32.mrb[0].mxu0
        %v939 = vadd.f32 0.0, %v938
        %v940 = vpop.f32.mrb[0].mxu0
        %941 = vmatprep.mubr.f32.mxu0 0.0
        %942 = vmatmul.mubr.f32.gmra.mrb[0].mxu0 %v776
        %v943 = vpop.f32.mrb[0].mxu0
        %v944 = vadd.f32 0.0, %v943
        %v945 = vpop.f32.mrb[0].mxu0
        %946 = vmatprep.mubr.f32.mxu0 0.0
        %947 = vmatmul.mubr.f32.gmra.mrb[0].mxu0 %v779
        %v948 = vpop.f32.mrb[0].mxu0
        %v949 = vadd.f32 0.0, %v948
        %v950 = vpop.f32.mrb[0].mxu0
        %951 = vmatprep.mubr.f32.mxu0 0.0
        %952 = vmatmul.mubr.f32.gmra.mrb[0].mxu0 %v782
        %v953 = vpop.f32.mrb[0].mxu0
        %v954 = vadd.f32 0.0, %v953
        %v955 = vpop.f32.mrb[0].mxu0
        %956 = vmatprep.mubr.f32.mxu0 0.0
        %957 = vmatmul.mubr.f32.gmra.mrb[0].mxu0 %v785
        %v958 = vpop.f32.mrb[0].mxu0
        %v959 = vadd.f32 0.0, %v958
        %v960 = vpop.f32.mrb[0].mxu0
        %961 = vmatprep.mubr.f32.mxu0 0.0
        %962 = vmatmul.mubr.f32.gmra.mrb[0].mxu0 %v788
        %v963 = vpop.f32.mrb[0].mxu0
        %v964 = vadd.f32 0.0, %v963
        %v965 = vpop.f32.mrb[0].mxu0
        %966 = vmatprep.mubr.f32.mxu0 0.0
        %967 = vmatmul.mubr.f32.gmra.mrb[0].mxu0 %v791
        %v968 = vpop.f32.mrb[0].mxu0
        %v969 = vadd.f32 0.0, %v968
        %v970 = vpop.f32.mrb[0].mxu0
        %971 = vmatprep.mubr.f32.mxu0 0.0
        %972 = vmatmul.mubr.f32.gmra.mrb[0].mxu0 %v794
        %v973 = vpop.f32.mrb[0].mxu0
        %v974 = vadd.f32 0.0, %v973
        %v975 = vpop.f32.mrb[0].mxu0
        %976 = vmatprep.mubr.f32.mxu0 0.0
        %977 = vmatmul.mubr.f32.gmra.mrb[0].mxu0 %v797
        %v978 = vpop.f32.mrb[0].mxu0
        %v979 = vadd.f32 0.0, %v978
        %v980 = vpop.f32.mrb[0].mxu0
        %981 = vmatprep.mubr.f32.mxu0 0.0
        %982 = vmatmul.mubr.f32.gmra.mrb[0].mxu0 %v800
        %v983 = vpop.f32.mrb[0].mxu0
        %v984 = vadd.f32 0.0, %v983
        %v985 = vpop.f32.mrb[0].mxu0
        %986 = vmatprep.mubr.f32.mxu0 0.0
        %987 = vmatmul.mubr.f32.gmra.mrb[0].mxu0 %v803
        %v988 = vpop.f32.mrb[0].mxu0
        %v989 = vadd.f32 0.0, %v988
        %v990 = vpop.f32.mrb[0].mxu0
        %991 = vmatprep.mubr.f32.mxu0 0.0
        %992 = vmatmul.mubr.f32.gmra.mrb[0].mxu0 %v806
        %v993 = vpop.f32.mrb[0].mxu0
        %v994 = vadd.f32 0.0, %v993
        %v995 = vpop.f32.mrb[0].mxu0
        %996 = vmatprep.mubr.f32.mxu0 0.0
        %997 = vmatmul.mubr.f32.gmra.mrb[0].mxu0 %v809
        %v998 = vpop.f32.mrb[0].mxu0
        %v999 = vadd.f32 0.0, %v998
        %v1000 = vpop.f32.mrb[0].mxu0
        %1001 = vmatprep.mubr.f32.mxu0 0.0
        %1002 = vmatmul.mubr.f32.gmra.mrb[0].mxu0 %v812
        %v1003 = vpop.f32.mrb[0].mxu0
        %v1004 = vadd.f32 0.0, %v1003
        %v1005 = vpop.f32.mrb[0].mxu0
        %1006 = vdwg.mxu0
        %1007 = vmax.xlane.f32.xlu0 %v929
        %v1008 = vpop.xlane.xlu0 %1007
        %1009 = vmax.xlane.f32.xlu0 %v934
        %v1010 = vpop.xlane.xlu0 %1009
        %1011 = vmax.xlane.f32.xlu0 %v939
        %v1012 = vpop.xlane.xlu0 %1011
        %1013 = vmax.xlane.f32.xlu0 %v944
        %v1014 = vpop.xlane.xlu0 %1013
        %1015 = vmax.xlane.f32.xlu0 %v949
        %v1016 = vpop.xlane.xlu0 %1015
        %1017 = vmax.xlane.f32.xlu0 %v954
        %v1018 = vpop.xlane.xlu0 %1017
        %1019 = vmax.xlane.f32.xlu0 %v959
        %v1020 = vpop.xlane.xlu0 %1019
        %1021 = vmax.xlane.f32.xlu0 %v964
        %v1022 = vpop.xlane.xlu0 %1021
        %1023 = vmax.xlane.f32.xlu0 %v969
        %v1024 = vpop.xlane.xlu0 %1023
        %1025 = vmax.xlane.f32.xlu0 %v974
        %v1026 = vpop.xlane.xlu0 %1025
        %1027 = vmax.xlane.f32.xlu0 %v979
        %v1028 = vpop.xlane.xlu0 %1027
        %1029 = vmax.xlane.f32.xlu0 %v984
        %v1030 = vpop.xlane.xlu0 %1029
        %1031 = vmax.xlane.f32.xlu0 %v989
        %v1032 = vpop.xlane.xlu0 %1031
        %1033 = vmax.xlane.f32.xlu0 %v994
        %v1034 = vpop.xlane.xlu0 %1033
        %1035 = vmax.xlane.f32.xlu0 %v999
        %v1036 = vpop.xlane.xlu0 %1035
        %1037 = vmax.xlane.f32.xlu0 %v1004
        %v1038 = vpop.xlane.xlu0 %1037
        %v1039 = vsub.f32 %v929, %v1008
        %v1040 = vsub.f32 %v934, %v1010
        %v1041 = vsub.f32 %v939, %v1012
        %v1042 = vsub.f32 %v944, %v1014
        %v1043 = vsub.f32 %v949, %v1016
        %v1044 = vsub.f32 %v954, %v1018
        %v1045 = vsub.f32 %v959, %v1020
        %v1046 = vsub.f32 %v964, %v1022
        %v1047 = vsub.f32 %v969, %v1024
        %v1048 = vsub.f32 %v974, %v1026
        %v1049 = vsub.f32 %v979, %v1028
        %v1050 = vsub.f32 %v984, %v1030
        %v1051 = vsub.f32 %v989, %v1032
        %v1052 = vsub.f32 %v994, %v1034
        %v1053 = vsub.f32 %v999, %v1036
        %v1054 = vsub.f32 %v1004, %v1038
        %v1055 = vmul.f32 %v1039, 1.442695
        %v1056 = vpow.pop %v1055
        %v1057 = vmul.f32 %v1040, 1.442695
        %v1058 = vpow.pop %v1057
        %v1059 = vmul.f32 %v1041, 1.442695
        %v1060 = vpow.pop %v1059
        %v1061 = vmul.f32 %v1042, 1.442695
        %v1062 = vpow.pop %v1061
        %v1063 = vmul.f32 %v1043, 1.442695
        %v1064 = vpow.pop %v1063
        %v1065 = vmul.f32 %v1044, 1.442695
        %v1066 = vpow.pop %v1065
        %v1067 = vmul.f32 %v1045, 1.442695
        %v1068 = vpow.pop %v1067
        %v1069 = vmul.f32 %v1046, 1.442695
        %v1070 = vpow.pop %v1069
        %v1071 = vmul.f32 %v1047, 1.442695
        %v1072 = vpow.pop %v1071
        %v1073 = vmul.f32 %v1048, 1.442695
        %v1074 = vpow.pop %v1073
        %v1075 = vmul.f32 %v1049, 1.442695
        %v1076 = vpow.pop %v1075
        %v1077 = vmul.f32 %v1050, 1.442695
        %v1078 = vpow.pop %v1077
        %v1079 = vmul.f32 %v1051, 1.442695
        %v1080 = vpow.pop %v1079
        %v1081 = vmul.f32 %v1052, 1.442695
        %v1082 = vpow.pop %v1081
        %v1083 = vmul.f32 %v1053, 1.442695
        %v1084 = vpow.pop %v1083
        %v1085 = vmul.f32 %v1054, 1.442695
        %v1086 = vpow.pop %v1085
        %1087 = vadd.xlane.f32.xlu0 %v1056
        %v1088 = vpop.xlane.xlu0 %1087
        %1089 = vadd.xlane.f32.xlu0 %v1058
        %v1090 = vpop.xlane.xlu0 %1089
        %1091 = vadd.xlane.f32.xlu0 %v1060
        %v1092 = vpop.xlane.xlu0 %1091
        %1093 = vadd.xlane.f32.xlu0 %v1062
        %v1094 = vpop.xlane.xlu0 %1093
        %1095 = vadd.xlane.f32.xlu0 %v1064
        %v1096 = vpop.xlane.xlu0 %1095
        %1097 = vadd.xlane.f32.xlu0 %v1066
        %v1098 = vpop.xlane.xlu0 %1097
        %1099 = vadd.xlane.f32.xlu0 %v1068
        %v1100 = vpop.xlane.xlu0 %1099
        %1101 = vadd.xlane.f32.xlu0 %v1070
        %v1102 = vpop.xlane.xlu0 %1101
        %1103 = vadd.xlane.f32.xlu0 %v1072
        %v1104 = vpop.xlane.xlu0 %1103
        %1105 = vadd.xlane.f32.xlu0 %v1074
        %v1106 = vpop.xlane.xlu0 %1105
        %1107 = vadd.xlane.f32.xlu0 %v1076
        %v1108 = vpop.xlane.xlu0 %1107
        %1109 = vadd.xlane.f32.xlu0 %v1078
        %v1110 = vpop.xlane.xlu0 %1109
        %1111 = vadd.xlane.f32.xlu0 %v1080
        %v1112 = vpop.xlane.xlu0 %1111
        %1113 = vadd.xlane.f32.xlu0 %v1082
        %v1114 = vpop.xlane.xlu0 %1113
        %1115 = vadd.xlane.f32.xlu0 %v1084
        %v1116 = vpop.xlane.xlu0 %1115
        %1117 = vadd.xlane.f32.xlu0 %v1086
        %v1118 = vpop.xlane.xlu0 %1117
        %v1119 = vrcp.pop %v1088
        %v1120 = vrcp.pop %v1090
        %v1121 = vrcp.pop %v1092
        %v1122 = vrcp.pop %v1094
        %v1123 = vrcp.pop %v1096
        %v1124 = vrcp.pop %v1098
        %v1125 = vrcp.pop %v1100
        %v1126 = vrcp.pop %v1102
        %v1127 = vrcp.pop %v1104
        %v1128 = vrcp.pop %v1106
        %v1129 = vrcp.pop %v1108
        %v1130 = vrcp.pop %v1110
        %v1131 = vrcp.pop %v1112
        %v1132 = vrcp.pop %v1114
        %v1133 = vrcp.pop %v1116
        %v1134 = vrcp.pop %v1118
        %v1135 = vmul.f32 %v1088, %v1119
        %v1136 = vmul.f32 %v1090, %v1120
        %v1137 = vmul.f32 %v1092, %v1121
        %v1138 = vmul.f32 %v1094, %v1122
        %v1139 = vmul.f32 %v1096, %v1123
        %v1140 = vmul.f32 %v1098, %v1124
        %v1141 = vmul.f32 %v1100, %v1125
        %v1142 = vmul.f32 %v1102, %v1126
        %v1143 = vmul.f32 %v1104, %v1127
        %v1144 = vmul.f32 %v1106, %v1128
        %v1145 = vmul.f32 %v1108, %v1129
        %v1146 = vmul.f32 %v1110, %v1130
        %v1147 = vmul.f32 %v1112, %v1131
        %v1148 = vmul.f32 %v1114, %v1132
        %v1149 = vmul.f32 %v1116, %v1133
        %v1150 = vmul.f32 %v1118, %v1134
        %v1151 = vsub.f32 2.0, %v1135
        %v1152 = vsub.f32 2.0, %v1136
        %v1153 = vsub.f32 2.0, %v1137
        %v1154 = vsub.f32 2.0, %v1138
        %v1155 = vsub.f32 2.0, %v1139
        %v1156 = vsub.f32 2.0, %v1140
        %v1157 = vsub.f32 2.0, %v1141
        %v1158 = vsub.f32 2.0, %v1142
        %v1159 = vsub.f32 2.0, %v1143
        %v1160 = vsub.f32 2.0, %v1144
        %v1161 = vsub.f32 2.0, %v1145
        %v1162 = vsub.f32 2.0, %v1146
        %v1163 = vsub.f32 2.0, %v1147
        %v1164 = vsub.f32 2.0, %v1148
        %v1165 = vsub.f32 2.0, %v1149
        %v1166 = vsub.f32 2.0, %v1150
        %v1167 = vmul.f32 %v1119, %v1151
        %v1168 = vmul.f32 %v1120, %v1152
        %v1169 = vmul.f32 %v1121, %v1153
        %v1170 = vmul.f32 %v1122, %v1154
        %v1171 = vmul.f32 %v1123, %v1155
        %v1172 = vmul.f32 %v1124, %v1156
        %v1173 = vmul.f32 %v1125, %v1157
        %v1174 = vmul.f32 %v1126, %v1158
        %v1175 = vmul.f32 %v1127, %v1159
        %v1176 = vmul.f32 %v1128, %v1160
        %v1177 = vmul.f32 %v1129, %v1161
        %v1178 = vmul.f32 %v1130, %v1162
        %v1179 = vmul.f32 %v1131, %v1163
        %v1180 = vmul.f32 %v1132, %v1164
        %v1181 = vmul.f32 %v1133, %v1165
        %v1182 = vmul.f32 %v1134, %v1166
        %v1183 = vmul.f32 %v1056, %v1167
        %v1184 = vmul.f32 %v1058, %v1168
        %v1185 = vmul.f32 %v1060, %v1169
        %v1186 = vmul.f32 %v1062, %v1170
        %v1187 = vmul.f32 %v1064, %v1171
        %v1188 = vmul.f32 %v1066, %v1172
        %v1189 = vmul.f32 %v1068, %v1173
        %v1190 = vmul.f32 %v1070, %v1174
        %v1191 = vmul.f32 %v1072, %v1175
        %v1192 = vmul.f32 %v1074, %v1176
        %v1193 = vmul.f32 %v1076, %v1177
        %v1194 = vmul.f32 %v1078, %v1178
        %v1195 = vmul.f32 %v1080, %v1179
        %v1196 = vmul.f32 %v1082, %v1180
        %v1197 = vmul.f32 %v1084, %v1181
        %v1198 = vmul.f32 %v1086, %v1182
        %1199 = vmatprep.subr.mxu0 0.0
        %1200 = vmatpush1.msra.mxu0 %v687
        %1201 = vmatprep.subr.mxu0 0.0
        %1202 = vmatpush1.msra.mxu0 %v692
        %1203 = vmatprep.subr.mxu0 0.0
        %1204 = vmatpush1.msra.mxu0 %v697
        %1205 = vmatprep.subr.mxu0 0.0
        %1206 = vmatpush1.msra.mxu0 %v702
        %1207 = vmatprep.subr.mxu0 0.0
        %1208 = vmatpush1.msra.mxu0 %v707
        %1209 = vmatprep.subr.mxu0 0.0
        %1210 = vmatpush1.msra.mxu0 %v712
        %1211 = vmatprep.subr.mxu0 0.0
        %1212 = vmatpush1.msra.mxu0 %v717
        %1213 = vmatprep.subr.mxu0 0.0
        %1214 = vmatpush1.msra.mxu0 %v722
        %1215 = vmatprep.subr.mxu0 0.0
        %1216 = vmatpush1.msra.mxu0 %v727
        %1217 = vmatprep.subr.mxu0 0.0
        %1218 = vmatpush1.msra.mxu0 %v732
        %1219 = vmatprep.subr.mxu0 0.0
        %1220 = vmatpush1.msra.mxu0 %v737
        %1221 = vmatprep.subr.mxu0 0.0
        %1222 = vmatpush1.msra.mxu0 %v742
        %1223 = vmatprep.subr.mxu0 0.0
        %1224 = vmatpush1.msra.mxu0 %v747
        %1225 = vmatprep.subr.mxu0 0.0
        %1226 = vmatpush1.msra.mxu0 %v752
        %1227 = vmatprep.subr.mxu0 0.0
        %1228 = vmatpush1.msra.mxu0 %v757
        %1229 = vmatprep.subr.mxu0 0.0
        %1230 = vmatpush1.msra.mxu0 %v762
        %1231 = vmatprep.subr.mxu0 0.0
        %1232 = vmatpush1.msra.mxu0 0.0
        %1233 = vmatprep.subr.mxu0 0.0
        %1234 = vmatpush1.msra.mxu0 0.0
        %1235 = vmatprep.subr.mxu0 0.0
        %1236 = vmatpush1.msra.mxu0 0.0
        %1237 = vmatprep.subr.mxu0 0.0
        %1238 = vmatpush1.msra.mxu0 0.0
        %1239 = vmatprep.subr.mxu0 0.0
        %1240 = vmatpush1.msra.mxu0 0.0
        %1241 = vmatprep.subr.mxu0 0.0
        %1242 = vmatpush1.msra.mxu0 0.0
        %1243 = vmatprep.subr.mxu0 0.0
        %1244 = vmatpush1.msra.mxu0 0.0
        %1245 = vmatprep.subr.mxu0 0.0
        %1246 = vmatpush1.msra.mxu0 0.0
        %1247 = vmatprep.subr.mxu0 0.0
        %1248 = vmatpush1.msra.mxu0 0.0
        %1249 = vmatprep.subr.mxu0 0.0
        %1250 = vmatpush1.msra.mxu0 0.0
        %1251 = vmatprep.subr.mxu0 0.0
        %1252 = vmatpush1.msra.mxu0 0.0
        %1253 = vmatprep.subr.mxu0 0.0
        %1254 = vmatpush1.msra.mxu0 0.0
        %1255 = vmatprep.subr.mxu0 0.0
        %1256 = vmatpush1.msra.mxu0 0.0
        %1257 = vmatprep.subr.mxu0 0.0
        %1258 = vmatpush1.msra.mxu0 0.0
        %1259 = vmatprep.subr.mxu0 0.0
        %1260 = vmatpush1.msra.mxu0 0.0
        %1261 = vmatprep.subr.mxu0 0.0
        %1262 = vmatpush1.msra.mxu0 0.0
        %1263 = vmatprep.mubr.f32.mxu0 0.0
        %1264 = vmatmul.mubr.f32.gmra.mrb[0].mxu0 %v1183
        %v1265 = vpop.f32.mrb[0].mxu0
        %v1266 = vadd.f32 0.0, %v1265
        %v1267 = vpop.f32.mrb[0].mxu0
        %1268 = vmatprep.mubr.f32.mxu0 0.0
        %1269 = vmatmul.mubr.f32.gmra.mrb[0].mxu0 %v1184
        %v1270 = vpop.f32.mrb[0].mxu0
        %v1271 = vadd.f32 0.0, %v1270
        %v1272 = vpop.f32.mrb[0].mxu0
        %1273 = vmatprep.mubr.f32.mxu0 0.0
        %1274 = vmatmul.mubr.f32.gmra.mrb[0].mxu0 %v1185
        %v1275 = vpop.f32.mrb[0].mxu0
        %v1276 = vadd.f32 0.0, %v1275
        %v1277 = vpop.f32.mrb[0].mxu0
        %1278 = vmatprep.mubr.f32.mxu0 0.0
        %1279 = vmatmul.mubr.f32.gmra.mrb[0].mxu0 %v1186
        %v1280 = vpop.f32.mrb[0].mxu0
        %v1281 = vadd.f32 0.0, %v1280
        %v1282 = vpop.f32.mrb[0].mxu0
        %1283 = vmatprep.mubr.f32.mxu0 0.0
        %1284 = vmatmul.mubr.f32.gmra.mrb[0].mxu0 %v1187
        %v1285 = vpop.f32.mrb[0].mxu0
        %v1286 = vadd.f32 0.0, %v1285
        %v1287 = vpop.f32.mrb[0].mxu0
        %1288 = vmatprep.mubr.f32.mxu0 0.0
        %1289 = vmatmul.mubr.f32.gmra.mrb[0].mxu0 %v1188
        %v1290 = vpop.f32.mrb[0].mxu0
        %v1291 = vadd.f32 0.0, %v1290
        %v1292 = vpop.f32.mrb[0].mxu0
        %1293 = vmatprep.mubr.f32.mxu0 0.0
        %1294 = vmatmul.mubr.f32.gmra.mrb[0].mxu0 %v1189
        %v1295 = vpop.f32.mrb[0].mxu0
        %v1296 = vadd.f32 0.0, %v1295
        %v1297 = vpop.f32.mrb[0].mxu0
        %1298 = vmatprep.mubr.f32.mxu0 0.0
        %1299 = vmatmul.mubr.f32.gmra.mrb[0].mxu0 %v1190
        %v1300 = vpop.f32.mrb[0].mxu0
        %v1301 = vadd.f32 0.0, %v1300
        %v1302 = vpop.f32.mrb[0].mxu0
        %1303 = vmatprep.mubr.f32.mxu0 0.0
        %1304 = vmatmul.mubr.f32.gmra.mrb[0].mxu0 %v1191
        %v1305 = vpop.f32.mrb[0].mxu0
        %v1306 = vadd.f32 0.0, %v1305
        %v1307 = vpop.f32.mrb[0].mxu0
        %1308 = vmatprep.mubr.f32.mxu0 0.0
        %1309 = vmatmul.mubr.f32.gmra.mrb[0].mxu0 %v1192
        %v1310 = vpop.f32.mrb[0].mxu0
        %v1311 = vadd.f32 0.0, %v1310
        %v1312 = vpop.f32.mrb[0].mxu0
        %1313 = vmatprep.mubr.f32.mxu0 0.0
        %1314 = vmatmul.mubr.f32.gmra.mrb[0].mxu0 %v1193
        %v1315 = vpop.f32.mrb[0].mxu0
        %v1316 = vadd.f32 0.0, %v1315
        %v1317 = vpop.f32.mrb[0].mxu0
        %1318 = vmatprep.mubr.f32.mxu0 0.0
        %1319 = vmatmul.mubr.f32.gmra.mrb[0].mxu0 %v1194
        %v1320 = vpop.f32.mrb[0].mxu0
        %v1321 = vadd.f32 0.0, %v1320
        %v1322 = vpop.f32.mrb[0].mxu0
        %1323 = vmatprep.mubr.f32.mxu0 0.0
        %1324 = vmatmul.mubr.f32.gmra.mrb[0].mxu0 %v1195
        %v1325 = vpop.f32.mrb[0].mxu0
        %v1326 = vadd.f32 0.0, %v1325
        %v1327 = vpop.f32.mrb[0].mxu0
        %1328 = vmatprep.mubr.f32.mxu0 0.0
        %1329 = vmatmul.mubr.f32.gmra.mrb[0].mxu0 %v1196
        %v1330 = vpop.f32.mrb[0].mxu0
        %v1331 = vadd.f32 0.0, %v1330
        %v1332 = vpop.f32.mrb[0].mxu0
        %1333 = vmatprep.mubr.f32.mxu0 0.0
        %1334 = vmatmul.mubr.f32.gmra.mrb[0].mxu0 %v1197
        %v1335 = vpop.f32.mrb[0].mxu0
        %v1336 = vadd.f32 0.0, %v1335
        %v1337 = vpop.f32.mrb[0].mxu0
        %1338 = vmatprep.mubr.f32.mxu0 0.0
        %1339 = vmatmul.mubr.f32.gmra.mrb[0].mxu0 %v1198
        %v1340 = vpop.f32.mrb[0].mxu0
        %v1341 = vadd.f32 0.0, %v1340
        %v1342 = vpop.f32.mrb[0].mxu0
        %1343 = vdwg.mxu0
        %v1344 = vld [vmem:[#allocation8] sm:$0xff]
        %v1345 = vld [vmem:[#allocation8 + $0x8] sm:$0xff]
        %v1346 = vld [vmem:[#allocation8 + $0x10] sm:$0xff]
        %v1347 = vld [vmem:[#allocation8 + $0x18] sm:$0xff]
        %1348 = vrot.lane.b32.xlu0 %v526, 96
        %v1349 = vpop.permute.xlu0 %1348
        %1350 = vrot.lane.b32.xlu0 %v532, 96
        %v1351 = vpop.permute.xlu0 %1350
        %1352 = vrot.lane.b32.xlu0 %v538, 96
        %v1353 = vpop.permute.xlu0 %1352
        %1354 = vrot.lane.b32.xlu0 %v544, 96
        %v1355 = vpop.permute.xlu0 %1354
        %1356 = vrot.lane.b32.xlu0 %v550, 96
        %v1357 = vpop.permute.xlu0 %1356
        %1358 = vrot.lane.b32.xlu0 %v556, 96
        %v1359 = vpop.permute.xlu0 %1358
        %1360 = vrot.lane.b32.xlu0 %v562, 96
        %v1361 = vpop.permute.xlu0 %1360
        %1362 = vrot.lane.b32.xlu0 %v568, 96
        %v1363 = vpop.permute.xlu0 %1362
        %1364 = vrot.lane.b32.xlu0 %v574, 96
        %v1365 = vpop.permute.xlu0 %1364
        %1366 = vrot.lane.b32.xlu0 %v580, 96
        %v1367 = vpop.permute.xlu0 %1366
        %1368 = vrot.lane.b32.xlu0 %v586, 96
        %v1369 = vpop.permute.xlu0 %1368
        %1370 = vrot.lane.b32.xlu0 %v592, 96
        %v1371 = vpop.permute.xlu0 %1370
        %1372 = vrot.lane.b32.xlu0 %v598, 96
        %v1373 = vpop.permute.xlu0 %1372
        %1374 = vrot.lane.b32.xlu0 %v604, 96
        %v1375 = vpop.permute.xlu0 %1374
        %1376 = vrot.lane.b32.xlu0 %v610, 96
        %v1377 = vpop.permute.xlu0 %1376
        %1378 = vrot.lane.b32.xlu0 %v616, 96
        %v1379 = vpop.permute.xlu0 %1378
        %1380 = vrot.lane.b32.xlu0 %v528, 96
        %v1381 = vpop.permute.xlu0 %1380
        %1382 = vrot.lane.b32.xlu0 %v534, 96
        %v1383 = vpop.permute.xlu0 %1382
        %1384 = vrot.lane.b32.xlu0 %v540, 96
        %v1385 = vpop.permute.xlu0 %1384
        %1386 = vrot.lane.b32.xlu0 %v546, 96
        %v1387 = vpop.permute.xlu0 %1386
        %1388 = vrot.lane.b32.xlu0 %v552, 96
        %v1389 = vpop.permute.xlu0 %1388
        %1390 = vrot.lane.b32.xlu0 %v558, 96
        %v1391 = vpop.permute.xlu0 %1390
        %1392 = vrot.lane.b32.xlu0 %v564, 96
        %v1393 = vpop.permute.xlu0 %1392
        %1394 = vrot.lane.b32.xlu0 %v570, 96
        %v1395 = vpop.permute.xlu0 %1394
        %1396 = vrot.lane.b32.xlu0 %v576, 96
        %v1397 = vpop.permute.xlu0 %1396
        %1398 = vrot.lane.b32.xlu0 %v582, 96
        %v1399 = vpop.permute.xlu0 %1398
        %1400 = vrot.lane.b32.xlu0 %v588, 96
        %v1401 = vpop.permute.xlu0 %1400
        %1402 = vrot.lane.b32.xlu0 %v594, 96
        %v1403 = vpop.permute.xlu0 %1402
        %1404 = vrot.lane.b32.xlu0 %v600, 96
        %v1405 = vpop.permute.xlu0 %1404
        %1406 = vrot.lane.b32.xlu0 %v606, 96
        %v1407 = vpop.permute.xlu0 %1406
        %1408 = vrot.lane.b32.xlu0 %v612, 96
        %v1409 = vpop.permute.xlu0 %1408
        %1410 = vrot.lane.b32.xlu0 %v618, 96
        %v1411 = vpop.permute.xlu0 %1410
        %v1412 = vsel %vm765, %v1349, 0
        %v1414 = vsel %vm765, %v1351, 0
        %v1416 = vsel %vm765, %v1353, 0
        %v1418 = vsel %vm765, %v1355, 0
        %v1420 = vsel %vm765, %v1357, 0
        %v1422 = vsel %vm765, %v1359, 0
        %v1424 = vsel %vm765, %v1361, 0
        %v1426 = vsel %vm765, %v1363, 0
        %v1428 = vsel %vm765, %v1365, 0
        %v1430 = vsel %vm765, %v1367, 0
        %v1432 = vsel %vm765, %v1369, 0
        %v1434 = vsel %vm765, %v1371, 0
        %v1436 = vsel %vm765, %v1373, 0
        %v1438 = vsel %vm765, %v1375, 0
        %v1440 = vsel %vm765, %v1377, 0
        %v1442 = vsel %vm765, %v1379, 0
        %v1444 = vsel %vm765, %v1381, 0
        %v1446 = vsel %vm765, %v1383, 0
        %v1448 = vsel %vm765, %v1385, 0
        %v1450 = vsel %vm765, %v1387, 0
        %v1452 = vsel %vm765, %v1389, 0
        %v1454 = vsel %vm765, %v1391, 0
        %v1456 = vsel %vm765, %v1393, 0
        %v1458 = vsel %vm765, %v1395, 0
        %v1460 = vsel %vm765, %v1397, 0
        %v1462 = vsel %vm765, %v1399, 0
        %v1464 = vsel %vm765, %v1401, 0
        %v1466 = vsel %vm765, %v1403, 0
        %v1468 = vsel %vm765, %v1405, 0
        %v1470 = vsel %vm765, %v1407, 0
        %v1472 = vsel %vm765, %v1409, 0
        %v1474 = vsel %vm765, %v1411, 0
        %1476 = vmatprep.subr.mxu0 0.0
        %1477 = vmatpush1.xpose.msra.mxu0 %v1444
        %1478 = vmatprep.subr.mxu0 0.0
        %1479 = vmatpush1.xpose.msra.mxu0 %v1446
        %1480 = vmatprep.subr.mxu0 0.0
        %1481 = vmatpush1.xpose.msra.mxu0 %v1448
        %1482 = vmatprep.subr.mxu0 0.0
        %1483 = vmatpush1.xpose.msra.mxu0 %v1450
        %1484 = vmatprep.subr.mxu0 0.0
        %1485 = vmatpush1.xpose.msra.mxu0 %v1452
        %1486 = vmatprep.subr.mxu0 0.0
        %1487 = vmatpush1.xpose.msra.mxu0 %v1454
        %1488 = vmatprep.subr.mxu0 0.0
        %1489 = vmatpush1.xpose.msra.mxu0 %v1456
        %1490 = vmatprep.subr.mxu0 0.0
        %1491 = vmatpush1.xpose.msra.mxu0 %v1458
        %1492 = vmatprep.subr.mxu0 0.0
        %1493 = vmatpush1.xpose.msra.mxu0 %v1460
        %1494 = vmatprep.subr.mxu0 0.0
        %1495 = vmatpush1.xpose.msra.mxu0 %v1462
        %1496 = vmatprep.subr.mxu0 0.0
        %1497 = vmatpush1.xpose.msra.mxu0 %v1464
        %1498 = vmatprep.subr.mxu0 0.0
        %1499 = vmatpush1.xpose.msra.mxu0 %v1466
        %1500 = vmatprep.subr.mxu0 0.0
        %1501 = vmatpush1.xpose.msra.mxu0 %v1468
        %1502 = vmatprep.subr.mxu0 0.0
        %1503 = vmatpush1.xpose.msra.mxu0 %v1470
        %1504 = vmatprep.subr.mxu0 0.0
        %1505 = vmatpush1.xpose.msra.mxu0 %v1472
        %1506 = vmatprep.subr.mxu0 0.0
        %1507 = vmatpush1.xpose.msra.mxu0 %v1474
        %1508 = vmatprep.subr.mxu0 0.0
        %1509 = vmatpush1.xpose.msra.mxu0 0.0
        %1510 = vmatprep.subr.mxu0 0.0
        %1511 = vmatpush1.xpose.msra.mxu0 0.0
        %1512 = vmatprep.subr.mxu0 0.0
        %1513 = vmatpush1.xpose.msra.mxu0 0.0
        %1514 = vmatprep.subr.mxu0 0.0
        %1515 = vmatpush1.xpose.msra.mxu0 0.0
        %1516 = vmatprep.subr.mxu0 0.0
        %1517 = vmatpush1.xpose.msra.mxu0 0.0
        %1518 = vmatprep.subr.mxu0 0.0
        %1519 = vmatpush1.xpose.msra.mxu0 0.0
        %1520 = vmatprep.subr.mxu0 0.0
        %1521 = vmatpush1.xpose.msra.mxu0 0.0
        %1522 = vmatprep.subr.mxu0 0.0
        %1523 = vmatpush1.xpose.msra.mxu0 0.0
        %1524 = vmatprep.subr.mxu0 0.0
        %1525 = vmatpush1.xpose.msra.mxu0 0.0
        %1526 = vmatprep.subr.mxu0 0.0
        %1527 = vmatpush1.xpose.msra.mxu0 0.0
        %1528 = vmatprep.subr.mxu0 0.0
        %1529 = vmatpush1.xpose.msra.mxu0 0.0
        %1530 = vmatprep.subr.mxu0 0.0
        %1531 = vmatpush1.xpose.msra.mxu0 0.0
        %1532 = vmatprep.subr.mxu0 0.0
        %1533 = vmatpush1.xpose.msra.mxu0 0.0
        %1534 = vmatprep.subr.mxu0 0.0
        %1535 = vmatpush1.xpose.msra.mxu0 0.0
        %1536 = vmatprep.subr.mxu0 0.0
        %1537 = vmatpush1.xpose.msra.mxu0 0.0
        %1538 = vmatprep.subr.mxu0 0.0
        %1539 = vmatpush1.xpose.msra.mxu0 0.0
        %1540 = vmatprep.mubr.f32.mxu0 0.0
        %1541 = vmatmul.mubr.f32.gmra.mrb[0].mxu0 %v1412
        %v1542 = vpop.f32.mrb[0].mxu0
        %v1543 = vadd.f32 0.0, %v1542
        %v1544 = vpop.f32.mrb[0].mxu0
        %1545 = vmatprep.mubr.f32.mxu0 0.0
        %1546 = vmatmul.mubr.f32.gmra.mrb[0].mxu0 %v1414
        %v1547 = vpop.f32.mrb[0].mxu0
        %v1548 = vadd.f32 0.0, %v1547
        %v1549 = vpop.f32.mrb[0].mxu0
        %1550 = vmatprep.mubr.f32.mxu0 0.0
        %1551 = vmatmul.mubr.f32.gmra.mrb[0].mxu0 %v1416
        %v1552 = vpop.f32.mrb[0].mxu0
        %v1553 = vadd.f32 0.0, %v1552
        %v1554 = vpop.f32.mrb[0].mxu0
        %1555 = vmatprep.mubr.f32.mxu0 0.0
        %1556 = vmatmul.mubr.f32.gmra.mrb[0].mxu0 %v1418
        %v1557 = vpop.f32.mrb[0].mxu0
        %v1558 = vadd.f32 0.0, %v1557
        %v1559 = vpop.f32.mrb[0].mxu0
        %1560 = vmatprep.mubr.f32.mxu0 0.0
        %1561 = vmatmul.mubr.f32.gmra.mrb[0].mxu0 %v1420
        %v1562 = vpop.f32.mrb[0].mxu0
        %v1563 = vadd.f32 0.0, %v1562
        %v1564 = vpop.f32.mrb[0].mxu0
        %1565 = vmatprep.mubr.f32.mxu0 0.0
        %1566 = vmatmul.mubr.f32.gmra.mrb[0].mxu0 %v1422
        %v1567 = vpop.f32.mrb[0].mxu0
        %v1568 = vadd.f32 0.0, %v1567
        %v1569 = vpop.f32.mrb[0].mxu0
        %1570 = vmatprep.mubr.f32.mxu0 0.0
        %1571 = vmatmul.mubr.f32.gmra.mrb[0].mxu0 %v1424
        %v1572 = vpop.f32.mrb[0].mxu0
        %v1573 = vadd.f32 0.0, %v1572
        %v1574 = vpop.f32.mrb[0].mxu0
        %1575 = vmatprep.mubr.f32.mxu0 0.0
        %1576 = vmatmul.mubr.f32.gmra.mrb[0].mxu0 %v1426
        %v1577 = vpop.f32.mrb[0].mxu0
        %v1578 = vadd.f32 0.0, %v1577
        %v1579 = vpop.f32.mrb[0].mxu0
        %1580 = vmatprep.mubr.f32.mxu0 0.0
        %1581 = vmatmul.mubr.f32.gmra.mrb[0].mxu0 %v1428
        %v1582 = vpop.f32.mrb[0].mxu0
        %v1583 = vadd.f32 0.0, %v1582
        %v1584 = vpop.f32.mrb[0].mxu0
        %1585 = vmatprep.mubr.f32.mxu0 0.0
        %1586 = vmatmul.mubr.f32.gmra.mrb[0].mxu0 %v1430
        %v1587 = vpop.f32.mrb[0].mxu0
        %v1588 = vadd.f32 0.0, %v1587
        %v1589 = vpop.f32.mrb[0].mxu0
        %1590 = vmatprep.mubr.f32.mxu0 0.0
        %1591 = vmatmul.mubr.f32.gmra.mrb[0].mxu0 %v1432
        %v1592 = vpop.f32.mrb[0].mxu0
        %v1593 = vadd.f32 0.0, %v1592
        %v1594 = vpop.f32.mrb[0].mxu0
        %1595 = vmatprep.mubr.f32.mxu0 0.0
        %1596 = vmatmul.mubr.f32.gmra.mrb[0].mxu0 %v1434
        %v1597 = vpop.f32.mrb[0].mxu0
        %v1598 = vadd.f32 0.0, %v1597
        %v1599 = vpop.f32.mrb[0].mxu0
        %1600 = vmatprep.mubr.f32.mxu0 0.0
        %1601 = vmatmul.mubr.f32.gmra.mrb[0].mxu0 %v1436
        %v1602 = vpop.f32.mrb[0].mxu0
        %v1603 = vadd.f32 0.0, %v1602
        %v1604 = vpop.f32.mrb[0].mxu0
        %1605 = vmatprep.mubr.f32.mxu0 0.0
        %1606 = vmatmul.mubr.f32.gmra.mrb[0].mxu0 %v1438
        %v1607 = vpop.f32.mrb[0].mxu0
        %v1608 = vadd.f32 0.0, %v1607
        %v1609 = vpop.f32.mrb[0].mxu0
        %1610 = vmatprep.mubr.f32.mxu0 0.0
        %1611 = vmatmul.mubr.f32.gmra.mrb[0].mxu0 %v1440
        %v1612 = vpop.f32.mrb[0].mxu0
        %v1613 = vadd.f32 0.0, %v1612
        %v1614 = vpop.f32.mrb[0].mxu0
        %1615 = vmatprep.mubr.f32.mxu0 0.0
        %1616 = vmatmul.mubr.f32.gmra.mrb[0].mxu0 %v1442
        %v1617 = vpop.f32.mrb[0].mxu0
        %v1618 = vadd.f32 0.0, %v1617
        %v1619 = vpop.f32.mrb[0].mxu0
        %1620 = vdwg.mxu0
        %1621 = vmax.xlane.f32.xlu0 %v1543
        %v1622 = vpop.xlane.xlu0 %1621
        %1623 = vmax.xlane.f32.xlu0 %v1548
        %v1624 = vpop.xlane.xlu0 %1623
        %1625 = vmax.xlane.f32.xlu0 %v1553
        %v1626 = vpop.xlane.xlu0 %1625
        %1627 = vmax.xlane.f32.xlu0 %v1558
        %v1628 = vpop.xlane.xlu0 %1627
        %1629 = vmax.xlane.f32.xlu0 %v1563
        %v1630 = vpop.xlane.xlu0 %1629
        %1631 = vmax.xlane.f32.xlu0 %v1568
        %v1632 = vpop.xlane.xlu0 %1631
        %1633 = vmax.xlane.f32.xlu0 %v1573
        %v1634 = vpop.xlane.xlu0 %1633
        %1635 = vmax.xlane.f32.xlu0 %v1578
        %v1636 = vpop.xlane.xlu0 %1635
        %1637 = vmax.xlane.f32.xlu0 %v1583
        %v1638 = vpop.xlane.xlu0 %1637
        %1639 = vmax.xlane.f32.xlu0 %v1588
        %v1640 = vpop.xlane.xlu0 %1639
        %1641 = vmax.xlane.f32.xlu0 %v1593
        %v1642 = vpop.xlane.xlu0 %1641
        %1643 = vmax.xlane.f32.xlu0 %v1598
        %v1644 = vpop.xlane.xlu0 %1643
        %1645 = vmax.xlane.f32.xlu0 %v1603
        %v1646 = vpop.xlane.xlu0 %1645
        %1647 = vmax.xlane.f32.xlu0 %v1608
        %v1648 = vpop.xlane.xlu0 %1647
        %1649 = vmax.xlane.f32.xlu0 %v1613
        %v1650 = vpop.xlane.xlu0 %1649
        %1651 = vmax.xlane.f32.xlu0 %v1618
        %v1652 = vpop.xlane.xlu0 %1651
        %v1653 = vsub.f32 %v1543, %v1622
        %v1654 = vsub.f32 %v1548, %v1624
        %v1655 = vsub.f32 %v1553, %v1626
        %v1656 = vsub.f32 %v1558, %v1628
        %v1657 = vsub.f32 %v1563, %v1630
        %v1658 = vsub.f32 %v1568, %v1632
        %v1659 = vsub.f32 %v1573, %v1634
        %v1660 = vsub.f32 %v1578, %v1636
        %v1661 = vsub.f32 %v1583, %v1638
        %v1662 = vsub.f32 %v1588, %v1640
        %v1663 = vsub.f32 %v1593, %v1642
        %v1664 = vsub.f32 %v1598, %v1644
        %v1665 = vsub.f32 %v1603, %v1646
        %v1666 = vsub.f32 %v1608, %v1648
        %v1667 = vsub.f32 %v1613, %v1650
        %v1668 = vsub.f32 %v1618, %v1652
        %v1669 = vmul.f32 %v1653, 1.442695
        %v1670 = vpow.pop %v1669
        %v1671 = vmul.f32 %v1654, 1.442695
        %v1672 = vpow.pop %v1671
        %v1673 = vmul.f32 %v1655, 1.442695
        %v1674 = vpow.pop %v1673
        %v1675 = vmul.f32 %v1656, 1.442695
        %v1676 = vpow.pop %v1675
        %v1677 = vmul.f32 %v1657, 1.442695
        %v1678 = vpow.pop %v1677
        %v1679 = vmul.f32 %v1658, 1.442695
        %v1680 = vpow.pop %v1679
        %v1681 = vmul.f32 %v1659, 1.442695
        %v1682 = vpow.pop %v1681
        %v1683 = vmul.f32 %v1660, 1.442695
        %v1684 = vpow.pop %v1683
        %v1685 = vmul.f32 %v1661, 1.442695
        %v1686 = vpow.pop %v1685
        %v1687 = vmul.f32 %v1662, 1.442695
        %v1688 = vpow.pop %v1687
        %v1689 = vmul.f32 %v1663, 1.442695
        %v1690 = vpow.pop %v1689
        %v1691 = vmul.f32 %v1664, 1.442695
        %v1692 = vpow.pop %v1691
        %v1693 = vmul.f32 %v1665, 1.442695
        %v1694 = vpow.pop %v1693
        %v1695 = vmul.f32 %v1666, 1.442695
        %v1696 = vpow.pop %v1695
        %v1697 = vmul.f32 %v1667, 1.442695
        %v1698 = vpow.pop %v1697
        %v1699 = vmul.f32 %v1668, 1.442695
        %v1700 = vpow.pop %v1699
        %1701 = vadd.xlane.f32.xlu0 %v1670
        %v1702 = vpop.xlane.xlu0 %1701
        %1703 = vadd.xlane.f32.xlu0 %v1672
        %v1704 = vpop.xlane.xlu0 %1703
        %1705 = vadd.xlane.f32.xlu0 %v1674
        %v1706 = vpop.xlane.xlu0 %1705
        %1707 = vadd.xlane.f32.xlu0 %v1676
        %v1708 = vpop.xlane.xlu0 %1707
        %1709 = vadd.xlane.f32.xlu0 %v1678
        %v1710 = vpop.xlane.xlu0 %1709
        %1711 = vadd.xlane.f32.xlu0 %v1680
        %v1712 = vpop.xlane.xlu0 %1711
        %1713 = vadd.xlane.f32.xlu0 %v1682
        %v1714 = vpop.xlane.xlu0 %1713
        %1715 = vadd.xlane.f32.xlu0 %v1684
        %v1716 = vpop.xlane.xlu0 %1715
        %1717 = vadd.xlane.f32.xlu0 %v1686
        %v1718 = vpop.xlane.xlu0 %1717
        %1719 = vadd.xlane.f32.xlu0 %v1688
        %v1720 = vpop.xlane.xlu0 %1719
        %1721 = vadd.xlane.f32.xlu0 %v1690
        %v1722 = vpop.xlane.xlu0 %1721
        %1723 = vadd.xlane.f32.xlu0 %v1692
        %v1724 = vpop.xlane.xlu0 %1723
        %1725 = vadd.xlane.f32.xlu0 %v1694
        %v1726 = vpop.xlane.xlu0 %1725
        %1727 = vadd.xlane.f32.xlu0 %v1696
        %v1728 = vpop.xlane.xlu0 %1727
        %1729 = vadd.xlane.f32.xlu0 %v1698
        %v1730 = vpop.xlane.xlu0 %1729
        %1731 = vadd.xlane.f32.xlu0 %v1700
        %v1732 = vpop.xlane.xlu0 %1731
        %v1733 = vrcp.pop %v1702
        %v1734 = vrcp.pop %v1704
        %v1735 = vrcp.pop %v1706
        %v1736 = vrcp.pop %v1708
        %v1737 = vrcp.pop %v1710
        %v1738 = vrcp.pop %v1712
        %v1739 = vrcp.pop %v1714
        %v1740 = vrcp.pop %v1716
        %v1741 = vrcp.pop %v1718
        %v1742 = vrcp.pop %v1720
        %v1743 = vrcp.pop %v1722
        %v1744 = vrcp.pop %v1724
        %v1745 = vrcp.pop %v1726
        %v1746 = vrcp.pop %v1728
        %v1747 = vrcp.pop %v1730
        %v1748 = vrcp.pop %v1732
        %v1749 = vmul.f32 %v1702, %v1733
        %v1750 = vmul.f32 %v1704, %v1734
        %v1751 = vmul.f32 %v1706, %v1735
        %v1752 = vmul.f32 %v1708, %v1736
        %v1753 = vmul.f32 %v1710, %v1737
        %v1754 = vmul.f32 %v1712, %v1738
        %v1755 = vmul.f32 %v1714, %v1739
        %v1756 = vmul.f32 %v1716, %v1740
        %v1757 = vmul.f32 %v1718, %v1741
        %v1758 = vmul.f32 %v1720, %v1742
        %v1759 = vmul.f32 %v1722, %v1743
        %v1760 = vmul.f32 %v1724, %v1744
        %v1761 = vmul.f32 %v1726, %v1745
        %v1762 = vmul.f32 %v1728, %v1746
        %v1763 = vmul.f32 %v1730, %v1747
        %v1764 = vmul.f32 %v1732, %v1748
        %v1765 = vsub.f32 2.0, %v1749
        %v1766 = vsub.f32 2.0, %v1750
        %v1767 = vsub.f32 2.0, %v1751
        %v1768 = vsub.f32 2.0, %v1752
        %v1769 = vsub.f32 2.0, %v1753
        %v1770 = vsub.f32 2.0, %v1754
        %v1771 = vsub.f32 2.0, %v1755
        %v1772 = vsub.f32 2.0, %v1756
        %v1773 = vsub.f32 2.0, %v1757
        %v1774 = vsub.f32 2.0, %v1758
        %v1775 = vsub.f32 2.0, %v1759
        %v1776 = vsub.f32 2.0, %v1760
        %v1777 = vsub.f32 2.0, %v1761
        %v1778 = vsub.f32 2.0, %v1762
        %v1779 = vsub.f32 2.0, %v1763
        %v1780 = vsub.f32 2.0, %v1764
        %v1781 = vmul.f32 %v1733, %v1765
        %v1782 = vmul.f32 %v1734, %v1766
        %v1783 = vmul.f32 %v1735, %v1767
        %v1784 = vmul.f32 %v1736, %v1768
        %v1785 = vmul.f32 %v1737, %v1769
        %v1786 = vmul.f32 %v1738, %v1770
        %v1787 = vmul.f32 %v1739, %v1771
        %v1788 = vmul.f32 %v1740, %v1772
        %v1789 = vmul.f32 %v1741, %v1773
        %v1790 = vmul.f32 %v1742, %v1774
        %v1791 = vmul.f32 %v1743, %v1775
        %v1792 = vmul.f32 %v1744, %v1776
        %v1793 = vmul.f32 %v1745, %v1777
        %v1794 = vmul.f32 %v1746, %v1778
        %v1795 = vmul.f32 %v1747, %v1779
        %v1796 = vmul.f32 %v1748, %v1780
        %v1797 = vmul.f32 %v1670, %v1781
        %v1798 = vmul.f32 %v1672, %v1782
        %v1799 = vmul.f32 %v1674, %v1783
        %v1800 = vmul.f32 %v1676, %v1784
        %v1801 = vmul.f32 %v1678, %v1785
        %v1802 = vmul.f32 %v1680, %v1786
        %v1803 = vmul.f32 %v1682, %v1787
        %v1804 = vmul.f32 %v1684, %v1788
        %v1805 = vmul.f32 %v1686, %v1789
        %v1806 = vmul.f32 %v1688, %v1790
        %v1807 = vmul.f32 %v1690, %v1791
        %v1808 = vmul.f32 %v1692, %v1792
        %v1809 = vmul.f32 %v1694, %v1793
        %v1810 = vmul.f32 %v1696, %v1794
        %v1811 = vmul.f32 %v1698, %v1795
        %v1812 = vmul.f32 %v1700, %v1796
        %1829 = vrot.lane.b32.xlu0 %v687, 96
        %v1830 = vpop.permute.xlu0 %1829
        %1831 = vrot.lane.b32.xlu0 %v692, 96
        %v1832 = vpop.permute.xlu0 %1831
        %1833 = vrot.lane.b32.xlu0 %v697, 96
        %v1834 = vpop.permute.xlu0 %1833
        %1835 = vrot.lane.b32.xlu0 %v702, 96
        %v1836 = vpop.permute.xlu0 %1835
        %1837 = vrot.lane.b32.xlu0 %v707, 96
        %v1838 = vpop.permute.xlu0 %1837
        %1839 = vrot.lane.b32.xlu0 %v712, 96
        %v1840 = vpop.permute.xlu0 %1839
        %1841 = vrot.lane.b32.xlu0 %v717, 96
        %v1842 = vpop.permute.xlu0 %1841
        %1843 = vrot.lane.b32.xlu0 %v722, 96
        %v1844 = vpop.permute.xlu0 %1843
        %1845 = vrot.lane.b32.xlu0 %v727, 96
        %v1846 = vpop.permute.xlu0 %1845
        %1847 = vrot.lane.b32.xlu0 %v732, 96
        %v1848 = vpop.permute.xlu0 %1847
        %1849 = vrot.lane.b32.xlu0 %v737, 96
        %v1850 = vpop.permute.xlu0 %1849
        %1851 = vrot.lane.b32.xlu0 %v742, 96
        %v1852 = vpop.permute.xlu0 %1851
        %1853 = vrot.lane.b32.xlu0 %v747, 96
        %v1854 = vpop.permute.xlu0 %1853
        %1855 = vrot.lane.b32.xlu0 %v752, 96
        %v1856 = vpop.permute.xlu0 %1855
        %1857 = vrot.lane.b32.xlu0 %v757, 96
        %v1858 = vpop.permute.xlu0 %1857
        %1859 = vrot.lane.b32.xlu0 %v762, 96
        %v1860 = vpop.permute.xlu0 %1859
        %1877 = vmatprep.subr.mxu0 0.0
        %1878 = vmatpush1.msra.mxu0 %v1830
        %1879 = vmatprep.subr.mxu0 0.0
        %1880 = vmatpush1.msra.mxu0 %v1832
        %1881 = vmatprep.subr.mxu0 0.0
        %1882 = vmatpush1.msra.mxu0 %v1834
        %1883 = vmatprep.subr.mxu0 0.0
        %1884 = vmatpush1.msra.mxu0 %v1836
        %1885 = vmatprep.subr.mxu0 0.0
        %1886 = vmatpush1.msra.mxu0 %v1838
        %1887 = vmatprep.subr.mxu0 0.0
        %1888 = vmatpush1.msra.mxu0 %v1840
        %1889 = vmatprep.subr.mxu0 0.0
        %1890 = vmatpush1.msra.mxu0 %v1842
        %1891 = vmatprep.subr.mxu0 0.0
        %1892 = vmatpush1.msra.mxu0 %v1844
        %1893 = vmatprep.subr.mxu0 0.0
        %1894 = vmatpush1.msra.mxu0 %v1846
        %1895 = vmatprep.subr.mxu0 0.0
        %1896 = vmatpush1.msra.mxu0 %v1848
        %1897 = vmatprep.subr.mxu0 0.0
        %1898 = vmatpush1.msra.mxu0 %v1850
        %1899 = vmatprep.subr.mxu0 0.0
        %1900 = vmatpush1.msra.mxu0 %v1852
        %1901 = vmatprep.subr.mxu0 0.0
        %1902 = vmatpush1.msra.mxu0 %v1854
        %1903 = vmatprep.subr.mxu0 0.0
        %1904 = vmatpush1.msra.mxu0 %v1856
        %1905 = vmatprep.subr.mxu0 0.0
        %1906 = vmatpush1.msra.mxu0 %v1858
        %1907 = vmatprep.subr.mxu0 0.0
        %1908 = vmatpush1.msra.mxu0 %v1860
        %1909 = vmatprep.subr.mxu0 0.0
        %1910 = vmatpush1.msra.mxu0 0.0
        %1911 = vmatprep.subr.mxu0 0.0
        %1912 = vmatpush1.msra.mxu0 0.0
        %1913 = vmatprep.subr.mxu0 0.0
        %1914 = vmatpush1.msra.mxu0 0.0
        %1915 = vmatprep.subr.mxu0 0.0
        %1916 = vmatpush1.msra.mxu0 0.0
        %1917 = vmatprep.subr.mxu0 0.0
        %1918 = vmatpush1.msra.mxu0 0.0
        %1919 = vmatprep.subr.mxu0 0.0
        %1920 = vmatpush1.msra.mxu0 0.0
        %1921 = vmatprep.subr.mxu0 0.0
        %1922 = vmatpush1.msra.mxu0 0.0
        %1923 = vmatprep.subr.mxu0 0.0
        %1924 = vmatpush1.msra.mxu0 0.0
        %1925 = vmatprep.subr.mxu0 0.0
        %1926 = vmatpush1.msra.mxu0 0.0
        %1927 = vmatprep.subr.mxu0 0.0
        %1928 = vmatpush1.msra.mxu0 0.0
        %1929 = vmatprep.subr.mxu0 0.0
        %1930 = vmatpush1.msra.mxu0 0.0
        %1931 = vmatprep.subr.mxu0 0.0
        %1932 = vmatpush1.msra.mxu0 0.0
        %1933 = vmatprep.subr.mxu0 0.0
        %1934 = vmatpush1.msra.mxu0 0.0
        %1935 = vmatprep.subr.mxu0 0.0
        %1936 = vmatpush1.msra.mxu0 0.0
        %1937 = vmatprep.subr.mxu0 0.0
        %1938 = vmatpush1.msra.mxu0 0.0
        %1939 = vmatprep.subr.mxu0 0.0
        %1940 = vmatpush1.msra.mxu0 0.0
        %1941 = vmatprep.mubr.f32.mxu0 0.0
        %1942 = vmatmul.mubr.f32.gmra.mrb[0].mxu0 %v1797
        %v1943 = vpop.f32.mrb[0].mxu0
        %v1944 = vadd.f32 0.0, %v1943
        %v1945 = vpop.f32.mrb[0].mxu0
        %1946 = vmatprep.mubr.f32.mxu0 0.0
        %1947 = vmatmul.mubr.f32.gmra.mrb[0].mxu0 %v1798
        %v1948 = vpop.f32.mrb[0].mxu0
        %v1949 = vadd.f32 0.0, %v1948
        %v1950 = vpop.f32.mrb[0].mxu0
        %1951 = vmatprep.mubr.f32.mxu0 0.0
        %1952 = vmatmul.mubr.f32.gmra.mrb[0].mxu0 %v1799
        %v1953 = vpop.f32.mrb[0].mxu0
        %v1954 = vadd.f32 0.0, %v1953
        %v1955 = vpop.f32.mrb[0].mxu0
        %1956 = vmatprep.mubr.f32.mxu0 0.0
        %1957 = vmatmul.mubr.f32.gmra.mrb[0].mxu0 %v1800
        %v1958 = vpop.f32.mrb[0].mxu0
        %v1959 = vadd.f32 0.0, %v1958
        %v1960 = vpop.f32.mrb[0].mxu0
        %1961 = vmatprep.mubr.f32.mxu0 0.0
        %1962 = vmatmul.mubr.f32.gmra.mrb[0].mxu0 %v1801
        %v1963 = vpop.f32.mrb[0].mxu0
        %v1964 = vadd.f32 0.0, %v1963
        %v1965 = vpop.f32.mrb[0].mxu0
        %1966 = vmatprep.mubr.f32.mxu0 0.0
        %1967 = vmatmul.mubr.f32.gmra.mrb[0].mxu0 %v1802
        %v1968 = vpop.f32.mrb[0].mxu0
        %v1969 = vadd.f32 0.0, %v1968
        %v1970 = vpop.f32.mrb[0].mxu0
        %1971 = vmatprep.mubr.f32.mxu0 0.0
        %1972 = vmatmul.mubr.f32.gmra.mrb[0].mxu0 %v1803
        %v1973 = vpop.f32.mrb[0].mxu0
        %v1974 = vadd.f32 0.0, %v1973
        %v1975 = vpop.f32.mrb[0].mxu0
        %1976 = vmatprep.mubr.f32.mxu0 0.0
        %1977 = vmatmul.mubr.f32.gmra.mrb[0].mxu0 %v1804
        %v1978 = vpop.f32.mrb[0].mxu0
        %v1979 = vadd.f32 0.0, %v1978
        %v1980 = vpop.f32.mrb[0].mxu0
        %1981 = vmatprep.mubr.f32.mxu0 0.0
        %1982 = vmatmul.mubr.f32.gmra.mrb[0].mxu0 %v1805
        %v1983 = vpop.f32.mrb[0].mxu0
        %v1984 = vadd.f32 0.0, %v1983
        %v1985 = vpop.f32.mrb[0].mxu0
        %1986 = vmatprep.mubr.f32.mxu0 0.0
        %1987 = vmatmul.mubr.f32.gmra.mrb[0].mxu0 %v1806
        %v1988 = vpop.f32.mrb[0].mxu0
        %v1989 = vadd.f32 0.0, %v1988
        %v1990 = vpop.f32.mrb[0].mxu0
        %1991 = vmatprep.mubr.f32.mxu0 0.0
        %1992 = vmatmul.mubr.f32.gmra.mrb[0].mxu0 %v1807
        %v1993 = vpop.f32.mrb[0].mxu0
        %v1994 = vadd.f32 0.0, %v1993
        %v1995 = vpop.f32.mrb[0].mxu0
        %1996 = vmatprep.mubr.f32.mxu0 0.0
        %1997 = vmatmul.mubr.f32.gmra.mrb[0].mxu0 %v1808
        %v1998 = vpop.f32.mrb[0].mxu0
        %v1999 = vadd.f32 0.0, %v1998
        %v2000 = vpop.f32.mrb[0].mxu0
        %2001 = vmatprep.mubr.f32.mxu0 0.0
        %2002 = vmatmul.mubr.f32.gmra.mrb[0].mxu0 %v1809
        %v2003 = vpop.f32.mrb[0].mxu0
        %v2004 = vadd.f32 0.0, %v2003
        %v2005 = vpop.f32.mrb[0].mxu0
        %2006 = vmatprep.mubr.f32.mxu0 0.0
        %2007 = vmatmul.mubr.f32.gmra.mrb[0].mxu0 %v1810
        %v2008 = vpop.f32.mrb[0].mxu0
        %v2009 = vadd.f32 0.0, %v2008
        %v2010 = vpop.f32.mrb[0].mxu0
        %2011 = vmatprep.mubr.f32.mxu0 0.0
        %2012 = vmatmul.mubr.f32.gmra.mrb[0].mxu0 %v1811
        %v2013 = vpop.f32.mrb[0].mxu0
        %v2014 = vadd.f32 0.0, %v2013
        %v2015 = vpop.f32.mrb[0].mxu0
        %2016 = vmatprep.mubr.f32.mxu0 0.0
        %2017 = vmatmul.mubr.f32.gmra.mrb[0].mxu0 %v1812
        %v2018 = vpop.f32.mrb[0].mxu0
        %v2019 = vadd.f32 0.0, %v2018
        %v2020 = vpop.f32.mrb[0].mxu0
        %2021 = vdwg.mxu0
        %s2022 = scalar_lea.vmem [#allocation8], 32
        %v2023 = vld [vmem:[%s2022] sm:$0xff]
        %v2024 = vld [vmem:[%s2022 + $0x8] sm:$0xff]
        %v2025 = vld [vmem:[%s2022 + $0x10] sm:$0xff]
        %v2026 = vld [vmem:[%s2022 + $0x18] sm:$0xff]
        %v2028 = vsel %vm765, %v1944, 0
        %v2031 = vsel %vm765, %v1949, 0
        %v2034 = vsel %vm765, %v1954, 0
        %v2037 = vsel %vm765, %v1959, 0
        %v2040 = vsel %vm765, %v1964, 0
        %v2043 = vsel %vm765, %v1969, 0
        %v2046 = vsel %vm765, %v1974, 0
        %v2049 = vsel %vm765, %v1979, 0
        %v2052 = vsel %vm765, %v1984, 0
        %v2055 = vsel %vm765, %v1989, 0
        %v2058 = vsel %vm765, %v1994, 0
        %v2061 = vsel %vm765, %v1999, 0
        %v2064 = vsel %vm765, %v2004, 0
        %v2067 = vsel %vm765, %v2009, 0
        %v2070 = vsel %vm765, %v2014, 0
        %v2073 = vsel %vm765, %v2019, 0
        %2075 = vmatprep.subr.mxu0 0.0
        %2076 = vmatpush1.msra.mxu0 %v2023
        %2077 = vmatprep.subr.mxu0 0.0
        %2078 = vmatpush1.msra.mxu0 %v2024
        %2079 = vmatprep.subr.mxu0 0.0
        %2080 = vmatpush1.msra.mxu0 %v2025
        %2081 = vmatprep.subr.mxu0 0.0
        %2082 = vmatpush1.msra.mxu0 %v2026
        %2083 = vmatprep.subr.mxu0 0.0
        %2084 = vmatpush1.msra.mxu0 0.0
        %2085 = vmatprep.subr.mxu0 0.0
        %2086 = vmatpush1.msra.mxu0 0.0
        %2087 = vmatprep.subr.mxu0 0.0
        %2088 = vmatpush1.msra.mxu0 0.0
        %2089 = vmatprep.subr.mxu0 0.0
        %2090 = vmatpush1.msra.mxu0 0.0
        %2091 = vmatprep.subr.mxu0 0.0
        %2092 = vmatpush1.msra.mxu0 0.0
        %2093 = vmatprep.subr.mxu0 0.0
        %2094 = vmatpush1.msra.mxu0 0.0
        %2095 = vmatprep.subr.mxu0 0.0
        %2096 = vmatpush1.msra.mxu0 0.0
        %2097 = vmatprep.subr.mxu0 0.0
        %2098 = vmatpush1.msra.mxu0 0.0
        %2099 = vmatprep.subr.mxu0 0.0
        %2100 = vmatpush1.msra.mxu0 0.0
        %2101 = vmatprep.subr.mxu0 0.0
        %2102 = vmatpush1.msra.mxu0 0.0
        %2103 = vmatprep.subr.mxu0 0.0
        %2104 = vmatpush1.msra.mxu0 0.0
        %2105 = vmatprep.subr.mxu0 0.0
        %2106 = vmatpush1.msra.mxu0 0.0
        %2107 = vmatprep.subr.mxu0 0.0
        %2108 = vmatpush1.msra.mxu0 0.0
        %2109 = vmatprep.subr.mxu0 0.0
        %2110 = vmatpush1.msra.mxu0 0.0
        %2111 = vmatprep.subr.mxu0 0.0
        %2112 = vmatpush1.msra.mxu0 0.0
        %2113 = vmatprep.subr.mxu0 0.0
        %2114 = vmatpush1.msra.mxu0 0.0
        %2115 = vmatprep.subr.mxu0 0.0
        %2116 = vmatpush1.msra.mxu0 0.0
        %2117 = vmatprep.subr.mxu0 0.0
        %2118 = vmatpush1.msra.mxu0 0.0
        %2119 = vmatprep.subr.mxu0 0.0
        %2120 = vmatpush1.msra.mxu0 0.0
        %2121 = vmatprep.subr.mxu0 0.0
        %2122 = vmatpush1.msra.mxu0 0.0
        %2123 = vmatprep.subr.mxu0 0.0
        %2124 = vmatpush1.msra.mxu0 0.0
        %2125 = vmatprep.subr.mxu0 0.0
        %2126 = vmatpush1.msra.mxu0 0.0
        %2127 = vmatprep.subr.mxu0 0.0
        %2128 = vmatpush1.msra.mxu0 0.0
        %2129 = vmatprep.subr.mxu0 0.0
        %2130 = vmatpush1.msra.mxu0 0.0
        %2131 = vmatprep.subr.mxu0 0.0
        %2132 = vmatpush1.msra.mxu0 0.0
        %2133 = vmatprep.subr.mxu0 0.0
        %2134 = vmatpush1.msra.mxu0 0.0
        %2135 = vmatprep.subr.mxu0 0.0
        %2136 = vmatpush1.msra.mxu0 0.0
        %2137 = vmatprep.subr.mxu0 0.0
        %2138 = vmatpush1.msra.mxu0 0.0
        %2139 = vmatprep.mubr.f32.mxu0 0.0
        %2140 = vmatmul.mubr.f32.gmra.mrb[0].mxu0 %v2028
        %v2141 = vpop.f32.mrb[0].mxu0
        %v2142 = vadd.f32 0.0, %v2141
        %v2143 = vpop.f32.mrb[0].mxu0
        %2144 = vmatprep.mubr.f32.mxu0 0.0
        %2145 = vmatmul.mubr.f32.gmra.mrb[0].mxu0 %v2031
        %v2146 = vpop.f32.mrb[0].mxu0
        %v2147 = vadd.f32 0.0, %v2146
        %v2148 = vpop.f32.mrb[0].mxu0
        %2149 = vmatprep.mubr.f32.mxu0 0.0
        %2150 = vmatmul.mubr.f32.gmra.mrb[0].mxu0 %v2034
        %v2151 = vpop.f32.mrb[0].mxu0
        %v2152 = vadd.f32 0.0, %v2151
        %v2153 = vpop.f32.mrb[0].mxu0
        %2154 = vmatprep.mubr.f32.mxu0 0.0
        %2155 = vmatmul.mubr.f32.gmra.mrb[0].mxu0 %v2037
        %v2156 = vpop.f32.mrb[0].mxu0
        %v2157 = vadd.f32 0.0, %v2156
        %v2158 = vpop.f32.mrb[0].mxu0
        %2159 = vmatprep.mubr.f32.mxu0 0.0
        %2160 = vmatmul.mubr.f32.gmra.mrb[0].mxu0 %v2040
        %v2161 = vpop.f32.mrb[0].mxu0
        %v2162 = vadd.f32 0.0, %v2161
        %v2163 = vpop.f32.mrb[0].mxu0
        %2164 = vmatprep.mubr.f32.mxu0 0.0
        %2165 = vmatmul.mubr.f32.gmra.mrb[0].mxu0 %v2043
        %v2166 = vpop.f32.mrb[0].mxu0
        %v2167 = vadd.f32 0.0, %v2166
        %v2168 = vpop.f32.mrb[0].mxu0
        %2169 = vmatprep.mubr.f32.mxu0 0.0
        %2170 = vmatmul.mubr.f32.gmra.mrb[0].mxu0 %v2046
        %v2171 = vpop.f32.mrb[0].mxu0
        %v2172 = vadd.f32 0.0, %v2171
        %v2173 = vpop.f32.mrb[0].mxu0
        %2174 = vmatprep.mubr.f32.mxu0 0.0
        %2175 = vmatmul.mubr.f32.gmra.mrb[0].mxu0 %v2049
        %v2176 = vpop.f32.mrb[0].mxu0
        %v2177 = vadd.f32 0.0, %v2176
        %v2178 = vpop.f32.mrb[0].mxu0
        %2179 = vmatprep.mubr.f32.mxu0 0.0
        %2180 = vmatmul.mubr.f32.gmra.mrb[0].mxu0 %v2052
        %v2181 = vpop.f32.mrb[0].mxu0
        %v2182 = vadd.f32 0.0, %v2181
        %v2183 = vpop.f32.mrb[0].mxu0
        %2184 = vmatprep.mubr.f32.mxu0 0.0
        %2185 = vmatmul.mubr.f32.gmra.mrb[0].mxu0 %v2055
        %v2186 = vpop.f32.mrb[0].mxu0
        %v2187 = vadd.f32 0.0, %v2186
        %v2188 = vpop.f32.mrb[0].mxu0
        %2189 = vmatprep.mubr.f32.mxu0 0.0
        %2190 = vmatmul.mubr.f32.gmra.mrb[0].mxu0 %v2058
        %v2191 = vpop.f32.mrb[0].mxu0
        %v2192 = vadd.f32 0.0, %v2191
        %v2193 = vpop.f32.mrb[0].mxu0
        %2194 = vmatprep.mubr.f32.mxu0 0.0
        %2195 = vmatmul.mubr.f32.gmra.mrb[0].mxu0 %v2061
        %v2196 = vpop.f32.mrb[0].mxu0
        %v2197 = vadd.f32 0.0, %v2196
        %v2198 = vpop.f32.mrb[0].mxu0
        %2199 = vmatprep.mubr.f32.mxu0 0.0
        %2200 = vmatmul.mubr.f32.gmra.mrb[0].mxu0 %v2064
        %v2201 = vpop.f32.mrb[0].mxu0
        %v2202 = vadd.f32 0.0, %v2201
        %v2203 = vpop.f32.mrb[0].mxu0
        %2204 = vmatprep.mubr.f32.mxu0 0.0
        %2205 = vmatmul.mubr.f32.gmra.mrb[0].mxu0 %v2067
        %v2206 = vpop.f32.mrb[0].mxu0
        %v2207 = vadd.f32 0.0, %v2206
        %v2208 = vpop.f32.mrb[0].mxu0
        %2209 = vmatprep.mubr.f32.mxu0 0.0
        %2210 = vmatmul.mubr.f32.gmra.mrb[0].mxu0 %v2070
        %v2211 = vpop.f32.mrb[0].mxu0
        %v2212 = vadd.f32 0.0, %v2211
        %v2213 = vpop.f32.mrb[0].mxu0
        %2214 = vmatprep.mubr.f32.mxu0 0.0
        %2215 = vmatmul.mubr.f32.gmra.mrb[0].mxu0 %v2073
        %v2216 = vpop.f32.mrb[0].mxu0
        %v2217 = vadd.f32 0.0, %v2216
        %v2218 = vpop.f32.mrb[0].mxu0
        %2219 = vdwg.mxu0
        %v2221 = vsel %vm765, %v1266, 0
        %v2224 = vsel %vm765, %v1271, 0
        %v2227 = vsel %vm765, %v1276, 0
        %v2230 = vsel %vm765, %v1281, 0
        %v2233 = vsel %vm765, %v1286, 0
        %v2236 = vsel %vm765, %v1291, 0
        %v2239 = vsel %vm765, %v1296, 0
        %v2242 = vsel %vm765, %v1301, 0
        %v2245 = vsel %vm765, %v1306, 0
        %v2248 = vsel %vm765, %v1311, 0
        %v2251 = vsel %vm765, %v1316, 0
        %v2254 = vsel %vm765, %v1321, 0
        %v2257 = vsel %vm765, %v1326, 0
        %v2260 = vsel %vm765, %v1331, 0
        %v2263 = vsel %vm765, %v1336, 0
        %v2266 = vsel %vm765, %v1341, 0
        %2268 = vmatprep.subr.mxu0 0.0
        %2269 = vmatpush1.msra.mxu0 %v1344
        %2270 = vmatprep.subr.mxu0 0.0
        %2271 = vmatpush1.msra.mxu0 %v1345
        %2272 = vmatprep.subr.mxu0 0.0
        %2273 = vmatpush1.msra.mxu0 %v1346
        %2274 = vmatprep.subr.mxu0 0.0
        %2275 = vmatpush1.msra.mxu0 %v1347
        %2276 = vmatprep.subr.mxu0 0.0
        %2277 = vmatpush1.msra.mxu0 0.0
        %2278 = vmatprep.subr.mxu0 0.0
        %2279 = vmatpush1.msra.mxu0 0.0
        %2280 = vmatprep.subr.mxu0 0.0
        %2281 = vmatpush1.msra.mxu0 0.0
        %2282 = vmatprep.subr.mxu0 0.0
        %2283 = vmatpush1.msra.mxu0 0.0
        %2284 = vmatprep.subr.mxu0 0.0
        %2285 = vmatpush1.msra.mxu0 0.0
        %2286 = vmatprep.subr.mxu0 0.0
        %2287 = vmatpush1.msra.mxu0 0.0
        %2288 = vmatprep.subr.mxu0 0.0
        %2289 = vmatpush1.msra.mxu0 0.0
        %2290 = vmatprep.subr.mxu0 0.0
        %2291 = vmatpush1.msra.mxu0 0.0
        %2292 = vmatprep.subr.mxu0 0.0
        %2293 = vmatpush1.msra.mxu0 0.0
        %2294 = vmatprep.subr.mxu0 0.0
        %2295 = vmatpush1.msra.mxu0 0.0
        %2296 = vmatprep.subr.mxu0 0.0
        %2297 = vmatpush1.msra.mxu0 0.0
        %2298 = vmatprep.subr.mxu0 0.0
        %2299 = vmatpush1.msra.mxu0 0.0
        %2300 = vmatprep.subr.mxu0 0.0
        %2301 = vmatpush1.msra.mxu0 0.0
        %2302 = vmatprep.subr.mxu0 0.0
        %2303 = vmatpush1.msra.mxu0 0.0
        %2304 = vmatprep.subr.mxu0 0.0
        %2305 = vmatpush1.msra.mxu0 0.0
        %2306 = vmatprep.subr.mxu0 0.0
        %2307 = vmatpush1.msra.mxu0 0.0
        %2308 = vmatprep.subr.mxu0 0.0
        %2309 = vmatpush1.msra.mxu0 0.0
        %2310 = vmatprep.subr.mxu0 0.0
        %2311 = vmatpush1.msra.mxu0 0.0
        %2312 = vmatprep.subr.mxu0 0.0
        %2313 = vmatpush1.msra.mxu0 0.0
        %2314 = vmatprep.subr.mxu0 0.0
        %2315 = vmatpush1.msra.mxu0 0.0
        %2316 = vmatprep.subr.mxu0 0.0
        %2317 = vmatpush1.msra.mxu0 0.0
        %2318 = vmatprep.subr.mxu0 0.0
        %2319 = vmatpush1.msra.mxu0 0.0
        %2320 = vmatprep.subr.mxu0 0.0
        %2321 = vmatpush1.msra.mxu0 0.0
        %2322 = vmatprep.subr.mxu0 0.0
        %2323 = vmatpush1.msra.mxu0 0.0
        %2324 = vmatprep.subr.mxu0 0.0
        %2325 = vmatpush1.msra.mxu0 0.0
        %2326 = vmatprep.subr.mxu0 0.0
        %2327 = vmatpush1.msra.mxu0 0.0
        %2328 = vmatprep.subr.mxu0 0.0
        %2329 = vmatpush1.msra.mxu0 0.0
        %2330 = vmatprep.subr.mxu0 0.0
        %2331 = vmatpush1.msra.mxu0 0.0
        %2332 = vmatprep.mubr.f32.mxu0 0.0
        %2333 = vmatmul.mubr.f32.gmra.mrb[0].mxu0 %v2221
        %v2334 = vpop.f32.mrb[0].mxu0
        %v2335 = vadd.f32 %v2142, %v2334
        %v2336 = vpop.f32.mrb[0].mxu0
        %2337 = vmatprep.mubr.f32.mxu0 0.0
        %2338 = vmatmul.mubr.f32.gmra.mrb[0].mxu0 %v2224
        %v2339 = vpop.f32.mrb[0].mxu0
        %v2340 = vadd.f32 %v2147, %v2339
        %v2341 = vpop.f32.mrb[0].mxu0
        %2342 = vmatprep.mubr.f32.mxu0 0.0
        %2343 = vmatmul.mubr.f32.gmra.mrb[0].mxu0 %v2227
        %v2344 = vpop.f32.mrb[0].mxu0
        %v2345 = vadd.f32 %v2152, %v2344
        %v2346 = vpop.f32.mrb[0].mxu0
        %2347 = vmatprep.mubr.f32.mxu0 0.0
        %2348 = vmatmul.mubr.f32.gmra.mrb[0].mxu0 %v2230
        %v2349 = vpop.f32.mrb[0].mxu0
        %v2350 = vadd.f32 %v2157, %v2349
        %v2351 = vpop.f32.mrb[0].mxu0
        %2352 = vmatprep.mubr.f32.mxu0 0.0
        %2353 = vmatmul.mubr.f32.gmra.mrb[0].mxu0 %v2233
        %v2354 = vpop.f32.mrb[0].mxu0
        %v2355 = vadd.f32 %v2162, %v2354
        %v2356 = vpop.f32.mrb[0].mxu0
        %2357 = vmatprep.mubr.f32.mxu0 0.0
        %2358 = vmatmul.mubr.f32.gmra.mrb[0].mxu0 %v2236
        %v2359 = vpop.f32.mrb[0].mxu0
        %v2360 = vadd.f32 %v2167, %v2359
        %v2361 = vpop.f32.mrb[0].mxu0
        %2362 = vmatprep.mubr.f32.mxu0 0.0
        %2363 = vmatmul.mubr.f32.gmra.mrb[0].mxu0 %v2239
        %v2364 = vpop.f32.mrb[0].mxu0
        %v2365 = vadd.f32 %v2172, %v2364
        %v2366 = vpop.f32.mrb[0].mxu0
        %2367 = vmatprep.mubr.f32.mxu0 0.0
        %2368 = vmatmul.mubr.f32.gmra.mrb[0].mxu0 %v2242
        %v2369 = vpop.f32.mrb[0].mxu0
        %v2370 = vadd.f32 %v2177, %v2369
        %v2371 = vpop.f32.mrb[0].mxu0
        %2372 = vmatprep.mubr.f32.mxu0 0.0
        %2373 = vmatmul.mubr.f32.gmra.mrb[0].mxu0 %v2245
        %v2374 = vpop.f32.mrb[0].mxu0
        %v2375 = vadd.f32 %v2182, %v2374
        %v2376 = vpop.f32.mrb[0].mxu0
        %2377 = vmatprep.mubr.f32.mxu0 0.0
        %2378 = vmatmul.mubr.f32.gmra.mrb[0].mxu0 %v2248
        %v2379 = vpop.f32.mrb[0].mxu0
        %v2380 = vadd.f32 %v2187, %v2379
        %v2381 = vpop.f32.mrb[0].mxu0
        %2382 = vmatprep.mubr.f32.mxu0 0.0
        %2383 = vmatmul.mubr.f32.gmra.mrb[0].mxu0 %v2251
        %v2384 = vpop.f32.mrb[0].mxu0
        %v2385 = vadd.f32 %v2192, %v2384
        %v2386 = vpop.f32.mrb[0].mxu0
        %2387 = vmatprep.mubr.f32.mxu0 0.0
        %2388 = vmatmul.mubr.f32.gmra.mrb[0].mxu0 %v2254
        %v2389 = vpop.f32.mrb[0].mxu0
        %v2390 = vadd.f32 %v2197, %v2389
        %v2391 = vpop.f32.mrb[0].mxu0
        %2392 = vmatprep.mubr.f32.mxu0 0.0
        %2393 = vmatmul.mubr.f32.gmra.mrb[0].mxu0 %v2257
        %v2394 = vpop.f32.mrb[0].mxu0
        %v2395 = vadd.f32 %v2202, %v2394
        %v2396 = vpop.f32.mrb[0].mxu0
        %2397 = vmatprep.mubr.f32.mxu0 0.0
        %2398 = vmatmul.mubr.f32.gmra.mrb[0].mxu0 %v2260
        %v2399 = vpop.f32.mrb[0].mxu0
        %v2400 = vadd.f32 %v2207, %v2399
        %v2401 = vpop.f32.mrb[0].mxu0
        %2402 = vmatprep.mubr.f32.mxu0 0.0
        %2403 = vmatmul.mubr.f32.gmra.mrb[0].mxu0 %v2263
        %v2404 = vpop.f32.mrb[0].mxu0
        %v2405 = vadd.f32 %v2212, %v2404
        %v2406 = vpop.f32.mrb[0].mxu0
        %2407 = vmatprep.mubr.f32.mxu0 0.0
        %2408 = vmatmul.mubr.f32.gmra.mrb[0].mxu0 %v2266
        %v2409 = vpop.f32.mrb[0].mxu0
        %v2410 = vadd.f32 %v2217, %v2409
        %v2411 = vpop.f32.mrb[0].mxu0
        %2412 = vdwg.mxu0
        %2413 = vrot.lane.b32.xlu0 %v526, 64
        %v2414 = vpop.permute.xlu0 %2413
        %2415 = vrot.lane.b32.xlu0 %v532, 64
        %v2416 = vpop.permute.xlu0 %2415
        %2417 = vrot.lane.b32.xlu0 %v538, 64
        %v2418 = vpop.permute.xlu0 %2417
        %2419 = vrot.lane.b32.xlu0 %v544, 64
        %v2420 = vpop.permute.xlu0 %2419
        %2421 = vrot.lane.b32.xlu0 %v550, 64
        %v2422 = vpop.permute.xlu0 %2421
        %2423 = vrot.lane.b32.xlu0 %v556, 64
        %v2424 = vpop.permute.xlu0 %2423
        %2425 = vrot.lane.b32.xlu0 %v562, 64
        %v2426 = vpop.permute.xlu0 %2425
        %2427 = vrot.lane.b32.xlu0 %v568, 64
        %v2428 = vpop.permute.xlu0 %2427
        %2429 = vrot.lane.b32.xlu0 %v574, 64
        %v2430 = vpop.permute.xlu0 %2429
        %2431 = vrot.lane.b32.xlu0 %v580, 64
        %v2432 = vpop.permute.xlu0 %2431
        %2433 = vrot.lane.b32.xlu0 %v586, 64
        %v2434 = vpop.permute.xlu0 %2433
        %2435 = vrot.lane.b32.xlu0 %v592, 64
        %v2436 = vpop.permute.xlu0 %2435
        %2437 = vrot.lane.b32.xlu0 %v598, 64
        %v2438 = vpop.permute.xlu0 %2437
        %2439 = vrot.lane.b32.xlu0 %v604, 64
        %v2440 = vpop.permute.xlu0 %2439
        %2441 = vrot.lane.b32.xlu0 %v610, 64
        %v2442 = vpop.permute.xlu0 %2441
        %2443 = vrot.lane.b32.xlu0 %v616, 64
        %v2444 = vpop.permute.xlu0 %2443
        %2445 = vrot.lane.b32.xlu0 %v528, 64
        %v2446 = vpop.permute.xlu0 %2445
        %2447 = vrot.lane.b32.xlu0 %v534, 64
        %v2448 = vpop.permute.xlu0 %2447
        %2449 = vrot.lane.b32.xlu0 %v540, 64
        %v2450 = vpop.permute.xlu0 %2449
        %2451 = vrot.lane.b32.xlu0 %v546, 64
        %v2452 = vpop.permute.xlu0 %2451
        %2453 = vrot.lane.b32.xlu0 %v552, 64
        %v2454 = vpop.permute.xlu0 %2453
        %2455 = vrot.lane.b32.xlu0 %v558, 64
        %v2456 = vpop.permute.xlu0 %2455
        %2457 = vrot.lane.b32.xlu0 %v564, 64
        %v2458 = vpop.permute.xlu0 %2457
        %2459 = vrot.lane.b32.xlu0 %v570, 64
        %v2460 = vpop.permute.xlu0 %2459
        %2461 = vrot.lane.b32.xlu0 %v576, 64
        %v2462 = vpop.permute.xlu0 %2461
        %2463 = vrot.lane.b32.xlu0 %v582, 64
        %v2464 = vpop.permute.xlu0 %2463
        %2465 = vrot.lane.b32.xlu0 %v588, 64
        %v2466 = vpop.permute.xlu0 %2465
        %2467 = vrot.lane.b32.xlu0 %v594, 64
        %v2468 = vpop.permute.xlu0 %2467
        %2469 = vrot.lane.b32.xlu0 %v600, 64
        %v2470 = vpop.permute.xlu0 %2469
        %2471 = vrot.lane.b32.xlu0 %v606, 64
        %v2472 = vpop.permute.xlu0 %2471
        %2473 = vrot.lane.b32.xlu0 %v612, 64
        %v2474 = vpop.permute.xlu0 %2473
        %2475 = vrot.lane.b32.xlu0 %v618, 64
        %v2476 = vpop.permute.xlu0 %2475
        %v2477 = vsel %vm765, %v2414, 0
        %v2479 = vsel %vm765, %v2416, 0
        %v2481 = vsel %vm765, %v2418, 0
        %v2483 = vsel %vm765, %v2420, 0
        %v2485 = vsel %vm765, %v2422, 0
        %v2487 = vsel %vm765, %v2424, 0
        %v2489 = vsel %vm765, %v2426, 0
        %v2491 = vsel %vm765, %v2428, 0
        %v2493 = vsel %vm765, %v2430, 0
        %v2495 = vsel %vm765, %v2432, 0
        %v2497 = vsel %vm765, %v2434, 0
        %v2499 = vsel %vm765, %v2436, 0
        %v2501 = vsel %vm765, %v2438, 0
        %v2503 = vsel %vm765, %v2440, 0
        %v2505 = vsel %vm765, %v2442, 0
        %v2507 = vsel %vm765, %v2444, 0
        %v2509 = vsel %vm765, %v2446, 0
        %v2511 = vsel %vm765, %v2448, 0
        %v2513 = vsel %vm765, %v2450, 0
        %v2515 = vsel %vm765, %v2452, 0
        %v2517 = vsel %vm765, %v2454, 0
        %v2519 = vsel %vm765, %v2456, 0
        %v2521 = vsel %vm765, %v2458, 0
        %v2523 = vsel %vm765, %v2460, 0
        %v2525 = vsel %vm765, %v2462, 0
        %v2527 = vsel %vm765, %v2464, 0
        %v2529 = vsel %vm765, %v2466, 0
        %v2531 = vsel %vm765, %v2468, 0
        %v2533 = vsel %vm765, %v2470, 0
        %v2535 = vsel %vm765, %v2472, 0
        %v2537 = vsel %vm765, %v2474, 0
        %v2539 = vsel %vm765, %v2476, 0
        %2541 = vmatprep.subr.mxu0 0.0
        %2542 = vmatpush1.xpose.msra.mxu0 %v2509
        %2543 = vmatprep.subr.mxu0 0.0
        %2544 = vmatpush1.xpose.msra.mxu0 %v2511
        %2545 = vmatprep.subr.mxu0 0.0
        %2546 = vmatpush1.xpose.msra.mxu0 %v2513
        %2547 = vmatprep.subr.mxu0 0.0
        %2548 = vmatpush1.xpose.msra.mxu0 %v2515
        %2549 = vmatprep.subr.mxu0 0.0
        %2550 = vmatpush1.xpose.msra.mxu0 %v2517
        %2551 = vmatprep.subr.mxu0 0.0
        %2552 = vmatpush1.xpose.msra.mxu0 %v2519
        %2553 = vmatprep.subr.mxu0 0.0
        %2554 = vmatpush1.xpose.msra.mxu0 %v2521
        %2555 = vmatprep.subr.mxu0 0.0
        %2556 = vmatpush1.xpose.msra.mxu0 %v2523
        %2557 = vmatprep.subr.mxu0 0.0
        %2558 = vmatpush1.xpose.msra.mxu0 %v2525
        %2559 = vmatprep.subr.mxu0 0.0
        %2560 = vmatpush1.xpose.msra.mxu0 %v2527
        %2561 = vmatprep.subr.mxu0 0.0
        %2562 = vmatpush1.xpose.msra.mxu0 %v2529
        %2563 = vmatprep.subr.mxu0 0.0
        %2564 = vmatpush1.xpose.msra.mxu0 %v2531
        %2565 = vmatprep.subr.mxu0 0.0
        %2566 = vmatpush1.xpose.msra.mxu0 %v2533
        %2567 = vmatprep.subr.mxu0 0.0
        %2568 = vmatpush1.xpose.msra.mxu0 %v2535
        %2569 = vmatprep.subr.mxu0 0.0
        %2570 = vmatpush1.xpose.msra.mxu0 %v2537
        %2571 = vmatprep.subr.mxu0 0.0
        %2572 = vmatpush1.xpose.msra.mxu0 %v2539
        %2573 = vmatprep.subr.mxu0 0.0
        %2574 = vmatpush1.xpose.msra.mxu0 0.0
        %2575 = vmatprep.subr.mxu0 0.0
        %2576 = vmatpush1.xpose.msra.mxu0 0.0
        %2577 = vmatprep.subr.mxu0 0.0
        %2578 = vmatpush1.xpose.msra.mxu0 0.0
        %2579 = vmatprep.subr.mxu0 0.0
        %2580 = vmatpush1.xpose.msra.mxu0 0.0
        %2581 = vmatprep.subr.mxu0 0.0
        %2582 = vmatpush1.xpose.msra.mxu0 0.0
        %2583 = vmatprep.subr.mxu0 0.0
        %2584 = vmatpush1.xpose.msra.mxu0 0.0
        %2585 = vmatprep.subr.mxu0 0.0
        %2586 = vmatpush1.xpose.msra.mxu0 0.0
        %2587 = vmatprep.subr.mxu0 0.0
        %2588 = vmatpush1.xpose.msra.mxu0 0.0
        %2589 = vmatprep.subr.mxu0 0.0
        %2590 = vmatpush1.xpose.msra.mxu0 0.0
        %2591 = vmatprep.subr.mxu0 0.0
        %2592 = vmatpush1.xpose.msra.mxu0 0.0
        %2593 = vmatprep.subr.mxu0 0.0
        %2594 = vmatpush1.xpose.msra.mxu0 0.0
        %2595 = vmatprep.subr.mxu0 0.0
        %2596 = vmatpush1.xpose.msra.mxu0 0.0
        %2597 = vmatprep.subr.mxu0 0.0
        %2598 = vmatpush1.xpose.msra.mxu0 0.0
        %2599 = vmatprep.subr.mxu0 0.0
        %2600 = vmatpush1.xpose.msra.mxu0 0.0
        %2601 = vmatprep.subr.mxu0 0.0
        %2602 = vmatpush1.xpose.msra.mxu0 0.0
        %2603 = vmatprep.subr.mxu0 0.0
        %2604 = vmatpush1.xpose.msra.mxu0 0.0
        %2605 = vmatprep.mubr.f32.mxu0 0.0
        %2606 = vmatmul.mubr.f32.gmra.mrb[0].mxu0 %v2477
        %v2607 = vpop.f32.mrb[0].mxu0
        %v2608 = vadd.f32 0.0, %v2607
        %v2609 = vpop.f32.mrb[0].mxu0
        %2610 = vmatprep.mubr.f32.mxu0 0.0
        %2611 = vmatmul.mubr.f32.gmra.mrb[0].mxu0 %v2479
        %v2612 = vpop.f32.mrb[0].mxu0
        %v2613 = vadd.f32 0.0, %v2612
        %v2614 = vpop.f32.mrb[0].mxu0
        %2615 = vmatprep.mubr.f32.mxu0 0.0
        %2616 = vmatmul.mubr.f32.gmra.mrb[0].mxu0 %v2481
        %v2617 = vpop.f32.mrb[0].mxu0
        %v2618 = vadd.f32 0.0, %v2617
        %v2619 = vpop.f32.mrb[0].mxu0
        %2620 = vmatprep.mubr.f32.mxu0 0.0
        %2621 = vmatmul.mubr.f32.gmra.mrb[0].mxu0 %v2483
        %v2622 = vpop.f32.mrb[0].mxu0
        %v2623 = vadd.f32 0.0, %v2622
        %v2624 = vpop.f32.mrb[0].mxu0
        %2625 = vmatprep.mubr.f32.mxu0 0.0
        %2626 = vmatmul.mubr.f32.gmra.mrb[0].mxu0 %v2485
        %v2627 = vpop.f32.mrb[0].mxu0
        %v2628 = vadd.f32 0.0, %v2627
        %v2629 = vpop.f32.mrb[0].mxu0
        %2630 = vmatprep.mubr.f32.mxu0 0.0
        %2631 = vmatmul.mubr.f32.gmra.mrb[0].mxu0 %v2487
        %v2632 = vpop.f32.mrb[0].mxu0
        %v2633 = vadd.f32 0.0, %v2632
        %v2634 = vpop.f32.mrb[0].mxu0
        %2635 = vmatprep.mubr.f32.mxu0 0.0
        %2636 = vmatmul.mubr.f32.gmra.mrb[0].mxu0 %v2489
        %v2637 = vpop.f32.mrb[0].mxu0
        %v2638 = vadd.f32 0.0, %v2637
        %v2639 = vpop.f32.mrb[0].mxu0
        %2640 = vmatprep.mubr.f32.mxu0 0.0
        %2641 = vmatmul.mubr.f32.gmra.mrb[0].mxu0 %v2491
        %v2642 = vpop.f32.mrb[0].mxu0
        %v2643 = vadd.f32 0.0, %v2642
        %v2644 = vpop.f32.mrb[0].mxu0
        %2645 = vmatprep.mubr.f32.mxu0 0.0
        %2646 = vmatmul.mubr.f32.gmra.mrb[0].mxu0 %v2493
        %v2647 = vpop.f32.mrb[0].mxu0
        %v2648 = vadd.f32 0.0, %v2647
        %v2649 = vpop.f32.mrb[0].mxu0
        %2650 = vmatprep.mubr.f32.mxu0 0.0
        %2651 = vmatmul.mubr.f32.gmra.mrb[0].mxu0 %v2495
        %v2652 = vpop.f32.mrb[0].mxu0
        %v2653 = vadd.f32 0.0, %v2652
        %v2654 = vpop.f32.mrb[0].mxu0
        %2655 = vmatprep.mubr.f32.mxu0 0.0
        %2656 = vmatmul.mubr.f32.gmra.mrb[0].mxu0 %v2497
        %v2657 = vpop.f32.mrb[0].mxu0
        %v2658 = vadd.f32 0.0, %v2657
        %v2659 = vpop.f32.mrb[0].mxu0
        %2660 = vmatprep.mubr.f32.mxu0 0.0
        %2661 = vmatmul.mubr.f32.gmra.mrb[0].mxu0 %v2499
        %v2662 = vpop.f32.mrb[0].mxu0
        %v2663 = vadd.f32 0.0, %v2662
        %v2664 = vpop.f32.mrb[0].mxu0
        %2665 = vmatprep.mubr.f32.mxu0 0.0
        %2666 = vmatmul.mubr.f32.gmra.mrb[0].mxu0 %v2501
        %v2667 = vpop.f32.mrb[0].mxu0
        %v2668 = vadd.f32 0.0, %v2667
        %v2669 = vpop.f32.mrb[0].mxu0
        %2670 = vmatprep.mubr.f32.mxu0 0.0
        %2671 = vmatmul.mubr.f32.gmra.mrb[0].mxu0 %v2503
        %v2672 = vpop.f32.mrb[0].mxu0
        %v2673 = vadd.f32 0.0, %v2672
        %v2674 = vpop.f32.mrb[0].mxu0
        %2675 = vmatprep.mubr.f32.mxu0 0.0
        %2676 = vmatmul.mubr.f32.gmra.mrb[0].mxu0 %v2505
        %v2677 = vpop.f32.mrb[0].mxu0
        %v2678 = vadd.f32 0.0, %v2677
        %v2679 = vpop.f32.mrb[0].mxu0
        %2680 = vmatprep.mubr.f32.mxu0 0.0
        %2681 = vmatmul.mubr.f32.gmra.mrb[0].mxu0 %v2507
        %v2682 = vpop.f32.mrb[0].mxu0
        %v2683 = vadd.f32 0.0, %v2682
        %v2684 = vpop.f32.mrb[0].mxu0
        %2685 = vdwg.mxu0
        %2686 = vmax.xlane.f32.xlu0 %v2608
        %v2687 = vpop.xlane.xlu0 %2686
        %2688 = vmax.xlane.f32.xlu0 %v2613
        %v2689 = vpop.xlane.xlu0 %2688
        %2690 = vmax.xlane.f32.xlu0 %v2618
        %v2691 = vpop.xlane.xlu0 %2690
        %2692 = vmax.xlane.f32.xlu0 %v2623
        %v2693 = vpop.xlane.xlu0 %2692
        %2694 = vmax.xlane.f32.xlu0 %v2628
        %v2695 = vpop.xlane.xlu0 %2694
        %2696 = vmax.xlane.f32.xlu0 %v2633
        %v2697 = vpop.xlane.xlu0 %2696
        %2698 = vmax.xlane.f32.xlu0 %v2638
        %v2699 = vpop.xlane.xlu0 %2698
        %2700 = vmax.xlane.f32.xlu0 %v2643
        %v2701 = vpop.xlane.xlu0 %2700
        %2702 = vmax.xlane.f32.xlu0 %v2648
        %v2703 = vpop.xlane.xlu0 %2702
        %2704 = vmax.xlane.f32.xlu0 %v2653
        %v2705 = vpop.xlane.xlu0 %2704
        %2706 = vmax.xlane.f32.xlu0 %v2658
        %v2707 = vpop.xlane.xlu0 %2706
        %2708 = vmax.xlane.f32.xlu0 %v2663
        %v2709 = vpop.xlane.xlu0 %2708
        %2710 = vmax.xlane.f32.xlu0 %v2668
        %v2711 = vpop.xlane.xlu0 %2710
        %2712 = vmax.xlane.f32.xlu0 %v2673
        %v2713 = vpop.xlane.xlu0 %2712
        %2714 = vmax.xlane.f32.xlu0 %v2678
        %v2715 = vpop.xlane.xlu0 %2714
        %2716 = vmax.xlane.f32.xlu0 %v2683
        %v2717 = vpop.xlane.xlu0 %2716
        %v2718 = vsub.f32 %v2608, %v2687
        %v2719 = vsub.f32 %v2613, %v2689
        %v2720 = vsub.f32 %v2618, %v2691
        %v2721 = vsub.f32 %v2623, %v2693
        %v2722 = vsub.f32 %v2628, %v2695
        %v2723 = vsub.f32 %v2633, %v2697
        %v2724 = vsub.f32 %v2638, %v2699
        %v2725 = vsub.f32 %v2643, %v2701
        %v2726 = vsub.f32 %v2648, %v2703
        %v2727 = vsub.f32 %v2653, %v2705
        %v2728 = vsub.f32 %v2658, %v2707
        %v2729 = vsub.f32 %v2663, %v2709
        %v2730 = vsub.f32 %v2668, %v2711
        %v2731 = vsub.f32 %v2673, %v2713
        %v2732 = vsub.f32 %v2678, %v2715
        %v2733 = vsub.f32 %v2683, %v2717
        %v2734 = vmul.f32 %v2718, 1.442695
        %v2735 = vpow.pop %v2734
        %v2736 = vmul.f32 %v2719, 1.442695
        %v2737 = vpow.pop %v2736
        %v2738 = vmul.f32 %v2720, 1.442695
        %v2739 = vpow.pop %v2738
        %v2740 = vmul.f32 %v2721, 1.442695
        %v2741 = vpow.pop %v2740
        %v2742 = vmul.f32 %v2722, 1.442695
        %v2743 = vpow.pop %v2742
        %v2744 = vmul.f32 %v2723, 1.442695
        %v2745 = vpow.pop %v2744
        %v2746 = vmul.f32 %v2724, 1.442695
        %v2747 = vpow.pop %v2746
        %v2748 = vmul.f32 %v2725, 1.442695
        %v2749 = vpow.pop %v2748
        %v2750 = vmul.f32 %v2726, 1.442695
        %v2751 = vpow.pop %v2750
        %v2752 = vmul.f32 %v2727, 1.442695
        %v2753 = vpow.pop %v2752
        %v2754 = vmul.f32 %v2728, 1.442695
        %v2755 = vpow.pop %v2754
        %v2756 = vmul.f32 %v2729, 1.442695
        %v2757 = vpow.pop %v2756
        %v2758 = vmul.f32 %v2730, 1.442695
        %v2759 = vpow.pop %v2758
        %v2760 = vmul.f32 %v2731, 1.442695
        %v2761 = vpow.pop %v2760
        %v2762 = vmul.f32 %v2732, 1.442695
        %v2763 = vpow.pop %v2762
        %v2764 = vmul.f32 %v2733, 1.442695
        %v2765 = vpow.pop %v2764
        %2766 = vadd.xlane.f32.xlu0 %v2735
        %v2767 = vpop.xlane.xlu0 %2766
        %2768 = vadd.xlane.f32.xlu0 %v2737
        %v2769 = vpop.xlane.xlu0 %2768
        %2770 = vadd.xlane.f32.xlu0 %v2739
        %v2771 = vpop.xlane.xlu0 %2770
        %2772 = vadd.xlane.f32.xlu0 %v2741
        %v2773 = vpop.xlane.xlu0 %2772
        %2774 = vadd.xlane.f32.xlu0 %v2743
        %v2775 = vpop.xlane.xlu0 %2774
        %2776 = vadd.xlane.f32.xlu0 %v2745
        %v2777 = vpop.xlane.xlu0 %2776
        %2778 = vadd.xlane.f32.xlu0 %v2747
        %v2779 = vpop.xlane.xlu0 %2778
        %2780 = vadd.xlane.f32.xlu0 %v2749
        %v2781 = vpop.xlane.xlu0 %2780
        %2782 = vadd.xlane.f32.xlu0 %v2751
        %v2783 = vpop.xlane.xlu0 %2782
        %2784 = vadd.xlane.f32.xlu0 %v2753
        %v2785 = vpop.xlane.xlu0 %2784
        %2786 = vadd.xlane.f32.xlu0 %v2755
        %v2787 = vpop.xlane.xlu0 %2786
        %2788 = vadd.xlane.f32.xlu0 %v2757
        %v2789 = vpop.xlane.xlu0 %2788
        %2790 = vadd.xlane.f32.xlu0 %v2759
        %v2791 = vpop.xlane.xlu0 %2790
        %2792 = vadd.xlane.f32.xlu0 %v2761
        %v2793 = vpop.xlane.xlu0 %2792
        %2794 = vadd.xlane.f32.xlu0 %v2763
        %v2795 = vpop.xlane.xlu0 %2794
        %2796 = vadd.xlane.f32.xlu0 %v2765
        %v2797 = vpop.xlane.xlu0 %2796
        %v2798 = vrcp.pop %v2767
        %v2799 = vrcp.pop %v2769
        %v2800 = vrcp.pop %v2771
        %v2801 = vrcp.pop %v2773
        %v2802 = vrcp.pop %v2775
        %v2803 = vrcp.pop %v2777
        %v2804 = vrcp.pop %v2779
        %v2805 = vrcp.pop %v2781
        %v2806 = vrcp.pop %v2783
        %v2807 = vrcp.pop %v2785
        %v2808 = vrcp.pop %v2787
        %v2809 = vrcp.pop %v2789
        %v2810 = vrcp.pop %v2791
        %v2811 = vrcp.pop %v2793
        %v2812 = vrcp.pop %v2795
        %v2813 = vrcp.pop %v2797
        %v2814 = vmul.f32 %v2767, %v2798
        %v2815 = vmul.f32 %v2769, %v2799
        %v2816 = vmul.f32 %v2771, %v2800
        %v2817 = vmul.f32 %v2773, %v2801
        %v2818 = vmul.f32 %v2775, %v2802
        %v2819 = vmul.f32 %v2777, %v2803
        %v2820 = vmul.f32 %v2779, %v2804
        %v2821 = vmul.f32 %v2781, %v2805
        %v2822 = vmul.f32 %v2783, %v2806
        %v2823 = vmul.f32 %v2785, %v2807
        %v2824 = vmul.f32 %v2787, %v2808
        %v2825 = vmul.f32 %v2789, %v2809
        %v2826 = vmul.f32 %v2791, %v2810
        %v2827 = vmul.f32 %v2793, %v2811
        %v2828 = vmul.f32 %v2795, %v2812
        %v2829 = vmul.f32 %v2797, %v2813
        %v2830 = vsub.f32 2.0, %v2814
        %v2831 = vsub.f32 2.0, %v2815
        %v2832 = vsub.f32 2.0, %v2816
        %v2833 = vsub.f32 2.0, %v2817
        %v2834 = vsub.f32 2.0, %v2818
        %v2835 = vsub.f32 2.0, %v2819
        %v2836 = vsub.f32 2.0, %v2820
        %v2837 = vsub.f32 2.0, %v2821
        %v2838 = vsub.f32 2.0, %v2822
        %v2839 = vsub.f32 2.0, %v2823
        %v2840 = vsub.f32 2.0, %v2824
        %v2841 = vsub.f32 2.0, %v2825
        %v2842 = vsub.f32 2.0, %v2826
        %v2843 = vsub.f32 2.0, %v2827
        %v2844 = vsub.f32 2.0, %v2828
        %v2845 = vsub.f32 2.0, %v2829
        %v2846 = vmul.f32 %v2798, %v2830
        %v2847 = vmul.f32 %v2799, %v2831
        %v2848 = vmul.f32 %v2800, %v2832
        %v2849 = vmul.f32 %v2801, %v2833
        %v2850 = vmul.f32 %v2802, %v2834
        %v2851 = vmul.f32 %v2803, %v2835
        %v2852 = vmul.f32 %v2804, %v2836
        %v2853 = vmul.f32 %v2805, %v2837
        %v2854 = vmul.f32 %v2806, %v2838
        %v2855 = vmul.f32 %v2807, %v2839
        %v2856 = vmul.f32 %v2808, %v2840
        %v2857 = vmul.f32 %v2809, %v2841
        %v2858 = vmul.f32 %v2810, %v2842
        %v2859 = vmul.f32 %v2811, %v2843
        %v2860 = vmul.f32 %v2812, %v2844
        %v2861 = vmul.f32 %v2813, %v2845
        %v2862 = vmul.f32 %v2735, %v2846
        %v2863 = vmul.f32 %v2737, %v2847
        %v2864 = vmul.f32 %v2739, %v2848
        %v2865 = vmul.f32 %v2741, %v2849
        %v2866 = vmul.f32 %v2743, %v2850
        %v2867 = vmul.f32 %v2745, %v2851
        %v2868 = vmul.f32 %v2747, %v2852
        %v2869 = vmul.f32 %v2749, %v2853
        %v2870 = vmul.f32 %v2751, %v2854
        %v2871 = vmul.f32 %v2753, %v2855
        %v2872 = vmul.f32 %v2755, %v2856
        %v2873 = vmul.f32 %v2757, %v2857
        %v2874 = vmul.f32 %v2759, %v2858
        %v2875 = vmul.f32 %v2761, %v2859
        %v2876 = vmul.f32 %v2763, %v2860
        %v2877 = vmul.f32 %v2765, %v2861
        %2878 = vrot.lane.b32.xlu0 %v687, 64
        %v2879 = vpop.permute.xlu0 %2878
        %2880 = vrot.lane.b32.xlu0 %v692, 64
        %v2881 = vpop.permute.xlu0 %2880
        %2882 = vrot.lane.b32.xlu0 %v697, 64
        %v2883 = vpop.permute.xlu0 %2882
        %2884 = vrot.lane.b32.xlu0 %v702, 64
        %v2885 = vpop.permute.xlu0 %2884
        %2886 = vrot.lane.b32.xlu0 %v707, 64
        %v2887 = vpop.permute.xlu0 %2886
        %2888 = vrot.lane.b32.xlu0 %v712, 64
        %v2889 = vpop.permute.xlu0 %2888
        %2890 = vrot.lane.b32.xlu0 %v717, 64
        %v2891 = vpop.permute.xlu0 %2890
        %2892 = vrot.lane.b32.xlu0 %v722, 64
        %v2893 = vpop.permute.xlu0 %2892
        %2894 = vrot.lane.b32.xlu0 %v727, 64
        %v2895 = vpop.permute.xlu0 %2894
        %2896 = vrot.lane.b32.xlu0 %v732, 64
        %v2897 = vpop.permute.xlu0 %2896
        %2898 = vrot.lane.b32.xlu0 %v737, 64
        %v2899 = vpop.permute.xlu0 %2898
        %2900 = vrot.lane.b32.xlu0 %v742, 64
        %v2901 = vpop.permute.xlu0 %2900
        %2902 = vrot.lane.b32.xlu0 %v747, 64
        %v2903 = vpop.permute.xlu0 %2902
        %2904 = vrot.lane.b32.xlu0 %v752, 64
        %v2905 = vpop.permute.xlu0 %2904
        %2906 = vrot.lane.b32.xlu0 %v757, 64
        %v2907 = vpop.permute.xlu0 %2906
        %2908 = vrot.lane.b32.xlu0 %v762, 64
        %v2909 = vpop.permute.xlu0 %2908
        %2926 = vmatprep.subr.mxu0 0.0
        %2927 = vmatpush1.msra.mxu0 %v2879
        %2928 = vmatprep.subr.mxu0 0.0
        %2929 = vmatpush1.msra.mxu0 %v2881
        %2930 = vmatprep.subr.mxu0 0.0
        %2931 = vmatpush1.msra.mxu0 %v2883
        %2932 = vmatprep.subr.mxu0 0.0
        %2933 = vmatpush1.msra.mxu0 %v2885
        %2934 = vmatprep.subr.mxu0 0.0
        %2935 = vmatpush1.msra.mxu0 %v2887
        %2936 = vmatprep.subr.mxu0 0.0
        %2937 = vmatpush1.msra.mxu0 %v2889
        %2938 = vmatprep.subr.mxu0 0.0
        %2939 = vmatpush1.msra.mxu0 %v2891
        %2940 = vmatprep.subr.mxu0 0.0
        %2941 = vmatpush1.msra.mxu0 %v2893
        %2942 = vmatprep.subr.mxu0 0.0
        %2943 = vmatpush1.msra.mxu0 %v2895
        %2944 = vmatprep.subr.mxu0 0.0
        %2945 = vmatpush1.msra.mxu0 %v2897
        %2946 = vmatprep.subr.mxu0 0.0
        %2947 = vmatpush1.msra.mxu0 %v2899
        %2948 = vmatprep.subr.mxu0 0.0
        %2949 = vmatpush1.msra.mxu0 %v2901
        %2950 = vmatprep.subr.mxu0 0.0
        %2951 = vmatpush1.msra.mxu0 %v2903
        %2952 = vmatprep.subr.mxu0 0.0
        %2953 = vmatpush1.msra.mxu0 %v2905
        %2954 = vmatprep.subr.mxu0 0.0
        %2955 = vmatpush1.msra.mxu0 %v2907
        %2956 = vmatprep.subr.mxu0 0.0
        %2957 = vmatpush1.msra.mxu0 %v2909
        %2958 = vmatprep.subr.mxu0 0.0
        %2959 = vmatpush1.msra.mxu0 0.0
        %2960 = vmatprep.subr.mxu0 0.0
        %2961 = vmatpush1.msra.mxu0 0.0
        %2962 = vmatprep.subr.mxu0 0.0
        %2963 = vmatpush1.msra.mxu0 0.0
        %2964 = vmatprep.subr.mxu0 0.0
        %2965 = vmatpush1.msra.mxu0 0.0
        %2966 = vmatprep.subr.mxu0 0.0
        %2967 = vmatpush1.msra.mxu0 0.0
        %2968 = vmatprep.subr.mxu0 0.0
        %2969 = vmatpush1.msra.mxu0 0.0
        %2970 = vmatprep.subr.mxu0 0.0
        %2971 = vmatpush1.msra.mxu0 0.0
        %2972 = vmatprep.subr.mxu0 0.0
        %2973 = vmatpush1.msra.mxu0 0.0
        %2974 = vmatprep.subr.mxu0 0.0
        %2975 = vmatpush1.msra.mxu0 0.0
        %2976 = vmatprep.subr.mxu0 0.0
        %2977 = vmatpush1.msra.mxu0 0.0
        %2978 = vmatprep.subr.mxu0 0.0
        %2979 = vmatpush1.msra.mxu0 0.0
        %2980 = vmatprep.subr.mxu0 0.0
        %2981 = vmatpush1.msra.mxu0 0.0
        %2982 = vmatprep.subr.mxu0 0.0
        %2983 = vmatpush1.msra.mxu0 0.0
        %2984 = vmatprep.subr.mxu0 0.0
        %2985 = vmatpush1.msra.mxu0 0.0
        %2986 = vmatprep.subr.mxu0 0.0
        %2987 = vmatpush1.msra.mxu0 0.0
        %2988 = vmatprep.subr.mxu0 0.0
        %2989 = vmatpush1.msra.mxu0 0.0
        %2990 = vmatprep.mubr.f32.mxu0 0.0
        %2991 = vmatmul.mubr.f32.gmra.mrb[0].mxu0 %v2862
        %v2992 = vpop.f32.mrb[0].mxu0
        %v2993 = vadd.f32 0.0, %v2992
        %v2994 = vpop.f32.mrb[0].mxu0
        %2995 = vmatprep.mubr.f32.mxu0 0.0
        %2996 = vmatmul.mubr.f32.gmra.mrb[0].mxu0 %v2863
        %v2997 = vpop.f32.mrb[0].mxu0
        %v2998 = vadd.f32 0.0, %v2997
        %v2999 = vpop.f32.mrb[0].mxu0
        %3000 = vmatprep.mubr.f32.mxu0 0.0
        %3001 = vmatmul.mubr.f32.gmra.mrb[0].mxu0 %v2864
        %v3002 = vpop.f32.mrb[0].mxu0
        %v3003 = vadd.f32 0.0, %v3002
        %v3004 = vpop.f32.mrb[0].mxu0
        %3005 = vmatprep.mubr.f32.mxu0 0.0
        %3006 = vmatmul.mubr.f32.gmra.mrb[0].mxu0 %v2865
        %v3007 = vpop.f32.mrb[0].mxu0
        %v3008 = vadd.f32 0.0, %v3007
        %v3009 = vpop.f32.mrb[0].mxu0
        %3010 = vmatprep.mubr.f32.mxu0 0.0
        %3011 = vmatmul.mubr.f32.gmra.mrb[0].mxu0 %v2866
        %v3012 = vpop.f32.mrb[0].mxu0
        %v3013 = vadd.f32 0.0, %v3012
        %v3014 = vpop.f32.mrb[0].mxu0
        %3015 = vmatprep.mubr.f32.mxu0 0.0
        %3016 = vmatmul.mubr.f32.gmra.mrb[0].mxu0 %v2867
        %v3017 = vpop.f32.mrb[0].mxu0
        %v3018 = vadd.f32 0.0, %v3017
        %v3019 = vpop.f32.mrb[0].mxu0
        %3020 = vmatprep.mubr.f32.mxu0 0.0
        %3021 = vmatmul.mubr.f32.gmra.mrb[0].mxu0 %v2868
        %v3022 = vpop.f32.mrb[0].mxu0
        %v3023 = vadd.f32 0.0, %v3022
        %v3024 = vpop.f32.mrb[0].mxu0
        %3025 = vmatprep.mubr.f32.mxu0 0.0
        %3026 = vmatmul.mubr.f32.gmra.mrb[0].mxu0 %v2869
        %v3027 = vpop.f32.mrb[0].mxu0
        %v3028 = vadd.f32 0.0, %v3027
        %v3029 = vpop.f32.mrb[0].mxu0
        %3030 = vmatprep.mubr.f32.mxu0 0.0
        %3031 = vmatmul.mubr.f32.gmra.mrb[0].mxu0 %v2870
        %v3032 = vpop.f32.mrb[0].mxu0
        %v3033 = vadd.f32 0.0, %v3032
        %v3034 = vpop.f32.mrb[0].mxu0
        %3035 = vmatprep.mubr.f32.mxu0 0.0
        %3036 = vmatmul.mubr.f32.gmra.mrb[0].mxu0 %v2871
        %v3037 = vpop.f32.mrb[0].mxu0
        %v3038 = vadd.f32 0.0, %v3037
        %v3039 = vpop.f32.mrb[0].mxu0
        %3040 = vmatprep.mubr.f32.mxu0 0.0
        %3041 = vmatmul.mubr.f32.gmra.mrb[0].mxu0 %v2872
        %v3042 = vpop.f32.mrb[0].mxu0
        %v3043 = vadd.f32 0.0, %v3042
        %v3044 = vpop.f32.mrb[0].mxu0
        %3045 = vmatprep.mubr.f32.mxu0 0.0
        %3046 = vmatmul.mubr.f32.gmra.mrb[0].mxu0 %v2873
        %v3047 = vpop.f32.mrb[0].mxu0
        %v3048 = vadd.f32 0.0, %v3047
        %v3049 = vpop.f32.mrb[0].mxu0
        %3050 = vmatprep.mubr.f32.mxu0 0.0
        %3051 = vmatmul.mubr.f32.gmra.mrb[0].mxu0 %v2874
        %v3052 = vpop.f32.mrb[0].mxu0
        %v3053 = vadd.f32 0.0, %v3052
        %v3054 = vpop.f32.mrb[0].mxu0
        %3055 = vmatprep.mubr.f32.mxu0 0.0
        %3056 = vmatmul.mubr.f32.gmra.mrb[0].mxu0 %v2875
        %v3057 = vpop.f32.mrb[0].mxu0
        %v3058 = vadd.f32 0.0, %v3057
        %v3059 = vpop.f32.mrb[0].mxu0
        %3060 = vmatprep.mubr.f32.mxu0 0.0
        %3061 = vmatmul.mubr.f32.gmra.mrb[0].mxu0 %v2876
        %v3062 = vpop.f32.mrb[0].mxu0
        %v3063 = vadd.f32 0.0, %v3062
        %v3064 = vpop.f32.mrb[0].mxu0
        %3065 = vmatprep.mubr.f32.mxu0 0.0
        %3066 = vmatmul.mubr.f32.gmra.mrb[0].mxu0 %v2877
        %v3067 = vpop.f32.mrb[0].mxu0
        %v3068 = vadd.f32 0.0, %v3067
        %v3069 = vpop.f32.mrb[0].mxu0
        %3070 = vdwg.mxu0
        %s3071 = scalar_lea.vmem [#allocation8], 64
        %v3072 = vld [vmem:[%s3071] sm:$0xff]
        %v3073 = vld [vmem:[%s3071 + $0x8] sm:$0xff]
        %v3074 = vld [vmem:[%s3071 + $0x10] sm:$0xff]
        %v3075 = vld [vmem:[%s3071 + $0x18] sm:$0xff]
        %v3077 = vsel %vm765, %v2993, 0
        %v3080 = vsel %vm765, %v2998, 0
        %v3083 = vsel %vm765, %v3003, 0
        %v3086 = vsel %vm765, %v3008, 0
        %v3089 = vsel %vm765, %v3013, 0
        %v3092 = vsel %vm765, %v3018, 0
        %v3095 = vsel %vm765, %v3023, 0
        %v3098 = vsel %vm765, %v3028, 0
        %v3101 = vsel %vm765, %v3033, 0
        %v3104 = vsel %vm765, %v3038, 0
        %v3107 = vsel %vm765, %v3043, 0
        %v3110 = vsel %vm765, %v3048, 0
        %v3113 = vsel %vm765, %v3053, 0
        %v3116 = vsel %vm765, %v3058, 0
        %v3119 = vsel %vm765, %v3063, 0
        %v3122 = vsel %vm765, %v3068, 0
        %3124 = vmatprep.subr.mxu0 0.0
        %3125 = vmatpush1.msra.mxu0 %v3072
        %3126 = vmatprep.subr.mxu0 0.0
        %3127 = vmatpush1.msra.mxu0 %v3073
        %3128 = vmatprep.subr.mxu0 0.0
        %3129 = vmatpush1.msra.mxu0 %v3074
        %3130 = vmatprep.subr.mxu0 0.0
        %3131 = vmatpush1.msra.mxu0 %v3075
        %3132 = vmatprep.subr.mxu0 0.0
        %3133 = vmatpush1.msra.mxu0 0.0
        %3134 = vmatprep.subr.mxu0 0.0
        %3135 = vmatpush1.msra.mxu0 0.0
        %3136 = vmatprep.subr.mxu0 0.0
        %3137 = vmatpush1.msra.mxu0 0.0
        %3138 = vmatprep.subr.mxu0 0.0
        %3139 = vmatpush1.msra.mxu0 0.0
        %3140 = vmatprep.subr.mxu0 0.0
        %3141 = vmatpush1.msra.mxu0 0.0
        %3142 = vmatprep.subr.mxu0 0.0
        %3143 = vmatpush1.msra.mxu0 0.0
        %3144 = vmatprep.subr.mxu0 0.0
        %3145 = vmatpush1.msra.mxu0 0.0
        %3146 = vmatprep.subr.mxu0 0.0
        %3147 = vmatpush1.msra.mxu0 0.0
        %3148 = vmatprep.subr.mxu0 0.0
        %3149 = vmatpush1.msra.mxu0 0.0
        %3150 = vmatprep.subr.mxu0 0.0
        %3151 = vmatpush1.msra.mxu0 0.0
        %3152 = vmatprep.subr.mxu0 0.0
        %3153 = vmatpush1.msra.mxu0 0.0
        %3154 = vmatprep.subr.mxu0 0.0
        %3155 = vmatpush1.msra.mxu0 0.0
        %3156 = vmatprep.subr.mxu0 0.0
        %3157 = vmatpush1.msra.mxu0 0.0
        %3158 = vmatprep.subr.mxu0 0.0
        %3159 = vmatpush1.msra.mxu0 0.0
        %3160 = vmatprep.subr.mxu0 0.0
        %3161 = vmatpush1.msra.mxu0 0.0
        %3162 = vmatprep.subr.mxu0 0.0
        %3163 = vmatpush1.msra.mxu0 0.0
        %3164 = vmatprep.subr.mxu0 0.0
        %3165 = vmatpush1.msra.mxu0 0.0
        %3166 = vmatprep.subr.mxu0 0.0
        %3167 = vmatpush1.msra.mxu0 0.0
        %3168 = vmatprep.subr.mxu0 0.0
        %3169 = vmatpush1.msra.mxu0 0.0
        %3170 = vmatprep.subr.mxu0 0.0
        %3171 = vmatpush1.msra.mxu0 0.0
        %3172 = vmatprep.subr.mxu0 0.0
        %3173 = vmatpush1.msra.mxu0 0.0
        %3174 = vmatprep.subr.mxu0 0.0
        %3175 = vmatpush1.msra.mxu0 0.0
        %3176 = vmatprep.subr.mxu0 0.0
        %3177 = vmatpush1.msra.mxu0 0.0
        %3178 = vmatprep.subr.mxu0 0.0
        %3179 = vmatpush1.msra.mxu0 0.0
        %3180 = vmatprep.subr.mxu0 0.0
        %3181 = vmatpush1.msra.mxu0 0.0
        %3182 = vmatprep.subr.mxu0 0.0
        %3183 = vmatpush1.msra.mxu0 0.0
        %3184 = vmatprep.subr.mxu0 0.0
        %3185 = vmatpush1.msra.mxu0 0.0
        %3186 = vmatprep.subr.mxu0 0.0
        %3187 = vmatpush1.msra.mxu0 0.0
        %3188 = vmatprep.mubr.f32.mxu0 0.0
        %3189 = vmatmul.mubr.f32.gmra.mrb[0].mxu0 %v3077
        %v3190 = vpop.f32.mrb[0].mxu0
        %v3191 = vadd.f32 0.0, %v3190
        %v3192 = vpop.f32.mrb[0].mxu0
        %3193 = vmatprep.mubr.f32.mxu0 0.0
        %3194 = vmatmul.mubr.f32.gmra.mrb[0].mxu0 %v3080
        %v3195 = vpop.f32.mrb[0].mxu0
        %v3196 = vadd.f32 0.0, %v3195
        %v3197 = vpop.f32.mrb[0].mxu0
        %3198 = vmatprep.mubr.f32.mxu0 0.0
        %3199 = vmatmul.mubr.f32.gmra.mrb[0].mxu0 %v3083
        %v3200 = vpop.f32.mrb[0].mxu0
        %v3201 = vadd.f32 0.0, %v3200
        %v3202 = vpop.f32.mrb[0].mxu0
        %3203 = vmatprep.mubr.f32.mxu0 0.0
        %3204 = vmatmul.mubr.f32.gmra.mrb[0].mxu0 %v3086
        %v3205 = vpop.f32.mrb[0].mxu0
        %v3206 = vadd.f32 0.0, %v3205
        %v3207 = vpop.f32.mrb[0].mxu0
        %3208 = vmatprep.mubr.f32.mxu0 0.0
        %3209 = vmatmul.mubr.f32.gmra.mrb[0].mxu0 %v3089
        %v3210 = vpop.f32.mrb[0].mxu0
        %v3211 = vadd.f32 0.0, %v3210
        %v3212 = vpop.f32.mrb[0].mxu0
        %3213 = vmatprep.mubr.f32.mxu0 0.0
        %3214 = vmatmul.mubr.f32.gmra.mrb[0].mxu0 %v3092
        %v3215 = vpop.f32.mrb[0].mxu0
        %v3216 = vadd.f32 0.0, %v3215
        %v3217 = vpop.f32.mrb[0].mxu0
        %3218 = vmatprep.mubr.f32.mxu0 0.0
        %3219 = vmatmul.mubr.f32.gmra.mrb[0].mxu0 %v3095
        %v3220 = vpop.f32.mrb[0].mxu0
        %v3221 = vadd.f32 0.0, %v3220
        %v3222 = vpop.f32.mrb[0].mxu0
        %3223 = vmatprep.mubr.f32.mxu0 0.0
        %3224 = vmatmul.mubr.f32.gmra.mrb[0].mxu0 %v3098
        %v3225 = vpop.f32.mrb[0].mxu0
        %v3226 = vadd.f32 0.0, %v3225
        %v3227 = vpop.f32.mrb[0].mxu0
        %3228 = vmatprep.mubr.f32.mxu0 0.0
        %3229 = vmatmul.mubr.f32.gmra.mrb[0].mxu0 %v3101
        %v3230 = vpop.f32.mrb[0].mxu0
        %v3231 = vadd.f32 0.0, %v3230
        %v3232 = vpop.f32.mrb[0].mxu0
        %3233 = vmatprep.mubr.f32.mxu0 0.0
        %3234 = vmatmul.mubr.f32.gmra.mrb[0].mxu0 %v3104
        %v3235 = vpop.f32.mrb[0].mxu0
        %v3236 = vadd.f32 0.0, %v3235
        %v3237 = vpop.f32.mrb[0].mxu0
        %3238 = vmatprep.mubr.f32.mxu0 0.0
        %3239 = vmatmul.mubr.f32.gmra.mrb[0].mxu0 %v3107
        %v3240 = vpop.f32.mrb[0].mxu0
        %v3241 = vadd.f32 0.0, %v3240
        %v3242 = vpop.f32.mrb[0].mxu0
        %3243 = vmatprep.mubr.f32.mxu0 0.0
        %3244 = vmatmul.mubr.f32.gmra.mrb[0].mxu0 %v3110
        %v3245 = vpop.f32.mrb[0].mxu0
        %v3246 = vadd.f32 0.0, %v3245
        %v3247 = vpop.f32.mrb[0].mxu0
        %3248 = vmatprep.mubr.f32.mxu0 0.0
        %3249 = vmatmul.mubr.f32.gmra.mrb[0].mxu0 %v3113
        %v3250 = vpop.f32.mrb[0].mxu0
        %v3251 = vadd.f32 0.0, %v3250
        %v3252 = vpop.f32.mrb[0].mxu0
        %3253 = vmatprep.mubr.f32.mxu0 0.0
        %3254 = vmatmul.mubr.f32.gmra.mrb[0].mxu0 %v3116
        %v3255 = vpop.f32.mrb[0].mxu0
        %v3256 = vadd.f32 0.0, %v3255
        %v3257 = vpop.f32.mrb[0].mxu0
        %3258 = vmatprep.mubr.f32.mxu0 0.0
        %3259 = vmatmul.mubr.f32.gmra.mrb[0].mxu0 %v3119
        %v3260 = vpop.f32.mrb[0].mxu0
        %v3261 = vadd.f32 0.0, %v3260
        %v3262 = vpop.f32.mrb[0].mxu0
        %3263 = vmatprep.mubr.f32.mxu0 0.0
        %3264 = vmatmul.mubr.f32.gmra.mrb[0].mxu0 %v3122
        %v3265 = vpop.f32.mrb[0].mxu0
        %v3266 = vadd.f32 0.0, %v3265
        %v3267 = vpop.f32.mrb[0].mxu0
        %3268 = vdwg.mxu0
        %v3269 = vadd.f32 %v2335, %v3191
        %v3270 = vadd.f32 %v2340, %v3196
        %v3271 = vadd.f32 %v2345, %v3201
        %v3272 = vadd.f32 %v2350, %v3206
        %v3273 = vadd.f32 %v2355, %v3211
        %v3274 = vadd.f32 %v2360, %v3216
        %v3275 = vadd.f32 %v2365, %v3221
        %v3276 = vadd.f32 %v2370, %v3226
        %v3277 = vadd.f32 %v2375, %v3231
        %v3278 = vadd.f32 %v2380, %v3236
        %v3279 = vadd.f32 %v2385, %v3241
        %v3280 = vadd.f32 %v2390, %v3246
        %v3281 = vadd.f32 %v2395, %v3251
        %v3282 = vadd.f32 %v2400, %v3256
        %v3283 = vadd.f32 %v2405, %v3261
        %v3284 = vadd.f32 %v2410, %v3266
        %3285 = vrot.lane.b32.xlu0 %v526, 32
        %v3286 = vpop.permute.xlu0 %3285
        %3287 = vrot.lane.b32.xlu0 %v532, 32
        %v3288 = vpop.permute.xlu0 %3287
        %3289 = vrot.lane.b32.xlu0 %v538, 32
        %v3290 = vpop.permute.xlu0 %3289
        %3291 = vrot.lane.b32.xlu0 %v544, 32
        %v3292 = vpop.permute.xlu0 %3291
        %3293 = vrot.lane.b32.xlu0 %v550, 32
        %v3294 = vpop.permute.xlu0 %3293
        %3295 = vrot.lane.b32.xlu0 %v556, 32
        %v3296 = vpop.permute.xlu0 %3295
        %3297 = vrot.lane.b32.xlu0 %v562, 32
        %v3298 = vpop.permute.xlu0 %3297
        %3299 = vrot.lane.b32.xlu0 %v568, 32
        %v3300 = vpop.permute.xlu0 %3299
        %3301 = vrot.lane.b32.xlu0 %v574, 32
        %v3302 = vpop.permute.xlu0 %3301
        %3303 = vrot.lane.b32.xlu0 %v580, 32
        %v3304 = vpop.permute.xlu0 %3303
        %3305 = vrot.lane.b32.xlu0 %v586, 32
        %v3306 = vpop.permute.xlu0 %3305
        %3307 = vrot.lane.b32.xlu0 %v592, 32
        %v3308 = vpop.permute.xlu0 %3307
        %3309 = vrot.lane.b32.xlu0 %v598, 32
        %v3310 = vpop.permute.xlu0 %3309
        %3311 = vrot.lane.b32.xlu0 %v604, 32
        %v3312 = vpop.permute.xlu0 %3311
        %3313 = vrot.lane.b32.xlu0 %v610, 32
        %v3314 = vpop.permute.xlu0 %3313
        %3315 = vrot.lane.b32.xlu0 %v616, 32
        %v3316 = vpop.permute.xlu0 %3315
        %3317 = vrot.lane.b32.xlu0 %v528, 32
        %v3318 = vpop.permute.xlu0 %3317
        %3319 = vrot.lane.b32.xlu0 %v534, 32
        %v3320 = vpop.permute.xlu0 %3319
        %3321 = vrot.lane.b32.xlu0 %v540, 32
        %v3322 = vpop.permute.xlu0 %3321
        %3323 = vrot.lane.b32.xlu0 %v546, 32
        %v3324 = vpop.permute.xlu0 %3323
        %3325 = vrot.lane.b32.xlu0 %v552, 32
        %v3326 = vpop.permute.xlu0 %3325
        %3327 = vrot.lane.b32.xlu0 %v558, 32
        %v3328 = vpop.permute.xlu0 %3327
        %3329 = vrot.lane.b32.xlu0 %v564, 32
        %v3330 = vpop.permute.xlu0 %3329
        %3331 = vrot.lane.b32.xlu0 %v570, 32
        %v3332 = vpop.permute.xlu0 %3331
        %3333 = vrot.lane.b32.xlu0 %v576, 32
        %v3334 = vpop.permute.xlu0 %3333
        %3335 = vrot.lane.b32.xlu0 %v582, 32
        %v3336 = vpop.permute.xlu0 %3335
        %3337 = vrot.lane.b32.xlu0 %v588, 32
        %v3338 = vpop.permute.xlu0 %3337
        %3339 = vrot.lane.b32.xlu0 %v594, 32
        %v3340 = vpop.permute.xlu0 %3339
        %3341 = vrot.lane.b32.xlu0 %v600, 32
        %v3342 = vpop.permute.xlu0 %3341
        %3343 = vrot.lane.b32.xlu0 %v606, 32
        %v3344 = vpop.permute.xlu0 %3343
        %3345 = vrot.lane.b32.xlu0 %v612, 32
        %v3346 = vpop.permute.xlu0 %3345
        %3347 = vrot.lane.b32.xlu0 %v618, 32
        %v3348 = vpop.permute.xlu0 %3347
        %v3349 = vsel %vm765, %v3286, 0
        %v3351 = vsel %vm765, %v3288, 0
        %v3353 = vsel %vm765, %v3290, 0
        %v3355 = vsel %vm765, %v3292, 0
        %v3357 = vsel %vm765, %v3294, 0
        %v3359 = vsel %vm765, %v3296, 0
        %v3361 = vsel %vm765, %v3298, 0
        %v3363 = vsel %vm765, %v3300, 0
        %v3365 = vsel %vm765, %v3302, 0
        %v3367 = vsel %vm765, %v3304, 0
        %v3369 = vsel %vm765, %v3306, 0
        %v3371 = vsel %vm765, %v3308, 0
        %v3373 = vsel %vm765, %v3310, 0
        %v3375 = vsel %vm765, %v3312, 0
        %v3377 = vsel %vm765, %v3314, 0
        %v3379 = vsel %vm765, %v3316, 0
        %v3381 = vsel %vm765, %v3318, 0
        %v3383 = vsel %vm765, %v3320, 0
        %v3385 = vsel %vm765, %v3322, 0
        %v3387 = vsel %vm765, %v3324, 0
        %v3389 = vsel %vm765, %v3326, 0
        %v3391 = vsel %vm765, %v3328, 0
        %v3393 = vsel %vm765, %v3330, 0
        %v3395 = vsel %vm765, %v3332, 0
        %v3397 = vsel %vm765, %v3334, 0
        %v3399 = vsel %vm765, %v3336, 0
        %v3401 = vsel %vm765, %v3338, 0
        %v3403 = vsel %vm765, %v3340, 0
        %v3405 = vsel %vm765, %v3342, 0
        %v3407 = vsel %vm765, %v3344, 0
        %v3409 = vsel %vm765, %v3346, 0
        %v3411 = vsel %vm765, %v3348, 0
        %3413 = vmatprep.subr.mxu0 0.0
        %3414 = vmatpush1.xpose.msra.mxu0 %v3381
        %3415 = vmatprep.subr.mxu0 0.0
        %3416 = vmatpush1.xpose.msra.mxu0 %v3383
        %3417 = vmatprep.subr.mxu0 0.0
        %3418 = vmatpush1.xpose.msra.mxu0 %v3385
        %3419 = vmatprep.subr.mxu0 0.0
        %3420 = vmatpush1.xpose.msra.mxu0 %v3387
        %3421 = vmatprep.subr.mxu0 0.0
        %3422 = vmatpush1.xpose.msra.mxu0 %v3389
        %3423 = vmatprep.subr.mxu0 0.0
        %3424 = vmatpush1.xpose.msra.mxu0 %v3391
        %3425 = vmatprep.subr.mxu0 0.0
        %3426 = vmatpush1.xpose.msra.mxu0 %v3393
        %3427 = vmatprep.subr.mxu0 0.0
        %3428 = vmatpush1.xpose.msra.mxu0 %v3395
        %3429 = vmatprep.subr.mxu0 0.0
        %3430 = vmatpush1.xpose.msra.mxu0 %v3397
        %3431 = vmatprep.subr.mxu0 0.0
        %3432 = vmatpush1.xpose.msra.mxu0 %v3399
        %3433 = vmatprep.subr.mxu0 0.0
        %3434 = vmatpush1.xpose.msra.mxu0 %v3401
        %3435 = vmatprep.subr.mxu0 0.0
        %3436 = vmatpush1.xpose.msra.mxu0 %v3403
        %3437 = vmatprep.subr.mxu0 0.0
        %3438 = vmatpush1.xpose.msra.mxu0 %v3405
        %3439 = vmatprep.subr.mxu0 0.0
        %3440 = vmatpush1.xpose.msra.mxu0 %v3407
        %3441 = vmatprep.subr.mxu0 0.0
        %3442 = vmatpush1.xpose.msra.mxu0 %v3409
        %3443 = vmatprep.subr.mxu0 0.0
        %3444 = vmatpush1.xpose.msra.mxu0 %v3411
        %3445 = vmatprep.subr.mxu0 0.0
        %3446 = vmatpush1.xpose.msra.mxu0 0.0
        %3447 = vmatprep.subr.mxu0 0.0
        %3448 = vmatpush1.xpose.msra.mxu0 0.0
        %3449 = vmatprep.subr.mxu0 0.0
        %3450 = vmatpush1.xpose.msra.mxu0 0.0
        %3451 = vmatprep.subr.mxu0 0.0
        %3452 = vmatpush1.xpose.msra.mxu0 0.0
        %3453 = vmatprep.subr.mxu0 0.0
        %3454 = vmatpush1.xpose.msra.mxu0 0.0
        %3455 = vmatprep.subr.mxu0 0.0
        %3456 = vmatpush1.xpose.msra.mxu0 0.0
        %3457 = vmatprep.subr.mxu0 0.0
        %3458 = vmatpush1.xpose.msra.mxu0 0.0
        %3459 = vmatprep.subr.mxu0 0.0
        %3460 = vmatpush1.xpose.msra.mxu0 0.0
        %3461 = vmatprep.subr.mxu0 0.0
        %3462 = vmatpush1.xpose.msra.mxu0 0.0
        %3463 = vmatprep.subr.mxu0 0.0
        %3464 = vmatpush1.xpose.msra.mxu0 0.0
        %3465 = vmatprep.subr.mxu0 0.0
        %3466 = vmatpush1.xpose.msra.mxu0 0.0
        %3467 = vmatprep.subr.mxu0 0.0
        %3468 = vmatpush1.xpose.msra.mxu0 0.0
        %3469 = vmatprep.subr.mxu0 0.0
        %3470 = vmatpush1.xpose.msra.mxu0 0.0
        %3471 = vmatprep.subr.mxu0 0.0
        %3472 = vmatpush1.xpose.msra.mxu0 0.0
        %3473 = vmatprep.subr.mxu0 0.0
        %3474 = vmatpush1.xpose.msra.mxu0 0.0
        %3475 = vmatprep.subr.mxu0 0.0
        %3476 = vmatpush1.xpose.msra.mxu0 0.0
        %3477 = vmatprep.mubr.f32.mxu0 0.0
        %3478 = vmatmul.mubr.f32.gmra.mrb[0].mxu0 %v3349
        %v3479 = vpop.f32.mrb[0].mxu0
        %v3480 = vadd.f32 0.0, %v3479
        %v3481 = vpop.f32.mrb[0].mxu0
        %3482 = vmatprep.mubr.f32.mxu0 0.0
        %3483 = vmatmul.mubr.f32.gmra.mrb[0].mxu0 %v3351
        %v3484 = vpop.f32.mrb[0].mxu0
        %v3485 = vadd.f32 0.0, %v3484
        %v3486 = vpop.f32.mrb[0].mxu0
        %3487 = vmatprep.mubr.f32.mxu0 0.0
        %3488 = vmatmul.mubr.f32.gmra.mrb[0].mxu0 %v3353
        %v3489 = vpop.f32.mrb[0].mxu0
        %v3490 = vadd.f32 0.0, %v3489
        %v3491 = vpop.f32.mrb[0].mxu0
        %3492 = vmatprep.mubr.f32.mxu0 0.0
        %3493 = vmatmul.mubr.f32.gmra.mrb[0].mxu0 %v3355
        %v3494 = vpop.f32.mrb[0].mxu0
        %v3495 = vadd.f32 0.0, %v3494
        %v3496 = vpop.f32.mrb[0].mxu0
        %3497 = vmatprep.mubr.f32.mxu0 0.0
        %3498 = vmatmul.mubr.f32.gmra.mrb[0].mxu0 %v3357
        %v3499 = vpop.f32.mrb[0].mxu0
        %v3500 = vadd.f32 0.0, %v3499
        %v3501 = vpop.f32.mrb[0].mxu0
        %3502 = vmatprep.mubr.f32.mxu0 0.0
        %3503 = vmatmul.mubr.f32.gmra.mrb[0].mxu0 %v3359
        %v3504 = vpop.f32.mrb[0].mxu0
        %v3505 = vadd.f32 0.0, %v3504
        %v3506 = vpop.f32.mrb[0].mxu0
        %3507 = vmatprep.mubr.f32.mxu0 0.0
        %3508 = vmatmul.mubr.f32.gmra.mrb[0].mxu0 %v3361
        %v3509 = vpop.f32.mrb[0].mxu0
        %v3510 = vadd.f32 0.0, %v3509
        %v3511 = vpop.f32.mrb[0].mxu0
        %3512 = vmatprep.mubr.f32.mxu0 0.0
        %3513 = vmatmul.mubr.f32.gmra.mrb[0].mxu0 %v3363
        %v3514 = vpop.f32.mrb[0].mxu0
        %v3515 = vadd.f32 0.0, %v3514
        %v3516 = vpop.f32.mrb[0].mxu0
        %3517 = vmatprep.mubr.f32.mxu0 0.0
        %3518 = vmatmul.mubr.f32.gmra.mrb[0].mxu0 %v3365
        %v3519 = vpop.f32.mrb[0].mxu0
        %v3520 = vadd.f32 0.0, %v3519
        %v3521 = vpop.f32.mrb[0].mxu0
        %3522 = vmatprep.mubr.f32.mxu0 0.0
        %3523 = vmatmul.mubr.f32.gmra.mrb[0].mxu0 %v3367
        %v3524 = vpop.f32.mrb[0].mxu0
        %v3525 = vadd.f32 0.0, %v3524
        %v3526 = vpop.f32.mrb[0].mxu0
        %3527 = vmatprep.mubr.f32.mxu0 0.0
        %3528 = vmatmul.mubr.f32.gmra.mrb[0].mxu0 %v3369
        %v3529 = vpop.f32.mrb[0].mxu0
        %v3530 = vadd.f32 0.0, %v3529
        %v3531 = vpop.f32.mrb[0].mxu0
        %3532 = vmatprep.mubr.f32.mxu0 0.0
        %3533 = vmatmul.mubr.f32.gmra.mrb[0].mxu0 %v3371
        %v3534 = vpop.f32.mrb[0].mxu0
        %v3535 = vadd.f32 0.0, %v3534
        %v3536 = vpop.f32.mrb[0].mxu0
        %3537 = vmatprep.mubr.f32.mxu0 0.0
        %3538 = vmatmul.mubr.f32.gmra.mrb[0].mxu0 %v3373
        %v3539 = vpop.f32.mrb[0].mxu0
        %v3540 = vadd.f32 0.0, %v3539
        %v3541 = vpop.f32.mrb[0].mxu0
        %3542 = vmatprep.mubr.f32.mxu0 0.0
        %3543 = vmatmul.mubr.f32.gmra.mrb[0].mxu0 %v3375
        %v3544 = vpop.f32.mrb[0].mxu0
        %v3545 = vadd.f32 0.0, %v3544
        %v3546 = vpop.f32.mrb[0].mxu0
        %3547 = vmatprep.mubr.f32.mxu0 0.0
        %3548 = vmatmul.mubr.f32.gmra.mrb[0].mxu0 %v3377
        %v3549 = vpop.f32.mrb[0].mxu0
        %v3550 = vadd.f32 0.0, %v3549
        %v3551 = vpop.f32.mrb[0].mxu0
        %3552 = vmatprep.mubr.f32.mxu0 0.0
        %3553 = vmatmul.mubr.f32.gmra.mrb[0].mxu0 %v3379
        %v3554 = vpop.f32.mrb[0].mxu0
        %v3555 = vadd.f32 0.0, %v3554
        %v3556 = vpop.f32.mrb[0].mxu0
        %3557 = vdwg.mxu0
        %3558 = vmax.xlane.f32.xlu0 %v3480
        %v3559 = vpop.xlane.xlu0 %3558
        %3560 = vmax.xlane.f32.xlu0 %v3485
        %v3561 = vpop.xlane.xlu0 %3560
        %3562 = vmax.xlane.f32.xlu0 %v3490
        %v3563 = vpop.xlane.xlu0 %3562
        %3564 = vmax.xlane.f32.xlu0 %v3495
        %v3565 = vpop.xlane.xlu0 %3564
        %3566 = vmax.xlane.f32.xlu0 %v3500
        %v3567 = vpop.xlane.xlu0 %3566
        %3568 = vmax.xlane.f32.xlu0 %v3505
        %v3569 = vpop.xlane.xlu0 %3568
        %3570 = vmax.xlane.f32.xlu0 %v3510
        %v3571 = vpop.xlane.xlu0 %3570
        %3572 = vmax.xlane.f32.xlu0 %v3515
        %v3573 = vpop.xlane.xlu0 %3572
        %3574 = vmax.xlane.f32.xlu0 %v3520
        %v3575 = vpop.xlane.xlu0 %3574
        %3576 = vmax.xlane.f32.xlu0 %v3525
        %v3577 = vpop.xlane.xlu0 %3576
        %3578 = vmax.xlane.f32.xlu0 %v3530
        %v3579 = vpop.xlane.xlu0 %3578
        %3580 = vmax.xlane.f32.xlu0 %v3535
        %v3581 = vpop.xlane.xlu0 %3580
        %3582 = vmax.xlane.f32.xlu0 %v3540
        %v3583 = vpop.xlane.xlu0 %3582
        %3584 = vmax.xlane.f32.xlu0 %v3545
        %v3585 = vpop.xlane.xlu0 %3584
        %3586 = vmax.xlane.f32.xlu0 %v3550
        %v3587 = vpop.xlane.xlu0 %3586
        %3588 = vmax.xlane.f32.xlu0 %v3555
        %v3589 = vpop.xlane.xlu0 %3588
        %v3590 = vsub.f32 %v3480, %v3559
        %v3591 = vsub.f32 %v3485, %v3561
        %v3592 = vsub.f32 %v3490, %v3563
        %v3593 = vsub.f32 %v3495, %v3565
        %v3594 = vsub.f32 %v3500, %v3567
        %v3595 = vsub.f32 %v3505, %v3569
        %v3596 = vsub.f32 %v3510, %v3571
        %v3597 = vsub.f32 %v3515, %v3573
        %v3598 = vsub.f32 %v3520, %v3575
        %v3599 = vsub.f32 %v3525, %v3577
        %v3600 = vsub.f32 %v3530, %v3579
        %v3601 = vsub.f32 %v3535, %v3581
        %v3602 = vsub.f32 %v3540, %v3583
        %v3603 = vsub.f32 %v3545, %v3585
        %v3604 = vsub.f32 %v3550, %v3587
        %v3605 = vsub.f32 %v3555, %v3589
        %v3606 = vmul.f32 %v3590, 1.442695
        %v3607 = vpow.pop %v3606
        %v3608 = vmul.f32 %v3591, 1.442695
        %v3609 = vpow.pop %v3608
        %v3610 = vmul.f32 %v3592, 1.442695
        %v3611 = vpow.pop %v3610
        %v3612 = vmul.f32 %v3593, 1.442695
        %v3613 = vpow.pop %v3612
        %v3614 = vmul.f32 %v3594, 1.442695
        %v3615 = vpow.pop %v3614
        %v3616 = vmul.f32 %v3595, 1.442695
        %v3617 = vpow.pop %v3616
        %v3618 = vmul.f32 %v3596, 1.442695
        %v3619 = vpow.pop %v3618
        %v3620 = vmul.f32 %v3597, 1.442695
        %v3621 = vpow.pop %v3620
        %v3622 = vmul.f32 %v3598, 1.442695
        %v3623 = vpow.pop %v3622
        %v3624 = vmul.f32 %v3599, 1.442695
        %v3625 = vpow.pop %v3624
        %v3626 = vmul.f32 %v3600, 1.442695
        %v3627 = vpow.pop %v3626
        %v3628 = vmul.f32 %v3601, 1.442695
        %v3629 = vpow.pop %v3628
        %v3630 = vmul.f32 %v3602, 1.442695
        %v3631 = vpow.pop %v3630
        %v3632 = vmul.f32 %v3603, 1.442695
        %v3633 = vpow.pop %v3632
        %v3634 = vmul.f32 %v3604, 1.442695
        %v3635 = vpow.pop %v3634
        %v3636 = vmul.f32 %v3605, 1.442695
        %v3637 = vpow.pop %v3636
        %3638 = vadd.xlane.f32.xlu0 %v3607
        %v3639 = vpop.xlane.xlu0 %3638
        %3640 = vadd.xlane.f32.xlu0 %v3609
        %v3641 = vpop.xlane.xlu0 %3640
        %3642 = vadd.xlane.f32.xlu0 %v3611
        %v3643 = vpop.xlane.xlu0 %3642
        %3644 = vadd.xlane.f32.xlu0 %v3613
        %v3645 = vpop.xlane.xlu0 %3644
        %3646 = vadd.xlane.f32.xlu0 %v3615
        %v3647 = vpop.xlane.xlu0 %3646
        %3648 = vadd.xlane.f32.xlu0 %v3617
        %v3649 = vpop.xlane.xlu0 %3648
        %3650 = vadd.xlane.f32.xlu0 %v3619
        %v3651 = vpop.xlane.xlu0 %3650
        %3652 = vadd.xlane.f32.xlu0 %v3621
        %v3653 = vpop.xlane.xlu0 %3652
        %3654 = vadd.xlane.f32.xlu0 %v3623
        %v3655 = vpop.xlane.xlu0 %3654
        %3656 = vadd.xlane.f32.xlu0 %v3625
        %v3657 = vpop.xlane.xlu0 %3656
        %3658 = vadd.xlane.f32.xlu0 %v3627
        %v3659 = vpop.xlane.xlu0 %3658
        %3660 = vadd.xlane.f32.xlu0 %v3629
        %v3661 = vpop.xlane.xlu0 %3660
        %3662 = vadd.xlane.f32.xlu0 %v3631
        %v3663 = vpop.xlane.xlu0 %3662
        %3664 = vadd.xlane.f32.xlu0 %v3633
        %v3665 = vpop.xlane.xlu0 %3664
        %3666 = vadd.xlane.f32.xlu0 %v3635
        %v3667 = vpop.xlane.xlu0 %3666
        %3668 = vadd.xlane.f32.xlu0 %v3637
        %v3669 = vpop.xlane.xlu0 %3668
        %v3670 = vrcp.pop %v3639
        %v3671 = vrcp.pop %v3641
        %v3672 = vrcp.pop %v3643
        %v3673 = vrcp.pop %v3645
        %v3674 = vrcp.pop %v3647
        %v3675 = vrcp.pop %v3649
        %v3676 = vrcp.pop %v3651
        %v3677 = vrcp.pop %v3653
        %v3678 = vrcp.pop %v3655
        %v3679 = vrcp.pop %v3657
        %v3680 = vrcp.pop %v3659
        %v3681 = vrcp.pop %v3661
        %v3682 = vrcp.pop %v3663
        %v3683 = vrcp.pop %v3665
        %v3684 = vrcp.pop %v3667
        %v3685 = vrcp.pop %v3669
        %v3686 = vmul.f32 %v3639, %v3670
        %v3687 = vmul.f32 %v3641, %v3671
        %v3688 = vmul.f32 %v3643, %v3672
        %v3689 = vmul.f32 %v3645, %v3673
        %v3690 = vmul.f32 %v3647, %v3674
        %v3691 = vmul.f32 %v3649, %v3675
        %v3692 = vmul.f32 %v3651, %v3676
        %v3693 = vmul.f32 %v3653, %v3677
        %v3694 = vmul.f32 %v3655, %v3678
        %v3695 = vmul.f32 %v3657, %v3679
        %v3696 = vmul.f32 %v3659, %v3680
        %v3697 = vmul.f32 %v3661, %v3681
        %v3698 = vmul.f32 %v3663, %v3682
        %v3699 = vmul.f32 %v3665, %v3683
        %v3700 = vmul.f32 %v3667, %v3684
        %v3701 = vmul.f32 %v3669, %v3685
        %v3702 = vsub.f32 2.0, %v3686
        %v3703 = vsub.f32 2.0, %v3687
        %v3704 = vsub.f32 2.0, %v3688
        %v3705 = vsub.f32 2.0, %v3689
        %v3706 = vsub.f32 2.0, %v3690
        %v3707 = vsub.f32 2.0, %v3691
        %v3708 = vsub.f32 2.0, %v3692
        %v3709 = vsub.f32 2.0, %v3693
        %v3710 = vsub.f32 2.0, %v3694
        %v3711 = vsub.f32 2.0, %v3695
        %v3712 = vsub.f32 2.0, %v3696
        %v3713 = vsub.f32 2.0, %v3697
        %v3714 = vsub.f32 2.0, %v3698
        %v3715 = vsub.f32 2.0, %v3699
        %v3716 = vsub.f32 2.0, %v3700
        %v3717 = vsub.f32 2.0, %v3701
        %v3718 = vmul.f32 %v3670, %v3702
        %v3719 = vmul.f32 %v3671, %v3703
        %v3720 = vmul.f32 %v3672, %v3704
        %v3721 = vmul.f32 %v3673, %v3705
        %v3722 = vmul.f32 %v3674, %v3706
        %v3723 = vmul.f32 %v3675, %v3707
        %v3724 = vmul.f32 %v3676, %v3708
        %v3725 = vmul.f32 %v3677, %v3709
        %v3726 = vmul.f32 %v3678, %v3710
        %v3727 = vmul.f32 %v3679, %v3711
        %v3728 = vmul.f32 %v3680, %v3712
        %v3729 = vmul.f32 %v3681, %v3713
        %v3730 = vmul.f32 %v3682, %v3714
        %v3731 = vmul.f32 %v3683, %v3715
        %v3732 = vmul.f32 %v3684, %v3716
        %v3733 = vmul.f32 %v3685, %v3717
        %v3734 = vmul.f32 %v3607, %v3718
        %v3735 = vmul.f32 %v3609, %v3719
        %v3736 = vmul.f32 %v3611, %v3720
        %v3737 = vmul.f32 %v3613, %v3721
        %v3738 = vmul.f32 %v3615, %v3722
        %v3739 = vmul.f32 %v3617, %v3723
        %v3740 = vmul.f32 %v3619, %v3724
        %v3741 = vmul.f32 %v3621, %v3725
        %v3742 = vmul.f32 %v3623, %v3726
        %v3743 = vmul.f32 %v3625, %v3727
        %v3744 = vmul.f32 %v3627, %v3728
        %v3745 = vmul.f32 %v3629, %v3729
        %v3746 = vmul.f32 %v3631, %v3730
        %v3747 = vmul.f32 %v3633, %v3731
        %v3748 = vmul.f32 %v3635, %v3732
        %v3749 = vmul.f32 %v3637, %v3733
        %3750 = vrot.lane.b32.xlu0 %v687, 32
        %v3751 = vpop.permute.xlu0 %3750
        %3752 = vrot.lane.b32.xlu0 %v692, 32
        %v3753 = vpop.permute.xlu0 %3752
        %3754 = vrot.lane.b32.xlu0 %v697, 32
        %v3755 = vpop.permute.xlu0 %3754
        %3756 = vrot.lane.b32.xlu0 %v702, 32
        %v3757 = vpop.permute.xlu0 %3756
        %3758 = vrot.lane.b32.xlu0 %v707, 32
        %v3759 = vpop.permute.xlu0 %3758
        %3760 = vrot.lane.b32.xlu0 %v712, 32
        %v3761 = vpop.permute.xlu0 %3760
        %3762 = vrot.lane.b32.xlu0 %v717, 32
        %v3763 = vpop.permute.xlu0 %3762
        %3764 = vrot.lane.b32.xlu0 %v722, 32
        %v3765 = vpop.permute.xlu0 %3764
        %3766 = vrot.lane.b32.xlu0 %v727, 32
        %v3767 = vpop.permute.xlu0 %3766
        %3768 = vrot.lane.b32.xlu0 %v732, 32
        %v3769 = vpop.permute.xlu0 %3768
        %3770 = vrot.lane.b32.xlu0 %v737, 32
        %v3771 = vpop.permute.xlu0 %3770
        %3772 = vrot.lane.b32.xlu0 %v742, 32
        %v3773 = vpop.permute.xlu0 %3772
        %3774 = vrot.lane.b32.xlu0 %v747, 32
        %v3775 = vpop.permute.xlu0 %3774
        %3776 = vrot.lane.b32.xlu0 %v752, 32
        %v3777 = vpop.permute.xlu0 %3776
        %3778 = vrot.lane.b32.xlu0 %v757, 32
        %v3779 = vpop.permute.xlu0 %3778
        %3780 = vrot.lane.b32.xlu0 %v762, 32
        %v3781 = vpop.permute.xlu0 %3780
        %3798 = vmatprep.subr.mxu0 0.0
        %3799 = vmatpush1.msra.mxu0 %v3751
        %3800 = vmatprep.subr.mxu0 0.0
        %3801 = vmatpush1.msra.mxu0 %v3753
        %3802 = vmatprep.subr.mxu0 0.0
        %3803 = vmatpush1.msra.mxu0 %v3755
        %3804 = vmatprep.subr.mxu0 0.0
        %3805 = vmatpush1.msra.mxu0 %v3757
        %3806 = vmatprep.subr.mxu0 0.0
        %3807 = vmatpush1.msra.mxu0 %v3759
        %3808 = vmatprep.subr.mxu0 0.0
        %3809 = vmatpush1.msra.mxu0 %v3761
        %3810 = vmatprep.subr.mxu0 0.0
        %3811 = vmatpush1.msra.mxu0 %v3763
        %3812 = vmatprep.subr.mxu0 0.0
        %3813 = vmatpush1.msra.mxu0 %v3765
        %3814 = vmatprep.subr.mxu0 0.0
        %3815 = vmatpush1.msra.mxu0 %v3767
        %3816 = vmatprep.subr.mxu0 0.0
        %3817 = vmatpush1.msra.mxu0 %v3769
        %3818 = vmatprep.subr.mxu0 0.0
        %3819 = vmatpush1.msra.mxu0 %v3771
        %3820 = vmatprep.subr.mxu0 0.0
        %3821 = vmatpush1.msra.mxu0 %v3773
        %3822 = vmatprep.subr.mxu0 0.0
        %3823 = vmatpush1.msra.mxu0 %v3775
        %3824 = vmatprep.subr.mxu0 0.0
        %3825 = vmatpush1.msra.mxu0 %v3777
        %3826 = vmatprep.subr.mxu0 0.0
        %3827 = vmatpush1.msra.mxu0 %v3779
        %3828 = vmatprep.subr.mxu0 0.0
        %3829 = vmatpush1.msra.mxu0 %v3781
        %3830 = vmatprep.subr.mxu0 0.0
        %3831 = vmatpush1.msra.mxu0 0.0
        %3832 = vmatprep.subr.mxu0 0.0
        %3833 = vmatpush1.msra.mxu0 0.0
        %3834 = vmatprep.subr.mxu0 0.0
        %3835 = vmatpush1.msra.mxu0 0.0
        %3836 = vmatprep.subr.mxu0 0.0
        %3837 = vmatpush1.msra.mxu0 0.0
        %3838 = vmatprep.subr.mxu0 0.0
        %3839 = vmatpush1.msra.mxu0 0.0
        %3840 = vmatprep.subr.mxu0 0.0
        %3841 = vmatpush1.msra.mxu0 0.0
        %3842 = vmatprep.subr.mxu0 0.0
        %3843 = vmatpush1.msra.mxu0 0.0
        %3844 = vmatprep.subr.mxu0 0.0
        %3845 = vmatpush1.msra.mxu0 0.0
        %3846 = vmatprep.subr.mxu0 0.0
        %3847 = vmatpush1.msra.mxu0 0.0
        %3848 = vmatprep.subr.mxu0 0.0
        %3849 = vmatpush1.msra.mxu0 0.0
        %3850 = vmatprep.subr.mxu0 0.0
        %3851 = vmatpush1.msra.mxu0 0.0
        %3852 = vmatprep.subr.mxu0 0.0
        %3853 = vmatpush1.msra.mxu0 0.0
        %3854 = vmatprep.subr.mxu0 0.0
        %3855 = vmatpush1.msra.mxu0 0.0
        %3856 = vmatprep.subr.mxu0 0.0
        %3857 = vmatpush1.msra.mxu0 0.0
        %3858 = vmatprep.subr.mxu0 0.0
        %3859 = vmatpush1.msra.mxu0 0.0
        %3860 = vmatprep.subr.mxu0 0.0
        %3861 = vmatpush1.msra.mxu0 0.0
        %3862 = vmatprep.mubr.f32.mxu0 0.0
        %3863 = vmatmul.mubr.f32.gmra.mrb[0].mxu0 %v3734
        %v3864 = vpop.f32.mrb[0].mxu0
        %v3865 = vadd.f32 0.0, %v3864
        %v3866 = vpop.f32.mrb[0].mxu0
        %3867 = vmatprep.mubr.f32.mxu0 0.0
        %3868 = vmatmul.mubr.f32.gmra.mrb[0].mxu0 %v3735
        %v3869 = vpop.f32.mrb[0].mxu0
        %v3870 = vadd.f32 0.0, %v3869
        %v3871 = vpop.f32.mrb[0].mxu0
        %3872 = vmatprep.mubr.f32.mxu0 0.0
        %3873 = vmatmul.mubr.f32.gmra.mrb[0].mxu0 %v3736
        %v3874 = vpop.f32.mrb[0].mxu0
        %v3875 = vadd.f32 0.0, %v3874
        %v3876 = vpop.f32.mrb[0].mxu0
        %3877 = vmatprep.mubr.f32.mxu0 0.0
        %3878 = vmatmul.mubr.f32.gmra.mrb[0].mxu0 %v3737
        %v3879 = vpop.f32.mrb[0].mxu0
        %v3880 = vadd.f32 0.0, %v3879
        %v3881 = vpop.f32.mrb[0].mxu0
        %3882 = vmatprep.mubr.f32.mxu0 0.0
        %3883 = vmatmul.mubr.f32.gmra.mrb[0].mxu0 %v3738
        %v3884 = vpop.f32.mrb[0].mxu0
        %v3885 = vadd.f32 0.0, %v3884
        %v3886 = vpop.f32.mrb[0].mxu0
        %3887 = vmatprep.mubr.f32.mxu0 0.0
        %3888 = vmatmul.mubr.f32.gmra.mrb[0].mxu0 %v3739
        %v3889 = vpop.f32.mrb[0].mxu0
        %v3890 = vadd.f32 0.0, %v3889
        %v3891 = vpop.f32.mrb[0].mxu0
        %3892 = vmatprep.mubr.f32.mxu0 0.0
        %3893 = vmatmul.mubr.f32.gmra.mrb[0].mxu0 %v3740
        %v3894 = vpop.f32.mrb[0].mxu0
        %v3895 = vadd.f32 0.0, %v3894
        %v3896 = vpop.f32.mrb[0].mxu0
        %3897 = vmatprep.mubr.f32.mxu0 0.0
        %3898 = vmatmul.mubr.f32.gmra.mrb[0].mxu0 %v3741
        %v3899 = vpop.f32.mrb[0].mxu0
        %v3900 = vadd.f32 0.0, %v3899
        %v3901 = vpop.f32.mrb[0].mxu0
        %3902 = vmatprep.mubr.f32.mxu0 0.0
        %3903 = vmatmul.mubr.f32.gmra.mrb[0].mxu0 %v3742
        %v3904 = vpop.f32.mrb[0].mxu0
        %v3905 = vadd.f32 0.0, %v3904
        %v3906 = vpop.f32.mrb[0].mxu0
        %3907 = vmatprep.mubr.f32.mxu0 0.0
        %3908 = vmatmul.mubr.f32.gmra.mrb[0].mxu0 %v3743
        %v3909 = vpop.f32.mrb[0].mxu0
        %v3910 = vadd.f32 0.0, %v3909
        %v3911 = vpop.f32.mrb[0].mxu0
        %3912 = vmatprep.mubr.f32.mxu0 0.0
        %3913 = vmatmul.mubr.f32.gmra.mrb[0].mxu0 %v3744
        %v3914 = vpop.f32.mrb[0].mxu0
        %v3915 = vadd.f32 0.0, %v3914
        %v3916 = vpop.f32.mrb[0].mxu0
        %3917 = vmatprep.mubr.f32.mxu0 0.0
        %3918 = vmatmul.mubr.f32.gmra.mrb[0].mxu0 %v3745
        %v3919 = vpop.f32.mrb[0].mxu0
        %v3920 = vadd.f32 0.0, %v3919
        %v3921 = vpop.f32.mrb[0].mxu0
        %3922 = vmatprep.mubr.f32.mxu0 0.0
        %3923 = vmatmul.mubr.f32.gmra.mrb[0].mxu0 %v3746
        %v3924 = vpop.f32.mrb[0].mxu0
        %v3925 = vadd.f32 0.0, %v3924
        %v3926 = vpop.f32.mrb[0].mxu0
        %3927 = vmatprep.mubr.f32.mxu0 0.0
        %3928 = vmatmul.mubr.f32.gmra.mrb[0].mxu0 %v3747
        %v3929 = vpop.f32.mrb[0].mxu0
        %v3930 = vadd.f32 0.0, %v3929
        %v3931 = vpop.f32.mrb[0].mxu0
        %3932 = vmatprep.mubr.f32.mxu0 0.0
        %3933 = vmatmul.mubr.f32.gmra.mrb[0].mxu0 %v3748
        %v3934 = vpop.f32.mrb[0].mxu0
        %v3935 = vadd.f32 0.0, %v3934
        %v3936 = vpop.f32.mrb[0].mxu0
        %3937 = vmatprep.mubr.f32.mxu0 0.0
        %3938 = vmatmul.mubr.f32.gmra.mrb[0].mxu0 %v3749
        %v3939 = vpop.f32.mrb[0].mxu0
        %v3940 = vadd.f32 0.0, %v3939
        %v3941 = vpop.f32.mrb[0].mxu0
        %3942 = vdwg.mxu0
        %s3943 = scalar_lea.vmem [#allocation8], 96
        %v3944 = vld [vmem:[%s3943] sm:$0xff]
        %v3945 = vld [vmem:[%s3943 + $0x8] sm:$0xff]
        %v3946 = vld [vmem:[%s3943 + $0x10] sm:$0xff]
        %v3947 = vld [vmem:[%s3943 + $0x18] sm:$0xff]
        %v3949 = vsel %vm765, %v3865, 0
        %v3952 = vsel %vm765, %v3870, 0
        %v3955 = vsel %vm765, %v3875, 0
        %v3958 = vsel %vm765, %v3880, 0
        %v3961 = vsel %vm765, %v3885, 0
        %v3964 = vsel %vm765, %v3890, 0
        %v3967 = vsel %vm765, %v3895, 0
        %v3970 = vsel %vm765, %v3900, 0
        %v3973 = vsel %vm765, %v3905, 0
        %v3976 = vsel %vm765, %v3910, 0
        %v3979 = vsel %vm765, %v3915, 0
        %v3982 = vsel %vm765, %v3920, 0
        %v3985 = vsel %vm765, %v3925, 0
        %v3988 = vsel %vm765, %v3930, 0
        %v3991 = vsel %vm765, %v3935, 0
        %v3994 = vsel %vm765, %v3940, 0
        %3996 = vmatprep.subr.mxu0 0.0
        %3997 = vmatpush1.msra.mxu0 %v3944
        %3998 = vmatprep.subr.mxu0 0.0
        %3999 = vmatpush1.msra.mxu0 %v3945
        %4000 = vmatprep.subr.mxu0 0.0
        %4001 = vmatpush1.msra.mxu0 %v3946
        %4002 = vmatprep.subr.mxu0 0.0
        %4003 = vmatpush1.msra.mxu0 %v3947
        %4004 = vmatprep.subr.mxu0 0.0
        %4005 = vmatpush1.msra.mxu0 0.0
        %4006 = vmatprep.subr.mxu0 0.0
        %4007 = vmatpush1.msra.mxu0 0.0
        %4008 = vmatprep.subr.mxu0 0.0
        %4009 = vmatpush1.msra.mxu0 0.0
        %4010 = vmatprep.subr.mxu0 0.0
        %4011 = vmatpush1.msra.mxu0 0.0
        %4012 = vmatprep.subr.mxu0 0.0
        %4013 = vmatpush1.msra.mxu0 0.0
        %4014 = vmatprep.subr.mxu0 0.0
        %4015 = vmatpush1.msra.mxu0 0.0
        %4016 = vmatprep.subr.mxu0 0.0
        %4017 = vmatpush1.msra.mxu0 0.0
        %4018 = vmatprep.subr.mxu0 0.0
        %4019 = vmatpush1.msra.mxu0 0.0
        %4020 = vmatprep.subr.mxu0 0.0
        %4021 = vmatpush1.msra.mxu0 0.0
        %4022 = vmatprep.subr.mxu0 0.0
        %4023 = vmatpush1.msra.mxu0 0.0
        %4024 = vmatprep.subr.mxu0 0.0
        %4025 = vmatpush1.msra.mxu0 0.0
        %4026 = vmatprep.subr.mxu0 0.0
        %4027 = vmatpush1.msra.mxu0 0.0
        %4028 = vmatprep.subr.mxu0 0.0
        %4029 = vmatpush1.msra.mxu0 0.0
        %4030 = vmatprep.subr.mxu0 0.0
        %4031 = vmatpush1.msra.mxu0 0.0
        %4032 = vmatprep.subr.mxu0 0.0
        %4033 = vmatpush1.msra.mxu0 0.0
        %4034 = vmatprep.subr.mxu0 0.0
        %4035 = vmatpush1.msra.mxu0 0.0
        %4036 = vmatprep.subr.mxu0 0.0
        %4037 = vmatpush1.msra.mxu0 0.0
        %4038 = vmatprep.subr.mxu0 0.0
        %4039 = vmatpush1.msra.mxu0 0.0
        %4040 = vmatprep.subr.mxu0 0.0
        %4041 = vmatpush1.msra.mxu0 0.0
        %4042 = vmatprep.subr.mxu0 0.0
        %4043 = vmatpush1.msra.mxu0 0.0
        %4044 = vmatprep.subr.mxu0 0.0
        %4045 = vmatpush1.msra.mxu0 0.0
        %4046 = vmatprep.subr.mxu0 0.0
        %4047 = vmatpush1.msra.mxu0 0.0
        %4048 = vmatprep.subr.mxu0 0.0
        %4049 = vmatpush1.msra.mxu0 0.0
        %4050 = vmatprep.subr.mxu0 0.0
        %4051 = vmatpush1.msra.mxu0 0.0
        %4052 = vmatprep.subr.mxu0 0.0
        %4053 = vmatpush1.msra.mxu0 0.0
        %4054 = vmatprep.subr.mxu0 0.0
        %4055 = vmatpush1.msra.mxu0 0.0
        %4056 = vmatprep.subr.mxu0 0.0
        %4057 = vmatpush1.msra.mxu0 0.0
        %4058 = vmatprep.subr.mxu0 0.0
        %4059 = vmatpush1.msra.mxu0 0.0
        %4060 = vmatprep.mubr.f32.mxu0 0.0
        %4061 = vmatmul.mubr.f32.gmra.mrb[0].mxu0 %v3949
        %v4062 = vpop.f32.mrb[0].mxu0
        %v4063 = vadd.f32 0.0, %v4062
        %v4064 = vpop.f32.mrb[0].mxu0
        %4065 = vmatprep.mubr.f32.mxu0 0.0
        %4066 = vmatmul.mubr.f32.gmra.mrb[0].mxu0 %v3952
        %v4067 = vpop.f32.mrb[0].mxu0
        %v4068 = vadd.f32 0.0, %v4067
        %v4069 = vpop.f32.mrb[0].mxu0
        %4070 = vmatprep.mubr.f32.mxu0 0.0
        %4071 = vmatmul.mubr.f32.gmra.mrb[0].mxu0 %v3955
        %v4072 = vpop.f32.mrb[0].mxu0
        %v4073 = vadd.f32 0.0, %v4072
        %v4074 = vpop.f32.mrb[0].mxu0
        %4075 = vmatprep.mubr.f32.mxu0 0.0
        %4076 = vmatmul.mubr.f32.gmra.mrb[0].mxu0 %v3958
        %v4077 = vpop.f32.mrb[0].mxu0
        %v4078 = vadd.f32 0.0, %v4077
        %v4079 = vpop.f32.mrb[0].mxu0
        %4080 = vmatprep.mubr.f32.mxu0 0.0
        %4081 = vmatmul.mubr.f32.gmra.mrb[0].mxu0 %v3961
        %v4082 = vpop.f32.mrb[0].mxu0
        %v4083 = vadd.f32 0.0, %v4082
        %v4084 = vpop.f32.mrb[0].mxu0
        %4085 = vmatprep.mubr.f32.mxu0 0.0
        %4086 = vmatmul.mubr.f32.gmra.mrb[0].mxu0 %v3964
        %v4087 = vpop.f32.mrb[0].mxu0
        %v4088 = vadd.f32 0.0, %v4087
        %v4089 = vpop.f32.mrb[0].mxu0
        %4090 = vmatprep.mubr.f32.mxu0 0.0
        %4091 = vmatmul.mubr.f32.gmra.mrb[0].mxu0 %v3967
        %v4092 = vpop.f32.mrb[0].mxu0
        %v4093 = vadd.f32 0.0, %v4092
        %v4094 = vpop.f32.mrb[0].mxu0
        %4095 = vmatprep.mubr.f32.mxu0 0.0
        %4096 = vmatmul.mubr.f32.gmra.mrb[0].mxu0 %v3970
        %v4097 = vpop.f32.mrb[0].mxu0
        %v4098 = vadd.f32 0.0, %v4097
        %v4099 = vpop.f32.mrb[0].mxu0
        %4100 = vmatprep.mubr.f32.mxu0 0.0
        %4101 = vmatmul.mubr.f32.gmra.mrb[0].mxu0 %v3973
        %v4102 = vpop.f32.mrb[0].mxu0
        %v4103 = vadd.f32 0.0, %v4102
        %v4104 = vpop.f32.mrb[0].mxu0
        %4105 = vmatprep.mubr.f32.mxu0 0.0
        %4106 = vmatmul.mubr.f32.gmra.mrb[0].mxu0 %v3976
        %v4107 = vpop.f32.mrb[0].mxu0
        %v4108 = vadd.f32 0.0, %v4107
        %v4109 = vpop.f32.mrb[0].mxu0
        %4110 = vmatprep.mubr.f32.mxu0 0.0
        %4111 = vmatmul.mubr.f32.gmra.mrb[0].mxu0 %v3979
        %v4112 = vpop.f32.mrb[0].mxu0
        %v4113 = vadd.f32 0.0, %v4112
        %v4114 = vpop.f32.mrb[0].mxu0
        %4115 = vmatprep.mubr.f32.mxu0 0.0
        %4116 = vmatmul.mubr.f32.gmra.mrb[0].mxu0 %v3982
        %v4117 = vpop.f32.mrb[0].mxu0
        %v4118 = vadd.f32 0.0, %v4117
        %v4119 = vpop.f32.mrb[0].mxu0
        %4120 = vmatprep.mubr.f32.mxu0 0.0
        %4121 = vmatmul.mubr.f32.gmra.mrb[0].mxu0 %v3985
        %v4122 = vpop.f32.mrb[0].mxu0
        %v4123 = vadd.f32 0.0, %v4122
        %v4124 = vpop.f32.mrb[0].mxu0
        %4125 = vmatprep.mubr.f32.mxu0 0.0
        %4126 = vmatmul.mubr.f32.gmra.mrb[0].mxu0 %v3988
        %v4127 = vpop.f32.mrb[0].mxu0
        %v4128 = vadd.f32 0.0, %v4127
        %v4129 = vpop.f32.mrb[0].mxu0
        %4130 = vmatprep.mubr.f32.mxu0 0.0
        %4131 = vmatmul.mubr.f32.gmra.mrb[0].mxu0 %v3991
        %v4132 = vpop.f32.mrb[0].mxu0
        %v4133 = vadd.f32 0.0, %v4132
        %v4134 = vpop.f32.mrb[0].mxu0
        %4135 = vmatprep.mubr.f32.mxu0 0.0
        %4136 = vmatmul.mubr.f32.gmra.mrb[0].mxu0 %v3994
        %v4137 = vpop.f32.mrb[0].mxu0
        %v4138 = vadd.f32 0.0, %v4137
        %v4139 = vpop.f32.mrb[0].mxu0
        %4140 = vdwg.mxu0
        %v4141 = vadd.f32 %v3269, %v4063
        %v4142 = vadd.f32 %v3270, %v4068
        %v4143 = vadd.f32 %v3271, %v4073
        %v4144 = vadd.f32 %v3272, %v4078
        %v4145 = vadd.f32 %v3273, %v4083
        %v4146 = vadd.f32 %v3274, %v4088
        %v4147 = vadd.f32 %v3275, %v4093
        %v4148 = vadd.f32 %v3276, %v4098
        %v4149 = vadd.f32 %v3277, %v4103
        %v4150 = vadd.f32 %v3278, %v4108
        %v4151 = vadd.f32 %v3279, %v4113
        %v4152 = vadd.f32 %v3280, %v4118
        %v4153 = vadd.f32 %v3281, %v4123
        %v4154 = vadd.f32 %v3282, %v4128
        %v4155 = vadd.f32 %v3283, %v4133
        %v4156 = vadd.f32 %v3284, %v4138
        %v4157 = vld [vmem:[%s5] sm:$0x1]
        %v4159 = vlaneseq
        %v4160 = vshrl.u32 %v4159, 7
        %v4161 = vsub.s32 0, %v4160
        %v4162 = vrot.slane %v4157, %v4161
        %v4164 = vadd.f32 %v4141, %v4162
        %v4165 = vadd.f32 %v4142, %v4162
        %v4166 = vadd.f32 %v4143, %v4162
        %v4167 = vadd.f32 %v4144, %v4162
        %v4168 = vadd.f32 %v4145, %v4162
        %v4169 = vadd.f32 %v4146, %v4162
        %v4170 = vadd.f32 %v4147, %v4162
        %v4171 = vadd.f32 %v4148, %v4162
        %v4172 = vadd.f32 %v4149, %v4162
        %v4173 = vadd.f32 %v4150, %v4162
        %v4174 = vadd.f32 %v4151, %v4162
        %v4175 = vadd.f32 %v4152, %v4162
        %v4176 = vadd.f32 %v4153, %v4162
        %v4177 = vadd.f32 %v4154, %v4162
        %v4178 = vadd.f32 %v4155, %v4162
        %v4179 = vadd.f32 %v4156, %v4162
        %v4180 = vadd.f32 %v346, %v4164
        %v4181 = vadd.f32 %v347, %v4165
        %v4182 = vadd.f32 %v348, %v4166
        %v4183 = vadd.f32 %v349, %v4167
        %v4184 = vadd.f32 %v350, %v4168
        %v4185 = vadd.f32 %v351, %v4169
        %v4186 = vadd.f32 %v352, %v4170
        %v4187 = vadd.f32 %v353, %v4171
        %v4188 = vadd.f32 %v354, %v4172
        %v4189 = vadd.f32 %v355, %v4173
        %v4190 = vadd.f32 %v356, %v4174
        %v4191 = vadd.f32 %v357, %v4175
        %v4192 = vadd.f32 %v358, %v4176
        %v4193 = vadd.f32 %v359, %v4177
        %v4194 = vadd.f32 %v360, %v4178
        %v4195 = vadd.f32 %v361, %v4179
        %4196 = vxpose.xlu0.b32.start [1/16] %v4180, 128
        %4197 = vxpose.xlu0.b32.cont [2/16] %v4181, 128
        %4198 = vxpose.xlu0.b32.cont [3/16] %v4182, 128
        %4199 = vxpose.xlu0.b32.cont [4/16] %v4183, 128
        %4200 = vxpose.xlu0.b32.cont [5/16] %v4184, 128
        %4201 = vxpose.xlu0.b32.cont [6/16] %v4185, 128
        %4202 = vxpose.xlu0.b32.cont [7/16] %v4186, 128
        %4203 = vxpose.xlu0.b32.cont [8/16] %v4187, 128
        %4204 = vxpose.xlu0.b32.cont [9/16] %v4188, 128
        %4205 = vxpose.xlu0.b32.cont [10/16] %v4189, 128
        %4206 = vxpose.xlu0.b32.cont [11/16] %v4190, 128
        %4207 = vxpose.xlu0.b32.cont [12/16] %v4191, 128
        %4208 = vxpose.xlu0.b32.cont [13/16] %v4192, 128
        %4209 = vxpose.xlu0.b32.cont [14/16] %v4193, 128
        %4210 = vxpose.xlu0.b32.cont [15/16] %v4194, 128
        %4211 = vxpose.xlu0.b32.end [16/16] %v4195, 128
        %v4212 = vpop.trf.xlu0
        %v4213 = vpop.trf.xlu0
        %v4214 = vpop.trf.xlu0
        %v4215 = vpop.trf.xlu0
        %v4216 = vpop.trf.xlu0
        %v4217 = vpop.trf.xlu0
        %v4218 = vpop.trf.xlu0
        %v4219 = vpop.trf.xlu0
        %v4220 = vpop.trf.xlu0
        %v4221 = vpop.trf.xlu0
        %v4222 = vpop.trf.xlu0
        %v4223 = vpop.trf.xlu0
        %v4224 = vpop.trf.xlu0
        %v4225 = vpop.trf.xlu0
        %v4226 = vpop.trf.xlu0
        %v4227 = vpop.trf.xlu0
        %4228 = vst [vmem:[%s313] sm:$0xff] %v4212
        %4229 = vst [vmem:[%s313 + $0x8] sm:$0xff] %v4213
        %4230 = vst [vmem:[%s313 + $0x10] sm:$0xff] %v4214
        %4231 = vst [vmem:[%s313 + $0x18] sm:$0xff] %v4215
        %4232 = vst [vmem:[%s313 + $0x20] sm:$0xff] %v4216
        %4233 = vst [vmem:[%s313 + $0x28] sm:$0xff] %v4217
        %4234 = vst [vmem:[%s313 + $0x30] sm:$0xff] %v4218
        %4235 = vst [vmem:[%s313 + $0x38] sm:$0xff] %v4219
        %4236 = vst [vmem:[%s313 + $0x40] sm:$0xff] %v4220
        %4237 = vst [vmem:[%s313 + $0x48] sm:$0xff] %v4221
        %4238 = vst [vmem:[%s313 + $0x50] sm:$0xff] %v4222
        %4239 = vst [vmem:[%s313 + $0x58] sm:$0xff] %v4223
        %4240 = vst [vmem:[%s313 + $0x60] sm:$0xff] %v4224
        %4241 = vst [vmem:[%s313 + $0x68] sm:$0xff] %v4225
        %4242 = vst [vmem:[%s313 + $0x70] sm:$0xff] %v4226
        %4243 = vst [vmem:[%s313 + $0x78] sm:$0xff] %v4227
        %s4244 = sand.u32 %s164, 1
        %s4245 = scalar_lea.sflag [#allocation4], %s4244
        %s4246 = sand.u32 %s164, 1
        %s4247 = smul.addr %s4246, 128
        %s4248 = scalar_lea.vmem [#allocation10], %s4247
        // Predicated region
        $region61: #{tpu_custom_call.1} parent=43 // pred_check
          %p4249 = pneg %p174
        $region62: #{tpu_custom_call.1} parent=43 // pred_check_branch
          %4251 = sbr.rel (%p4249) target = $region64
        $region63: #{tpu_custom_call.1} parent=43 // pred_region
          %s4253 = ssub.s32 2048, 2048
          %4254 = vsyncadd %s4245, %s4253
          %s4255 = smul.addr %s25, 16
          %s4256 = smul.addr %s4255, 128
          %s4257 = scalar_lea.hbm %s6, %s4256
          %s4258 = sshll.u32 %s4248, 4
          %s4259 = int_to_ptr.vmem [resolvable:$true] %s4258
          %4264 = dma.vmem_to_hbm [thread:$0]  %s4259, 2048, %s4257, %s4245, 128, 128, 8
        $region64: #{tpu_custom_call.1} parent=43 // pred_fallthru
          _
      $region44: #{tpu_custom_call.1} parent=5 // pred_fallthru
        _
      %p4265 = scmp.le.s32.totalorder 2, %s20
      // Predicated region
      $region65: #{tpu_custom_call.1} parent=5 // pred_check
        %p4266 = pneg %p4265
      $region66: #{tpu_custom_call.1} parent=5 // pred_check_branch
        %4268 = sbr.rel (%p4266) target = $region68
      $region67: #{tpu_custom_call.1} parent=5 // pred_region
        %s4269 = ssub.s32 %s20, 2
        // Predicated region
        $region69: #{tpu_custom_call.1} parent=67 // pred_check
          %p4270 = pneg %p180
        $region70: #{tpu_custom_call.1} parent=67 // pred_check_branch
          %4272 = sbr.rel (%p4270) target = $region72
        $region71: #{tpu_custom_call.1} parent=67 // pred_region
          %s4273 = sand.u32 %s165, 1
          %s4274 = scalar_lea.sflag [#allocation4], %s4273
          %s4275 = sand.u32 %s165, 1
          %s4276 = smul.addr %s4275, 128
          %s4277 = scalar_lea.vmem [#allocation10], %s4276
          %4278 = dma.done %s4274, 2048
        $region72: #{tpu_custom_call.1} parent=67 // pred_fallthru
          _
      $region68: #{tpu_custom_call.1} parent=5 // pred_fallthru
        _
    $region6: #{tpu_custom_call.1} parent=1 // loop_footer
      %s24 = sadd.s32 1, %s20
    $region7: #{tpu_custom_call.1} parent=1 // loop_footer_branch
      %19 = sbr.rel target = $region3
    $region8: #{tpu_custom_call.1} parent=1 // loop_exit
      _
    %4279 = vsyncpa [#allocation3], 1
    %s4280 = scalar_lea.sflag [#allocation3], 1
    %4281 = vsyncpa %s4280, 1
    %4282 = vsyncpa [#allocation6], 1
    %4283 = vsyncpa [#allocation9], 1
    %4284 = vsyncpa [#allocation4], 1
    %s4285 = scalar_lea.sflag [#allocation4], 1
    %4286 = vsyncpa %s4285, 1

</llo_original>
